<compile_context>
chip_gen: v7x
topology: tpu7x:2x2x1
jax: 0.10.0
libtpu: 0.0.40
codegen_flags: <defaults>
</compile_context>

<pallas_src>
import functools
import numpy as np
import jax
import jax.numpy as jnp
from jax.experimental import pallas as pl
from jax.experimental.pallas import tpu as pltpu


# ----------------------------- helpers ---------------------------------------

def _layer_norm(x, gamma, beta, eps=1e-5):
    # x: (M, D), gamma/beta: (1, D); PyTorch LayerNorm over the last dim.
    mu = jnp.mean(x, axis=-1, keepdims=True)
    var = jnp.mean((x - mu) ** 2, axis=-1, keepdims=True)
    return (x - mu) * jax.lax.rsqrt(var + eps) * gamma + beta


# ----------------------------- fused kernel -----------------------------------

def transformer_kernel(x_ref, pe_ref, wp_ref, bp_ref,
                       wqkv_ref, bqkv_ref, wo_ref, bo_ref,
                       g1_ref, be1_ref, w1_ref, b1_ref,
                       w2_ref, b2_ref, g2_ref, be2_ref,
                       o_ref, *, B, T, n_heads, d_k, n_encoders):
    D = n_heads * d_k
    inv_scale = 1.0 / (float(d_k) ** 0.5)

    # PatchEmbed (1x1 conv == linear) + positional encoding, batch folded into rows.
    x = x_ref[...].astype(jnp.float32)                              # (B*T, F)
    h = jnp.dot(x, wp_ref[...], preferred_element_type=jnp.float32)
    h = h + bp_ref[...] + pe_ref[...]                               # (B*T, D)

    for l in range(n_encoders):                                     # static unroll
        wqkv = wqkv_ref[l]; bqkv = bqkv_ref[l]                      # (D, 3D), (1, 3D)
        wo = wo_ref[l];     bo = bo_ref[l]
        g1 = g1_ref[l];     be1 = be1_ref[l]
        w1 = w1_ref[l];     b1 = b1_ref[l]
        w2 = w2_ref[l];     b2 = b2_ref[l]
        g2 = g2_ref[l];     be2 = be2_ref[l]

        # Fused Q/K/V projection: one MXU push with N = 3D.
        qkv = jnp.dot(h, wqkv, preferred_element_type=jnp.float32) + bqkv   # (B*T, 3D)

        # Multi-head attention; output projection folded into the per-head loop
        # (no context concat). Residual + output bias start the accumulator.
        attn = h + bo                                               # (B*T, D)
        for hh in range(n_heads):
            lo = hh * d_k
            q = qkv[:, lo:lo + d_k] * inv_scale                     # (B*T, d_k)
            k = qkv[:, D + lo:D + lo + d_k]
            v = qkv[:, 2 * D + lo:2 * D + lo + d_k]
            q3 = q.reshape(B, T, d_k)
            k3 = k.reshape(B, T, d_k)
            v3 = v.reshape(B, T, d_k)
            s = jnp.einsum('bqd,bkd->bqk', q3, k3,
                           preferred_element_type=jnp.float32)      # (B, T, T)
            s = s - jnp.max(s, axis=-1, keepdims=True)
            e = jnp.exp(s)
            p = e * pl.reciprocal(jnp.sum(e, axis=-1, keepdims=True), approx=True)
            ctx = jnp.einsum('bqk,bkd->bqd', p, v3,
                             preferred_element_type=jnp.float32)    # (B, T, d_k)
            attn = attn + jnp.dot(ctx.reshape(B * T, d_k),
                                  wo[lo:lo + d_k, :],
                                  preferred_element_type=jnp.float32)
        h1 = _layer_norm(attn, g1, be1)

        # Position-wise feed-forward + residual + LN.
        hid = jnp.dot(h1, w1, preferred_element_type=jnp.float32) + b1
        hid = jnp.maximum(hid, 0.0)
        ffn = jnp.dot(hid, w2, preferred_element_type=jnp.float32) + b2
        h = _layer_norm(ffn + h1, g2, be2)

    o_ref[...] = h.astype(o_ref.dtype)


# ----------------------------- wrapper ----------------------------------------

def _full_spec(shape):
    """Full-extent block, constant across the (trivial) grid."""
    ndim = len(shape)
    return pl.BlockSpec(shape, lambda b, _n=ndim: (0,) * _n)


def transformer_forward(x, params, *, n_heads, n_encoders):
    B, T, F = x.shape
    D = params["proj_w"].shape[1]
    d_k = D // n_heads
    layers = params["enc_layers"]
    assert len(layers) == n_encoders

    # Fuse Q/K/V weights into (D, 3D) and stack per-layer weights on a leading axis.
    wqkv = jnp.stack([jnp.concatenate([p["wq"], p["wk"], p["wv"]], axis=1)
                      for p in layers])
    bqkv = jnp.stack([jnp.concatenate([p["bq"], p["bk"], p["bv"]], axis=1)
                      for p in layers])

    def stk(name):
        return jnp.stack([p[name] for p in layers])

    wo, bo = stk("wo"), stk("bo")
    g1, be1 = stk("g1"), stk("be1")
    w1, b1 = stk("w1"), stk("b1")
    w2, b2 = stk("w2"), stk("b2")
    g2, be2 = stk("g2"), stk("be2")

    x2 = x.reshape(B * T, F)                      # batch folded into rows
    pe_t = jnp.tile(params["pe"], (B, 1))         # (B*T, D)

    args = [x2, pe_t, params["proj_w"], params["proj_b"],
            wqkv, bqkv, wo, bo, g1, be1, w1, b1, w2, b2, g2, be2]
    in_specs = [_full_spec(a.shape) for a in args]

    kern = functools.partial(transformer_kernel, B=B, T=T, n_heads=n_heads,
                             d_k=d_k, n_encoders=n_encoders)

    out2 = pl.pallas_call(
        kern,
        out_shape=jax.ShapeDtypeStruct((B * T, D), jnp.float32),
        grid=(1,),
        in_specs=in_specs,
        out_specs=_full_spec((B * T, D)),
        compiler_params=pltpu.CompilerParams(
            dimension_semantics=("arbitrary",)),
    )(*args)
    return out2.reshape(B, T, D)


# ----------------------------- pure-JAX reference ------------------------------

def _ref_forward(x, params, *, n_heads, n_encoders):
    def ln(v, g, b):
        mu = v.mean(-1, keepdims=True)
        var = ((v - mu) ** 2).mean(-1, keepdims=True)
        return (v - mu) / jnp.sqrt(var + 1e-5) * g + b

    out = x @ params["proj_w"] + params["proj_b"] + params["pe"]
    B, T, D = out.shape
    d_k = D // n_heads
    for p in params["enc_layers"]:
        q = (out @ p["wq"] + p["bq"]).reshape(B, T, n_heads, d_k).transpose(0, 2, 1, 3)
        k = (out @ p["wk"] + p["bk"]).reshape(B, T, n_heads, d_k).transpose(0, 2, 1, 3)
        v = (out @ p["wv"] + p["bv"]).reshape(B, T, n_heads, d_k).transpose(0, 2, 1, 3)
        att = jax.nn.softmax(jnp.einsum("bhqd,bhkd->bhqk", q / (d_k ** 0.5), k), axis=-1)
        ctx = jnp.einsum("bhqk,bhkd->bhqd", att, v).transpose(0, 2, 1, 3).reshape(B, T, D)
        a = ln(ctx @ p["wo"] + p["bo"] + out, p["g1"], p["be1"])
        f = jax.nn.relu(a @ p["w1"] + p["b1"]) @ p["w2"] + p["b2"]
        out = ln(f + a, p["g2"], p["be2"])
    return out


# ----------------------------- main --------------------------------------------

def _positional_encoding(T, D):
    pe = np.array([[pos / 10000.0 ** (i // 2 * 2.0 / D) for i in range(D)]
                   for pos in range(T)], dtype=np.float64)
    pe[:, 0::2] = np.sin(pe[:, 0::2])
    pe[:, 1::2] = np.cos(pe[:, 1::2])
    return jnp.asarray(pe, dtype=jnp.float32)


if __name__ == "__main__":
    # Small, shape-consistent configuration.
    B, T = 2, 8            # batch, word_pad_len
    F = 16                 # vocab_size (= Conv1d in_chans)
    D = 32                 # d_model
    H = 64                 # hidden_size (FFN)
    n_heads = 4
    n_encoders = 2

    key = jax.random.PRNGKey(0)
    k_top = jax.random.split(key, 4)

    def init(k, shape, scale=0.05):
        return (scale * jax.random.normal(k, shape)).astype(jnp.float32)

    def make_layer(k):
        ks = jax.random.split(k, 12)
        return {
            "wq": init(ks[0], (D, D)), "bq": init(ks[1], (1, D)),
            "wk": init(ks[2], (D, D)), "bk": init(ks[3], (1, D)),
            "wv": init(ks[4], (D, D)), "bv": init(ks[5], (1, D)),
            "wo": init(ks[6], (D, D)), "bo": init(ks[7], (1, D)),
            "g1": jnp.ones((1, D), jnp.float32), "be1": jnp.zeros((1, D), jnp.float32),
            "w1": init(ks[8], (D, H)), "b1": init(ks[9], (1, H)),
            "w2": init(ks[10], (H, D)), "b2": init(ks[11], (1, D)),
            "g2": jnp.ones((1, D), jnp.float32), "be2": jnp.zeros((1, D), jnp.float32),
        }

    # Note: the PyTorch module initializes every encoder via copy.deepcopy (identical
    # weights); the kernel supports the general case of distinct per-layer weights,
    # so we exercise that here.
    layer_keys = jax.random.split(k_top[0], n_encoders)
    params = {
        "proj_w": init(k_top[1], (F, D)),          # Conv1d(k=1) weight, transposed
        "proj_b": init(k_top[2], (1, D)),
        "pe": _positional_encoding(T, D),
        "enc_layers": [make_layer(lk) for lk in layer_keys],
    }

    x = jax.random.normal(k_top[3], (B, T, F), dtype=jnp.float32)

    out = transformer_forward(x, params, n_heads=n_heads, n_encoders=n_encoders)
    out = jax.block_until_ready(out)

    ref = _ref_forward(x, params, n_heads=n_heads, n_encoders=n_encoders)
    assert out.shape == (B, T, D)
    np.testing.assert_allclose(np.asarray(out), np.asarray(ref), atol=5e-3, rtol=5e-3)

    print("KERNEL_OK")
</pallas_src>

<mosaic_0001>
module attributes {stable_mosaic.version = 11 : i64} {
  func.func @transformer_kernel(%arg0: i32, %arg1: memref<16x16xf32, #tpu.memory_space<vmem>>, %arg2: memref<16x32xf32, #tpu.memory_space<vmem>>, %arg3: memref<16x32xf32, #tpu.memory_space<vmem>>, %arg4: memref<1x32xf32, #tpu.memory_space<vmem>>, %arg5: memref<2x32x96xf32, #tpu.memory_space<vmem>>, %arg6: memref<2x1x96xf32, #tpu.memory_space<vmem>>, %arg7: memref<2x32x32xf32, #tpu.memory_space<vmem>>, %arg8: memref<2x1x32xf32, #tpu.memory_space<vmem>>, %arg9: memref<2x1x32xf32, #tpu.memory_space<vmem>>, %arg10: memref<2x1x32xf32, #tpu.memory_space<vmem>>, %arg11: memref<2x32x64xf32, #tpu.memory_space<vmem>>, %arg12: memref<2x1x64xf32, #tpu.memory_space<vmem>>, %arg13: memref<2x64x32xf32, #tpu.memory_space<vmem>>, %arg14: memref<2x1x32xf32, #tpu.memory_space<vmem>>, %arg15: memref<2x1x32xf32, #tpu.memory_space<vmem>>, %arg16: memref<2x1x32xf32, #tpu.memory_space<vmem>>, %arg17: memref<16x32xf32, #tpu.memory_space<vmem>>) attributes {dimension_semantics = [#tpu.dimension_semantics<arbitrary>], iteration_bounds = array<i64: 1>, scalar_prefetch = 0 : i64, scratch_operands = 0 : i64, tpu.core_type = #tpu.core_type<tc>, window_params = [{pipeline_mode = #tpu.pipeline_mode<synchronous>, transform_indices = @transform_0, window_bounds = array<i64: 16, 16>}, {pipeline_mode = #tpu.pipeline_mode<synchronous>, transform_indices = @transform_1, window_bounds = array<i64: 16, 32>}, {pipeline_mode = #tpu.pipeline_mode<synchronous>, transform_indices = @transform_2, window_bounds = array<i64: 16, 32>}, {pipeline_mode = #tpu.pipeline_mode<synchronous>, transform_indices = @transform_3, window_bounds = array<i64: 1, 32>}, {pipeline_mode = #tpu.pipeline_mode<synchronous>, transform_indices = @transform_4, window_bounds = array<i64: 2, 32, 96>}, {pipeline_mode = #tpu.pipeline_mode<synchronous>, transform_indices = @transform_5, window_bounds = array<i64: 2, 1, 96>}, {pipeline_mode = #tpu.pipeline_mode<synchronous>, transform_indices = @transform_6, window_bounds = array<i64: 2, 32, 32>}, {pipeline_mode = #tpu.pipeline_mode<synchronous>, transform_indices = @transform_7, window_bounds = array<i64: 2, 1, 32>}, {pipeline_mode = #tpu.pipeline_mode<synchronous>, transform_indices = @transform_8, window_bounds = array<i64: 2, 1, 32>}, {pipeline_mode = #tpu.pipeline_mode<synchronous>, transform_indices = @transform_9, window_bounds = array<i64: 2, 1, 32>}, {pipeline_mode = #tpu.pipeline_mode<synchronous>, transform_indices = @transform_10, window_bounds = array<i64: 2, 32, 64>}, {pipeline_mode = #tpu.pipeline_mode<synchronous>, transform_indices = @transform_11, window_bounds = array<i64: 2, 1, 64>}, {pipeline_mode = #tpu.pipeline_mode<synchronous>, transform_indices = @transform_12, window_bounds = array<i64: 2, 64, 32>}, {pipeline_mode = #tpu.pipeline_mode<synchronous>, transform_indices = @transform_13, window_bounds = array<i64: 2, 1, 32>}, {pipeline_mode = #tpu.pipeline_mode<synchronous>, transform_indices = @transform_14, window_bounds = array<i64: 2, 1, 32>}, {pipeline_mode = #tpu.pipeline_mode<synchronous>, transform_indices = @transform_15, window_bounds = array<i64: 2, 1, 32>}, {pipeline_mode = #tpu.pipeline_mode<synchronous>, transform_indices = @transform_16, window_bounds = array<i64: 16, 32>}]} {
    %c0 = arith.constant 0 : index
    %c0_0 = arith.constant 0 : index
    %0 = vector.load %arg1[%c0, %c0_0] : memref<16x16xf32, #tpu.memory_space<vmem>>, vector<16x16xf32>
    %c0_1 = arith.constant 0 : index
    %c0_2 = arith.constant 0 : index
    %1 = vector.load %arg3[%c0_1, %c0_2] : memref<16x32xf32, #tpu.memory_space<vmem>>, vector<16x32xf32>
    %cst = arith.constant dense<0.000000e+00> : vector<16x32xf32>
    %2 = tpu.matmul %0, %1, %cst {dimension_numbers = #tpu.dot_dimension_numbers<[1], [0], [0], [1], [0, 0, 1, 1], [], []>} : vector<16x16xf32>, vector<16x32xf32>, vector<16x32xf32> -> vector<16x32xf32>
    %c0_3 = arith.constant 0 : index
    %c0_4 = arith.constant 0 : index
    %3 = vector.load %arg4[%c0_3, %c0_4] : memref<1x32xf32, #tpu.memory_space<vmem>>, vector<1x32xf32>
    %4 = vector.broadcast %3 : vector<1x32xf32> to vector<16x32xf32>
    %5 = arith.addf %2, %4 : vector<16x32xf32>
    %c0_5 = arith.constant 0 : index
    %c0_6 = arith.constant 0 : index
    %6 = vector.load %arg2[%c0_5, %c0_6] : memref<16x32xf32, #tpu.memory_space<vmem>>, vector<16x32xf32>
    %7 = arith.addf %5, %6 : vector<16x32xf32>
    %c0_7 = arith.constant 0 : index
    %c0_8 = arith.constant 0 : index
    %c0_9 = arith.constant 0 : index
    %8 = vector.load %arg5[%c0_7, %c0_8, %c0_9] : memref<2x32x96xf32, #tpu.memory_space<vmem>>, vector<1x32x96xf32>
    %9 = vector.shape_cast %8 : vector<1x32x96xf32> to vector<32x96xf32>
    %c0_10 = arith.constant 0 : index
    %c0_11 = arith.constant 0 : index
    %c0_12 = arith.constant 0 : index
    %10 = vector.load %arg6[%c0_10, %c0_11, %c0_12] : memref<2x1x96xf32, #tpu.memory_space<vmem>>, vector<1x1x96xf32>
    %11 = vector.shape_cast %10 : vector<1x1x96xf32> to vector<1x96xf32>
    %c0_13 = arith.constant 0 : index
    %c0_14 = arith.constant 0 : index
    %c0_15 = arith.constant 0 : index
    %12 = vector.load %arg7[%c0_13, %c0_14, %c0_15] : memref<2x32x32xf32, #tpu.memory_space<vmem>>, vector<1x32x32xf32>
    %13 = vector.shape_cast %12 : vector<1x32x32xf32> to vector<32x32xf32>
    %c0_16 = arith.constant 0 : index
    %c0_17 = arith.constant 0 : index
    %c0_18 = arith.constant 0 : index
    %14 = vector.load %arg8[%c0_16, %c0_17, %c0_18] : memref<2x1x32xf32, #tpu.memory_space<vmem>>, vector<1x1x32xf32>
    %15 = vector.shape_cast %14 : vector<1x1x32xf32> to vector<1x32xf32>
    %c0_19 = arith.constant 0 : index
    %c0_20 = arith.constant 0 : index
    %c0_21 = arith.constant 0 : index
    %16 = vector.load %arg9[%c0_19, %c0_20, %c0_21] : memref<2x1x32xf32, #tpu.memory_space<vmem>>, vector<1x1x32xf32>
    %17 = vector.shape_cast %16 : vector<1x1x32xf32> to vector<1x32xf32>
    %c0_22 = arith.constant 0 : index
    %c0_23 = arith.constant 0 : index
    %c0_24 = arith.constant 0 : index
    %18 = vector.load %arg10[%c0_22, %c0_23, %c0_24] : memref<2x1x32xf32, #tpu.memory_space<vmem>>, vector<1x1x32xf32>
    %19 = vector.shape_cast %18 : vector<1x1x32xf32> to vector<1x32xf32>
    %c0_25 = arith.constant 0 : index
    %c0_26 = arith.constant 0 : index
    %c0_27 = arith.constant 0 : index
    %20 = vector.load %arg11[%c0_25, %c0_26, %c0_27] : memref<2x32x64xf32, #tpu.memory_space<vmem>>, vector<1x32x64xf32>
    %21 = vector.shape_cast %20 : vector<1x32x64xf32> to vector<32x64xf32>
    %c0_28 = arith.constant 0 : index
    %c0_29 = arith.constant 0 : index
    %c0_30 = arith.constant 0 : index
    %22 = vector.load %arg12[%c0_28, %c0_29, %c0_30] : memref<2x1x64xf32, #tpu.memory_space<vmem>>, vector<1x1x64xf32>
    %23 = vector.shape_cast %22 : vector<1x1x64xf32> to vector<1x64xf32>
    %c0_31 = arith.constant 0 : index
    %c0_32 = arith.constant 0 : index
    %c0_33 = arith.constant 0 : index
    %24 = vector.load %arg13[%c0_31, %c0_32, %c0_33] : memref<2x64x32xf32, #tpu.memory_space<vmem>>, vector<1x64x32xf32>
    %25 = vector.shape_cast %24 : vector<1x64x32xf32> to vector<64x32xf32>
    %c0_34 = arith.constant 0 : index
    %c0_35 = arith.constant 0 : index
    %c0_36 = arith.constant 0 : index
    %26 = vector.load %arg14[%c0_34, %c0_35, %c0_36] : memref<2x1x32xf32, #tpu.memory_space<vmem>>, vector<1x1x32xf32>
    %27 = vector.shape_cast %26 : vector<1x1x32xf32> to vector<1x32xf32>
    %c0_37 = arith.constant 0 : index
    %c0_38 = arith.constant 0 : index
    %c0_39 = arith.constant 0 : index
    %28 = vector.load %arg15[%c0_37, %c0_38, %c0_39] : memref<2x1x32xf32, #tpu.memory_space<vmem>>, vector<1x1x32xf32>
    %29 = vector.shape_cast %28 : vector<1x1x32xf32> to vector<1x32xf32>
    %c0_40 = arith.constant 0 : index
    %c0_41 = arith.constant 0 : index
    %c0_42 = arith.constant 0 : index
    %30 = vector.load %arg16[%c0_40, %c0_41, %c0_42] : memref<2x1x32xf32, #tpu.memory_space<vmem>>, vector<1x1x32xf32>
    %31 = vector.shape_cast %30 : vector<1x1x32xf32> to vector<1x32xf32>
    %cst_43 = arith.constant dense<0.000000e+00> : vector<16x96xf32>
    %32 = tpu.matmul %7, %9, %cst_43 {dimension_numbers = #tpu.dot_dimension_numbers<[1], [0], [0], [1], [0, 0, 1, 1], [], []>} : vector<16x32xf32>, vector<32x96xf32>, vector<16x96xf32> -> vector<16x96xf32>
    %33 = vector.broadcast %11 : vector<1x96xf32> to vector<16x96xf32>
    %34 = arith.addf %32, %33 : vector<16x96xf32>
    %35 = vector.broadcast %15 : vector<1x32xf32> to vector<16x32xf32>
    %36 = arith.addf %7, %35 : vector<16x32xf32>
    %37 = vector.extract_strided_slice %34 {offsets = [0, 0], sizes = [16, 8], strides = [1, 1]} : vector<16x96xf32> to vector<16x8xf32>
    %cst_44 = arith.constant 0.353553385 : f32
    %38 = vector.broadcast %cst_44 : f32 to vector<16x8xf32>
    %39 = arith.mulf %37, %38 : vector<16x8xf32>
    %40 = vector.extract_strided_slice %34 {offsets = [0, 32], sizes = [16, 8], strides = [1, 1]} : vector<16x96xf32> to vector<16x8xf32>
    %41 = vector.extract_strided_slice %34 {offsets = [0, 64], sizes = [16, 8], strides = [1, 1]} : vector<16x96xf32> to vector<16x8xf32>
    %42 = vector.shape_cast %39 : vector<16x8xf32> to vector<2x8x8xf32>
    %43 = vector.shape_cast %40 : vector<16x8xf32> to vector<2x8x8xf32>
    %44 = vector.shape_cast %41 : vector<16x8xf32> to vector<2x8x8xf32>
    "tpu.trace_start"() <{level = 10 : i32, message = "bqd,bkd->bqk"}> : () -> ()
    %cst_45 = arith.constant dense<0.000000e+00> : vector<2x8x8xf32>
    %45 = tpu.matmul %42, %43, %cst_45 {dimension_numbers = #tpu.dot_dimension_numbers<[2], [2], [1], [1], [0, 0, 0, 1, 1, 1], [0], [0]>} : vector<2x8x8xf32>, vector<2x8x8xf32>, vector<2x8x8xf32> -> vector<2x8x8xf32>
    "tpu.trace_stop"() : () -> ()
    %cst_46 = arith.constant dense<0xFF800000> : vector<2x8xf32>
    %46 = vector.multi_reduction <maximumf>, %45, %cst_46 [2] : vector<2x8x8xf32> to vector<2x8xf32>
    %47 = vector.shape_cast %46 : vector<2x8xf32> to vector<2x8x1xf32>
    %48 = vector.broadcast %47 : vector<2x8x1xf32> to vector<2x8x8xf32>
    %49 = arith.subf %45, %48 : vector<2x8x8xf32>
    %50 = math.exp %49 : vector<2x8x8xf32>
    %cst_47 = arith.constant dense<0.000000e+00> : vector<2x8xf32>
    %51 = vector.multi_reduction <add>, %50, %cst_47 [2] : vector<2x8x8xf32> to vector<2x8xf32>
    %52 = vector.shape_cast %51 : vector<2x8xf32> to vector<2x8x1xf32>
    %53 = tpu.reciprocal %52 {approx = true} : vector<2x8x1xf32> -> vector<2x8x1xf32>
    %54 = vector.broadcast %53 : vector<2x8x1xf32> to vector<2x8x8xf32>
    %55 = arith.mulf %50, %54 : vector<2x8x8xf32>
    "tpu.trace_start"() <{level = 10 : i32, message = "bqk,bkd->bqd"}> : () -> ()
    %cst_48 = arith.constant dense<0.000000e+00> : vector<2x8x8xf32>
    %56 = tpu.matmul %55, %44, %cst_48 {dimension_numbers = #tpu.dot_dimension_numbers<[2], [1], [1], [2], [0, 0, 0, 1, 1, 2], [0], [0]>} : vector<2x8x8xf32>, vector<2x8x8xf32>, vector<2x8x8xf32> -> vector<2x8x8xf32>
    "tpu.trace_stop"() : () -> ()
    %57 = vector.shape_cast %56 : vector<2x8x8xf32> to vector<16x8xf32>
    %58 = vector.extract_strided_slice %13 {offsets = [0, 0], sizes = [8, 32], strides = [1, 1]} : vector<32x32xf32> to vector<8x32xf32>
    %cst_49 = arith.constant dense<0.000000e+00> : vector<16x32xf32>
    %59 = tpu.matmul %57, %58, %cst_49 {dimension_numbers = #tpu.dot_dimension_numbers<[1], [0], [0], [1], [0, 0, 1, 1], [], []>} : vector<16x8xf32>, vector<8x32xf32>, vector<16x32xf32> -> vector<16x32xf32>
    %60 = arith.addf %36, %59 : vector<16x32xf32>
    %61 = vector.extract_strided_slice %34 {offsets = [0, 8], sizes = [16, 8], strides = [1, 1]} : vector<16x96xf32> to vector<16x8xf32>
    %cst_50 = arith.constant 0.353553385 : f32
    %62 = vector.broadcast %cst_50 : f32 to vector<16x8xf32>
    %63 = arith.mulf %61, %62 : vector<16x8xf32>
    %64 = vector.extract_strided_slice %34 {offsets = [0, 40], sizes = [16, 8], strides = [1, 1]} : vector<16x96xf32> to vector<16x8xf32>
    %65 = vector.extract_strided_slice %34 {offsets = [0, 72], sizes = [16, 8], strides = [1, 1]} : vector<16x96xf32> to vector<16x8xf32>
    %66 = vector.shape_cast %63 : vector<16x8xf32> to vector<2x8x8xf32>
    %67 = vector.shape_cast %64 : vector<16x8xf32> to vector<2x8x8xf32>
    %68 = vector.shape_cast %65 : vector<16x8xf32> to vector<2x8x8xf32>
    "tpu.trace_start"() <{level = 10 : i32, message = "bqd,bkd->bqk"}> : () -> ()
    %cst_51 = arith.constant dense<0.000000e+00> : vector<2x8x8xf32>
    %69 = tpu.matmul %66, %67, %cst_51 {dimension_numbers = #tpu.dot_dimension_numbers<[2], [2], [1], [1], [0, 0, 0, 1, 1, 1], [0], [0]>} : vector<2x8x8xf32>, vector<2x8x8xf32>, vector<2x8x8xf32> -> vector<2x8x8xf32>
    "tpu.trace_stop"() : () -> ()
    %cst_52 = arith.constant dense<0xFF800000> : vector<2x8xf32>
    %70 = vector.multi_reduction <maximumf>, %69, %cst_52 [2] : vector<2x8x8xf32> to vector<2x8xf32>
    %71 = vector.shape_cast %70 : vector<2x8xf32> to vector<2x8x1xf32>
    %72 = vector.broadcast %71 : vector<2x8x1xf32> to vector<2x8x8xf32>
    %73 = arith.subf %69, %72 : vector<2x8x8xf32>
    %74 = math.exp %73 : vector<2x8x8xf32>
    %cst_53 = arith.constant dense<0.000000e+00> : vector<2x8xf32>
    %75 = vector.multi_reduction <add>, %74, %cst_53 [2] : vector<2x8x8xf32> to vector<2x8xf32>
    %76 = vector.shape_cast %75 : vector<2x8xf32> to vector<2x8x1xf32>
    %77 = tpu.reciprocal %76 {approx = true} : vector<2x8x1xf32> -> vector<2x8x1xf32>
    %78 = vector.broadcast %77 : vector<2x8x1xf32> to vector<2x8x8xf32>
    %79 = arith.mulf %74, %78 : vector<2x8x8xf32>
    "tpu.trace_start"() <{level = 10 : i32, message = "bqk,bkd->bqd"}> : () -> ()
    %cst_54 = arith.constant dense<0.000000e+00> : vector<2x8x8xf32>
    %80 = tpu.matmul %79, %68, %cst_54 {dimension_numbers = #tpu.dot_dimension_numbers<[2], [1], [1], [2], [0, 0, 0, 1, 1, 2], [0], [0]>} : vector<2x8x8xf32>, vector<2x8x8xf32>, vector<2x8x8xf32> -> vector<2x8x8xf32>
    "tpu.trace_stop"() : () -> ()
    %81 = vector.shape_cast %80 : vector<2x8x8xf32> to vector<16x8xf32>
    %82 = vector.extract_strided_slice %13 {offsets = [8, 0], sizes = [8, 32], strides = [1, 1]} : vector<32x32xf32> to vector<8x32xf32>
    %cst_55 = arith.constant dense<0.000000e+00> : vector<16x32xf32>
    %83 = tpu.matmul %81, %82, %cst_55 {dimension_numbers = #tpu.dot_dimension_numbers<[1], [0], [0], [1], [0, 0, 1, 1], [], []>} : vector<16x8xf32>, vector<8x32xf32>, vector<16x32xf32> -> vector<16x32xf32>
    %84 = arith.addf %60, %83 : vector<16x32xf32>
    %85 = vector.extract_strided_slice %34 {offsets = [0, 16], sizes = [16, 8], strides = [1, 1]} : vector<16x96xf32> to vector<16x8xf32>
    %cst_56 = arith.constant 0.353553385 : f32
    %86 = vector.broadcast %cst_56 : f32 to vector<16x8xf32>
    %87 = arith.mulf %85, %86 : vector<16x8xf32>
    %88 = vector.extract_strided_slice %34 {offsets = [0, 48], sizes = [16, 8], strides = [1, 1]} : vector<16x96xf32> to vector<16x8xf32>
    %89 = vector.extract_strided_slice %34 {offsets = [0, 80], sizes = [16, 8], strides = [1, 1]} : vector<16x96xf32> to vector<16x8xf32>
    %90 = vector.shape_cast %87 : vector<16x8xf32> to vector<2x8x8xf32>
    %91 = vector.shape_cast %88 : vector<16x8xf32> to vector<2x8x8xf32>
    %92 = vector.shape_cast %89 : vector<16x8xf32> to vector<2x8x8xf32>
    "tpu.trace_start"() <{level = 10 : i32, message = "bqd,bkd->bqk"}> : () -> ()
    %cst_57 = arith.constant dense<0.000000e+00> : vector<2x8x8xf32>
    %93 = tpu.matmul %90, %91, %cst_57 {dimension_numbers = #tpu.dot_dimension_numbers<[2], [2], [1], [1], [0, 0, 0, 1, 1, 1], [0], [0]>} : vector<2x8x8xf32>, vector<2x8x8xf32>, vector<2x8x8xf32> -> vector<2x8x8xf32>
    "tpu.trace_stop"() : () -> ()
    %cst_58 = arith.constant dense<0xFF800000> : vector<2x8xf32>
    %94 = vector.multi_reduction <maximumf>, %93, %cst_58 [2] : vector<2x8x8xf32> to vector<2x8xf32>
    %95 = vector.shape_cast %94 : vector<2x8xf32> to vector<2x8x1xf32>
    %96 = vector.broadcast %95 : vector<2x8x1xf32> to vector<2x8x8xf32>
    %97 = arith.subf %93, %96 : vector<2x8x8xf32>
    %98 = math.exp %97 : vector<2x8x8xf32>
    %cst_59 = arith.constant dense<0.000000e+00> : vector<2x8xf32>
    %99 = vector.multi_reduction <add>, %98, %cst_59 [2] : vector<2x8x8xf32> to vector<2x8xf32>
    %100 = vector.shape_cast %99 : vector<2x8xf32> to vector<2x8x1xf32>
    %101 = tpu.reciprocal %100 {approx = true} : vector<2x8x1xf32> -> vector<2x8x1xf32>
    %102 = vector.broadcast %101 : vector<2x8x1xf32> to vector<2x8x8xf32>
    %103 = arith.mulf %98, %102 : vector<2x8x8xf32>
    "tpu.trace_start"() <{level = 10 : i32, message = "bqk,bkd->bqd"}> : () -> ()
    %cst_60 = arith.constant dense<0.000000e+00> : vector<2x8x8xf32>
    %104 = tpu.matmul %103, %92, %cst_60 {dimension_numbers = #tpu.dot_dimension_numbers<[2], [1], [1], [2], [0, 0, 0, 1, 1, 2], [0], [0]>} : vector<2x8x8xf32>, vector<2x8x8xf32>, vector<2x8x8xf32> -> vector<2x8x8xf32>
    "tpu.trace_stop"() : () -> ()
    %105 = vector.shape_cast %104 : vector<2x8x8xf32> to vector<16x8xf32>
    %106 = vector.extract_strided_slice %13 {offsets = [16, 0], sizes = [8, 32], strides = [1, 1]} : vector<32x32xf32> to vector<8x32xf32>
    %cst_61 = arith.constant dense<0.000000e+00> : vector<16x32xf32>
    %107 = tpu.matmul %105, %106, %cst_61 {dimension_numbers = #tpu.dot_dimension_numbers<[1], [0], [0], [1], [0, 0, 1, 1], [], []>} : vector<16x8xf32>, vector<8x32xf32>, vector<16x32xf32> -> vector<16x32xf32>
    %108 = arith.addf %84, %107 : vector<16x32xf32>
    %109 = vector.extract_strided_slice %34 {offsets = [0, 24], sizes = [16, 8], strides = [1, 1]} : vector<16x96xf32> to vector<16x8xf32>
    %cst_62 = arith.constant 0.353553385 : f32
    %110 = vector.broadcast %cst_62 : f32 to vector<16x8xf32>
    %111 = arith.mulf %109, %110 : vector<16x8xf32>
    %112 = vector.extract_strided_slice %34 {offsets = [0, 56], sizes = [16, 8], strides = [1, 1]} : vector<16x96xf32> to vector<16x8xf32>
    %113 = vector.extract_strided_slice %34 {offsets = [0, 88], sizes = [16, 8], strides = [1, 1]} : vector<16x96xf32> to vector<16x8xf32>
    %114 = vector.shape_cast %111 : vector<16x8xf32> to vector<2x8x8xf32>
    %115 = vector.shape_cast %112 : vector<16x8xf32> to vector<2x8x8xf32>
    %116 = vector.shape_cast %113 : vector<16x8xf32> to vector<2x8x8xf32>
    "tpu.trace_start"() <{level = 10 : i32, message = "bqd,bkd->bqk"}> : () -> ()
    %cst_63 = arith.constant dense<0.000000e+00> : vector<2x8x8xf32>
    %117 = tpu.matmul %114, %115, %cst_63 {dimension_numbers = #tpu.dot_dimension_numbers<[2], [2], [1], [1], [0, 0, 0, 1, 1, 1], [0], [0]>} : vector<2x8x8xf32>, vector<2x8x8xf32>, vector<2x8x8xf32> -> vector<2x8x8xf32>
    "tpu.trace_stop"() : () -> ()
    %cst_64 = arith.constant dense<0xFF800000> : vector<2x8xf32>
    %118 = vector.multi_reduction <maximumf>, %117, %cst_64 [2] : vector<2x8x8xf32> to vector<2x8xf32>
    %119 = vector.shape_cast %118 : vector<2x8xf32> to vector<2x8x1xf32>
    %120 = vector.broadcast %119 : vector<2x8x1xf32> to vector<2x8x8xf32>
    %121 = arith.subf %117, %120 : vector<2x8x8xf32>
    %122 = math.exp %121 : vector<2x8x8xf32>
    %cst_65 = arith.constant dense<0.000000e+00> : vector<2x8xf32>
    %123 = vector.multi_reduction <add>, %122, %cst_65 [2] : vector<2x8x8xf32> to vector<2x8xf32>
    %124 = vector.shape_cast %123 : vector<2x8xf32> to vector<2x8x1xf32>
    %125 = tpu.reciprocal %124 {approx = true} : vector<2x8x1xf32> -> vector<2x8x1xf32>
    %126 = vector.broadcast %125 : vector<2x8x1xf32> to vector<2x8x8xf32>
    %127 = arith.mulf %122, %126 : vector<2x8x8xf32>
    "tpu.trace_start"() <{level = 10 : i32, message = "bqk,bkd->bqd"}> : () -> ()
    %cst_66 = arith.constant dense<0.000000e+00> : vector<2x8x8xf32>
    %128 = tpu.matmul %127, %116, %cst_66 {dimension_numbers = #tpu.dot_dimension_numbers<[2], [1], [1], [2], [0, 0, 0, 1, 1, 2], [0], [0]>} : vector<2x8x8xf32>, vector<2x8x8xf32>, vector<2x8x8xf32> -> vector<2x8x8xf32>
    "tpu.trace_stop"() : () -> ()
    %129 = vector.shape_cast %128 : vector<2x8x8xf32> to vector<16x8xf32>
    %130 = vector.extract_strided_slice %13 {offsets = [24, 0], sizes = [8, 32], strides = [1, 1]} : vector<32x32xf32> to vector<8x32xf32>
    %cst_67 = arith.constant dense<0.000000e+00> : vector<16x32xf32>
    %131 = tpu.matmul %129, %130, %cst_67 {dimension_numbers = #tpu.dot_dimension_numbers<[1], [0], [0], [1], [0, 0, 1, 1], [], []>} : vector<16x8xf32>, vector<8x32xf32>, vector<16x32xf32> -> vector<16x32xf32>
    %132 = arith.addf %108, %131 : vector<16x32xf32>
    %cst_68 = arith.constant dense<0.000000e+00> : vector<16xf32>
    %133 = vector.multi_reduction <add>, %132, %cst_68 [1] : vector<16x32xf32> to vector<16xf32>
    %134 = vector.shape_cast %133 : vector<16xf32> to vector<16x1xf32>
    %cst_69 = arith.constant 3.200000e+01 : f32
    %135 = vector.broadcast %cst_69 : f32 to vector<16x1xf32>
    %136 = arith.divf %134, %135 : vector<16x1xf32>
    %137 = vector.broadcast %136 : vector<16x1xf32> to vector<16x32xf32>
    %138 = arith.subf %132, %137 : vector<16x32xf32>
    %139 = arith.mulf %138, %138 : vector<16x32xf32>
    %cst_70 = arith.constant dense<0.000000e+00> : vector<16xf32>
    %140 = vector.multi_reduction <add>, %139, %cst_70 [1] : vector<16x32xf32> to vector<16xf32>
    %141 = vector.shape_cast %140 : vector<16xf32> to vector<16x1xf32>
    %cst_71 = arith.constant 3.200000e+01 : f32
    %142 = vector.broadcast %cst_71 : f32 to vector<16x1xf32>
    %143 = arith.divf %141, %142 : vector<16x1xf32>
    %144 = vector.broadcast %136 : vector<16x1xf32> to vector<16x32xf32>
    %145 = arith.subf %132, %144 : vector<16x32xf32>
    %cst_72 = arith.constant 9.99999974E-6 : f32
    %146 = vector.broadcast %cst_72 : f32 to vector<16x1xf32>
    %147 = arith.addf %143, %146 : vector<16x1xf32>
    %148 = math.rsqrt %147 : vector<16x1xf32>
    %149 = vector.broadcast %148 : vector<16x1xf32> to vector<16x32xf32>
    %150 = arith.mulf %145, %149 : vector<16x32xf32>
    %151 = vector.broadcast %17 : vector<1x32xf32> to vector<16x32xf32>
    %152 = arith.mulf %150, %151 : vector<16x32xf32>
    %153 = vector.broadcast %19 : vector<1x32xf32> to vector<16x32xf32>
    %154 = arith.addf %152, %153 : vector<16x32xf32>
    %cst_73 = arith.constant dense<0.000000e+00> : vector<16x64xf32>
    %155 = tpu.matmul %154, %21, %cst_73 {dimension_numbers = #tpu.dot_dimension_numbers<[1], [0], [0], [1], [0, 0, 1, 1], [], []>} : vector<16x32xf32>, vector<32x64xf32>, vector<16x64xf32> -> vector<16x64xf32>
    %156 = vector.broadcast %23 : vector<1x64xf32> to vector<16x64xf32>
    %157 = arith.addf %155, %156 : vector<16x64xf32>
    %cst_74 = arith.constant 0.000000e+00 : f32
    %158 = vector.broadcast %cst_74 : f32 to vector<16x64xf32>
    %159 = arith.maximumf %157, %158 : vector<16x64xf32>
    %cst_75 = arith.constant dense<0.000000e+00> : vector<16x32xf32>
    %160 = tpu.matmul %159, %25, %cst_75 {dimension_numbers = #tpu.dot_dimension_numbers<[1], [0], [0], [1], [0, 0, 1, 1], [], []>} : vector<16x64xf32>, vector<64x32xf32>, vector<16x32xf32> -> vector<16x32xf32>
    %161 = vector.broadcast %27 : vector<1x32xf32> to vector<16x32xf32>
    %162 = arith.addf %160, %161 : vector<16x32xf32>
    %163 = arith.addf %162, %154 : vector<16x32xf32>
    %cst_76 = arith.constant dense<0.000000e+00> : vector<16xf32>
    %164 = vector.multi_reduction <add>, %163, %cst_76 [1] : vector<16x32xf32> to vector<16xf32>
    %165 = vector.shape_cast %164 : vector<16xf32> to vector<16x1xf32>
    %cst_77 = arith.constant 3.200000e+01 : f32
    %166 = vector.broadcast %cst_77 : f32 to vector<16x1xf32>
    %167 = arith.divf %165, %166 : vector<16x1xf32>
    %168 = vector.broadcast %167 : vector<16x1xf32> to vector<16x32xf32>
    %169 = arith.subf %163, %168 : vector<16x32xf32>
    %170 = arith.mulf %169, %169 : vector<16x32xf32>
    %cst_78 = arith.constant dense<0.000000e+00> : vector<16xf32>
    %171 = vector.multi_reduction <add>, %170, %cst_78 [1] : vector<16x32xf32> to vector<16xf32>
    %172 = vector.shape_cast %171 : vector<16xf32> to vector<16x1xf32>
    %cst_79 = arith.constant 3.200000e+01 : f32
    %173 = vector.broadcast %cst_79 : f32 to vector<16x1xf32>
    %174 = arith.divf %172, %173 : vector<16x1xf32>
    %175 = vector.broadcast %167 : vector<16x1xf32> to vector<16x32xf32>
    %176 = arith.subf %163, %175 : vector<16x32xf32>
    %cst_80 = arith.constant 9.99999974E-6 : f32
    %177 = vector.broadcast %cst_80 : f32 to vector<16x1xf32>
    %178 = arith.addf %174, %177 : vector<16x1xf32>
    %179 = math.rsqrt %178 : vector<16x1xf32>
    %180 = vector.broadcast %179 : vector<16x1xf32> to vector<16x32xf32>
    %181 = arith.mulf %176, %180 : vector<16x32xf32>
    %182 = vector.broadcast %29 : vector<1x32xf32> to vector<16x32xf32>
    %183 = arith.mulf %181, %182 : vector<16x32xf32>
    %184 = vector.broadcast %31 : vector<1x32xf32> to vector<16x32xf32>
    %185 = arith.addf %183, %184 : vector<16x32xf32>
    %c1 = arith.constant 1 : index
    %c0_81 = arith.constant 0 : index
    %c0_82 = arith.constant 0 : index
    %186 = vector.load %arg5[%c1, %c0_81, %c0_82] : memref<2x32x96xf32, #tpu.memory_space<vmem>>, vector<1x32x96xf32>
    %187 = vector.shape_cast %186 : vector<1x32x96xf32> to vector<32x96xf32>
    %c1_83 = arith.constant 1 : index
    %c0_84 = arith.constant 0 : index
    %c0_85 = arith.constant 0 : index
    %188 = vector.load %arg6[%c1_83, %c0_84, %c0_85] : memref<2x1x96xf32, #tpu.memory_space<vmem>>, vector<1x1x96xf32>
    %189 = vector.shape_cast %188 : vector<1x1x96xf32> to vector<1x96xf32>
    %c1_86 = arith.constant 1 : index
    %c0_87 = arith.constant 0 : index
    %c0_88 = arith.constant 0 : index
    %190 = vector.load %arg7[%c1_86, %c0_87, %c0_88] : memref<2x32x32xf32, #tpu.memory_space<vmem>>, vector<1x32x32xf32>
    %191 = vector.shape_cast %190 : vector<1x32x32xf32> to vector<32x32xf32>
    %c1_89 = arith.constant 1 : index
    %c0_90 = arith.constant 0 : index
    %c0_91 = arith.constant 0 : index
    %192 = vector.load %arg8[%c1_89, %c0_90, %c0_91] : memref<2x1x32xf32, #tpu.memory_space<vmem>>, vector<1x1x32xf32>
    %193 = vector.shape_cast %192 : vector<1x1x32xf32> to vector<1x32xf32>
    %c1_92 = arith.constant 1 : index
    %c0_93 = arith.constant 0 : index
    %c0_94 = arith.constant 0 : index
    %194 = vector.load %arg9[%c1_92, %c0_93, %c0_94] : memref<2x1x32xf32, #tpu.memory_space<vmem>>, vector<1x1x32xf32>
    %195 = vector.shape_cast %194 : vector<1x1x32xf32> to vector<1x32xf32>
    %c1_95 = arith.constant 1 : index
    %c0_96 = arith.constant 0 : index
    %c0_97 = arith.constant 0 : index
    %196 = vector.load %arg10[%c1_95, %c0_96, %c0_97] : memref<2x1x32xf32, #tpu.memory_space<vmem>>, vector<1x1x32xf32>
    %197 = vector.shape_cast %196 : vector<1x1x32xf32> to vector<1x32xf32>
    %c1_98 = arith.constant 1 : index
    %c0_99 = arith.constant 0 : index
    %c0_100 = arith.constant 0 : index
    %198 = vector.load %arg11[%c1_98, %c0_99, %c0_100] : memref<2x32x64xf32, #tpu.memory_space<vmem>>, vector<1x32x64xf32>
    %199 = vector.shape_cast %198 : vector<1x32x64xf32> to vector<32x64xf32>
    %c1_101 = arith.constant 1 : index
    %c0_102 = arith.constant 0 : index
    %c0_103 = arith.constant 0 : index
    %200 = vector.load %arg12[%c1_101, %c0_102, %c0_103] : memref<2x1x64xf32, #tpu.memory_space<vmem>>, vector<1x1x64xf32>
    %201 = vector.shape_cast %200 : vector<1x1x64xf32> to vector<1x64xf32>
    %c1_104 = arith.constant 1 : index
    %c0_105 = arith.constant 0 : index
    %c0_106 = arith.constant 0 : index
    %202 = vector.load %arg13[%c1_104, %c0_105, %c0_106] : memref<2x64x32xf32, #tpu.memory_space<vmem>>, vector<1x64x32xf32>
    %203 = vector.shape_cast %202 : vector<1x64x32xf32> to vector<64x32xf32>
    %c1_107 = arith.constant 1 : index
    %c0_108 = arith.constant 0 : index
    %c0_109 = arith.constant 0 : index
    %204 = vector.load %arg14[%c1_107, %c0_108, %c0_109] : memref<2x1x32xf32, #tpu.memory_space<vmem>>, vector<1x1x32xf32>
    %205 = vector.shape_cast %204 : vector<1x1x32xf32> to vector<1x32xf32>
    %c1_110 = arith.constant 1 : index
    %c0_111 = arith.constant 0 : index
    %c0_112 = arith.constant 0 : index
    %206 = vector.load %arg15[%c1_110, %c0_111, %c0_112] : memref<2x1x32xf32, #tpu.memory_space<vmem>>, vector<1x1x32xf32>
    %207 = vector.shape_cast %206 : vector<1x1x32xf32> to vector<1x32xf32>
    %c1_113 = arith.constant 1 : index
    %c0_114 = arith.constant 0 : index
    %c0_115 = arith.constant 0 : index
    %208 = vector.load %arg16[%c1_113, %c0_114, %c0_115] : memref<2x1x32xf32, #tpu.memory_space<vmem>>, vector<1x1x32xf32>
    %209 = vector.shape_cast %208 : vector<1x1x32xf32> to vector<1x32xf32>
    %cst_116 = arith.constant dense<0.000000e+00> : vector<16x96xf32>
    %210 = tpu.matmul %185, %187, %cst_116 {dimension_numbers = #tpu.dot_dimension_numbers<[1], [0], [0], [1], [0, 0, 1, 1], [], []>} : vector<16x32xf32>, vector<32x96xf32>, vector<16x96xf32> -> vector<16x96xf32>
    %211 = vector.broadcast %189 : vector<1x96xf32> to vector<16x96xf32>
    %212 = arith.addf %210, %211 : vector<16x96xf32>
    %213 = vector.broadcast %193 : vector<1x32xf32> to vector<16x32xf32>
    %214 = arith.addf %185, %213 : vector<16x32xf32>
    %215 = vector.extract_strided_slice %212 {offsets = [0, 0], sizes = [16, 8], strides = [1, 1]} : vector<16x96xf32> to vector<16x8xf32>
    %cst_117 = arith.constant 0.353553385 : f32
    %216 = vector.broadcast %cst_117 : f32 to vector<16x8xf32>
    %217 = arith.mulf %215, %216 : vector<16x8xf32>
    %218 = vector.extract_strided_slice %212 {offsets = [0, 32], sizes = [16, 8], strides = [1, 1]} : vector<16x96xf32> to vector<16x8xf32>
    %219 = vector.extract_strided_slice %212 {offsets = [0, 64], sizes = [16, 8], strides = [1, 1]} : vector<16x96xf32> to vector<16x8xf32>
    %220 = vector.shape_cast %217 : vector<16x8xf32> to vector<2x8x8xf32>
    %221 = vector.shape_cast %218 : vector<16x8xf32> to vector<2x8x8xf32>
    %222 = vector.shape_cast %219 : vector<16x8xf32> to vector<2x8x8xf32>
    "tpu.trace_start"() <{level = 10 : i32, message = "bqd,bkd->bqk"}> : () -> ()
    %cst_118 = arith.constant dense<0.000000e+00> : vector<2x8x8xf32>
    %223 = tpu.matmul %220, %221, %cst_118 {dimension_numbers = #tpu.dot_dimension_numbers<[2], [2], [1], [1], [0, 0, 0, 1, 1, 1], [0], [0]>} : vector<2x8x8xf32>, vector<2x8x8xf32>, vector<2x8x8xf32> -> vector<2x8x8xf32>
    "tpu.trace_stop"() : () -> ()
    %cst_119 = arith.constant dense<0xFF800000> : vector<2x8xf32>
    %224 = vector.multi_reduction <maximumf>, %223, %cst_119 [2] : vector<2x8x8xf32> to vector<2x8xf32>
    %225 = vector.shape_cast %224 : vector<2x8xf32> to vector<2x8x1xf32>
    %226 = vector.broadcast %225 : vector<2x8x1xf32> to vector<2x8x8xf32>
    %227 = arith.subf %223, %226 : vector<2x8x8xf32>
    %228 = math.exp %227 : vector<2x8x8xf32>
    %cst_120 = arith.constant dense<0.000000e+00> : vector<2x8xf32>
    %229 = vector.multi_reduction <add>, %228, %cst_120 [2] : vector<2x8x8xf32> to vector<2x8xf32>
    %230 = vector.shape_cast %229 : vector<2x8xf32> to vector<2x8x1xf32>
    %231 = tpu.reciprocal %230 {approx = true} : vector<2x8x1xf32> -> vector<2x8x1xf32>
    %232 = vector.broadcast %231 : vector<2x8x1xf32> to vector<2x8x8xf32>
    %233 = arith.mulf %228, %232 : vector<2x8x8xf32>
    "tpu.trace_start"() <{level = 10 : i32, message = "bqk,bkd->bqd"}> : () -> ()
    %cst_121 = arith.constant dense<0.000000e+00> : vector<2x8x8xf32>
    %234 = tpu.matmul %233, %222, %cst_121 {dimension_numbers = #tpu.dot_dimension_numbers<[2], [1], [1], [2], [0, 0, 0, 1, 1, 2], [0], [0]>} : vector<2x8x8xf32>, vector<2x8x8xf32>, vector<2x8x8xf32> -> vector<2x8x8xf32>
    "tpu.trace_stop"() : () -> ()
    %235 = vector.shape_cast %234 : vector<2x8x8xf32> to vector<16x8xf32>
    %236 = vector.extract_strided_slice %191 {offsets = [0, 0], sizes = [8, 32], strides = [1, 1]} : vector<32x32xf32> to vector<8x32xf32>
    %cst_122 = arith.constant dense<0.000000e+00> : vector<16x32xf32>
    %237 = tpu.matmul %235, %236, %cst_122 {dimension_numbers = #tpu.dot_dimension_numbers<[1], [0], [0], [1], [0, 0, 1, 1], [], []>} : vector<16x8xf32>, vector<8x32xf32>, vector<16x32xf32> -> vector<16x32xf32>
    %238 = arith.addf %214, %237 : vector<16x32xf32>
    %239 = vector.extract_strided_slice %212 {offsets = [0, 8], sizes = [16, 8], strides = [1, 1]} : vector<16x96xf32> to vector<16x8xf32>
    %cst_123 = arith.constant 0.353553385 : f32
    %240 = vector.broadcast %cst_123 : f32 to vector<16x8xf32>
    %241 = arith.mulf %239, %240 : vector<16x8xf32>
    %242 = vector.extract_strided_slice %212 {offsets = [0, 40], sizes = [16, 8], strides = [1, 1]} : vector<16x96xf32> to vector<16x8xf32>
    %243 = vector.extract_strided_slice %212 {offsets = [0, 72], sizes = [16, 8], strides = [1, 1]} : vector<16x96xf32> to vector<16x8xf32>
    %244 = vector.shape_cast %241 : vector<16x8xf32> to vector<2x8x8xf32>
    %245 = vector.shape_cast %242 : vector<16x8xf32> to vector<2x8x8xf32>
    %246 = vector.shape_cast %243 : vector<16x8xf32> to vector<2x8x8xf32>
    "tpu.trace_start"() <{level = 10 : i32, message = "bqd,bkd->bqk"}> : () -> ()
    %cst_124 = arith.constant dense<0.000000e+00> : vector<2x8x8xf32>
    %247 = tpu.matmul %244, %245, %cst_124 {dimension_numbers = #tpu.dot_dimension_numbers<[2], [2], [1], [1], [0, 0, 0, 1, 1, 1], [0], [0]>} : vector<2x8x8xf32>, vector<2x8x8xf32>, vector<2x8x8xf32> -> vector<2x8x8xf32>
    "tpu.trace_stop"() : () -> ()
    %cst_125 = arith.constant dense<0xFF800000> : vector<2x8xf32>
    %248 = vector.multi_reduction <maximumf>, %247, %cst_125 [2] : vector<2x8x8xf32> to vector<2x8xf32>
    %249 = vector.shape_cast %248 : vector<2x8xf32> to vector<2x8x1xf32>
    %250 = vector.broadcast %249 : vector<2x8x1xf32> to vector<2x8x8xf32>
    %251 = arith.subf %247, %250 : vector<2x8x8xf32>
    %252 = math.exp %251 : vector<2x8x8xf32>
    %cst_126 = arith.constant dense<0.000000e+00> : vector<2x8xf32>
    %253 = vector.multi_reduction <add>, %252, %cst_126 [2] : vector<2x8x8xf32> to vector<2x8xf32>
    %254 = vector.shape_cast %253 : vector<2x8xf32> to vector<2x8x1xf32>
    %255 = tpu.reciprocal %254 {approx = true} : vector<2x8x1xf32> -> vector<2x8x1xf32>
    %256 = vector.broadcast %255 : vector<2x8x1xf32> to vector<2x8x8xf32>
    %257 = arith.mulf %252, %256 : vector<2x8x8xf32>
    "tpu.trace_start"() <{level = 10 : i32, message = "bqk,bkd->bqd"}> : () -> ()
    %cst_127 = arith.constant dense<0.000000e+00> : vector<2x8x8xf32>
    %258 = tpu.matmul %257, %246, %cst_127 {dimension_numbers = #tpu.dot_dimension_numbers<[2], [1], [1], [2], [0, 0, 0, 1, 1, 2], [0], [0]>} : vector<2x8x8xf32>, vector<2x8x8xf32>, vector<2x8x8xf32> -> vector<2x8x8xf32>
    "tpu.trace_stop"() : () -> ()
    %259 = vector.shape_cast %258 : vector<2x8x8xf32> to vector<16x8xf32>
    %260 = vector.extract_strided_slice %191 {offsets = [8, 0], sizes = [8, 32], strides = [1, 1]} : vector<32x32xf32> to vector<8x32xf32>
    %cst_128 = arith.constant dense<0.000000e+00> : vector<16x32xf32>
    %261 = tpu.matmul %259, %260, %cst_128 {dimension_numbers = #tpu.dot_dimension_numbers<[1], [0], [0], [1], [0, 0, 1, 1], [], []>} : vector<16x8xf32>, vector<8x32xf32>, vector<16x32xf32> -> vector<16x32xf32>
    %262 = arith.addf %238, %261 : vector<16x32xf32>
    %263 = vector.extract_strided_slice %212 {offsets = [0, 16], sizes = [16, 8], strides = [1, 1]} : vector<16x96xf32> to vector<16x8xf32>
    %cst_129 = arith.constant 0.353553385 : f32
    %264 = vector.broadcast %cst_129 : f32 to vector<16x8xf32>
    %265 = arith.mulf %263, %264 : vector<16x8xf32>
    %266 = vector.extract_strided_slice %212 {offsets = [0, 48], sizes = [16, 8], strides = [1, 1]} : vector<16x96xf32> to vector<16x8xf32>
    %267 = vector.extract_strided_slice %212 {offsets = [0, 80], sizes = [16, 8], strides = [1, 1]} : vector<16x96xf32> to vector<16x8xf32>
    %268 = vector.shape_cast %265 : vector<16x8xf32> to vector<2x8x8xf32>
    %269 = vector.shape_cast %266 : vector<16x8xf32> to vector<2x8x8xf32>
    %270 = vector.shape_cast %267 : vector<16x8xf32> to vector<2x8x8xf32>
    "tpu.trace_start"() <{level = 10 : i32, message = "bqd,bkd->bqk"}> : () -> ()
    %cst_130 = arith.constant dense<0.000000e+00> : vector<2x8x8xf32>
    %271 = tpu.matmul %268, %269, %cst_130 {dimension_numbers = #tpu.dot_dimension_numbers<[2], [2], [1], [1], [0, 0, 0, 1, 1, 1], [0], [0]>} : vector<2x8x8xf32>, vector<2x8x8xf32>, vector<2x8x8xf32> -> vector<2x8x8xf32>
    "tpu.trace_stop"() : () -> ()
    %cst_131 = arith.constant dense<0xFF800000> : vector<2x8xf32>
    %272 = vector.multi_reduction <maximumf>, %271, %cst_131 [2] : vector<2x8x8xf32> to vector<2x8xf32>
    %273 = vector.shape_cast %272 : vector<2x8xf32> to vector<2x8x1xf32>
    %274 = vector.broadcast %273 : vector<2x8x1xf32> to vector<2x8x8xf32>
    %275 = arith.subf %271, %274 : vector<2x8x8xf32>
    %276 = math.exp %275 : vector<2x8x8xf32>
    %cst_132 = arith.constant dense<0.000000e+00> : vector<2x8xf32>
    %277 = vector.multi_reduction <add>, %276, %cst_132 [2] : vector<2x8x8xf32> to vector<2x8xf32>
    %278 = vector.shape_cast %277 : vector<2x8xf32> to vector<2x8x1xf32>
    %279 = tpu.reciprocal %278 {approx = true} : vector<2x8x1xf32> -> vector<2x8x1xf32>
    %280 = vector.broadcast %279 : vector<2x8x1xf32> to vector<2x8x8xf32>
    %281 = arith.mulf %276, %280 : vector<2x8x8xf32>
    "tpu.trace_start"() <{level = 10 : i32, message = "bqk,bkd->bqd"}> : () -> ()
    %cst_133 = arith.constant dense<0.000000e+00> : vector<2x8x8xf32>
    %282 = tpu.matmul %281, %270, %cst_133 {dimension_numbers = #tpu.dot_dimension_numbers<[2], [1], [1], [2], [0, 0, 0, 1, 1, 2], [0], [0]>} : vector<2x8x8xf32>, vector<2x8x8xf32>, vector<2x8x8xf32> -> vector<2x8x8xf32>
    "tpu.trace_stop"() : () -> ()
    %283 = vector.shape_cast %282 : vector<2x8x8xf32> to vector<16x8xf32>
    %284 = vector.extract_strided_slice %191 {offsets = [16, 0], sizes = [8, 32], strides = [1, 1]} : vector<32x32xf32> to vector<8x32xf32>
    %cst_134 = arith.constant dense<0.000000e+00> : vector<16x32xf32>
    %285 = tpu.matmul %283, %284, %cst_134 {dimension_numbers = #tpu.dot_dimension_numbers<[1], [0], [0], [1], [0, 0, 1, 1], [], []>} : vector<16x8xf32>, vector<8x32xf32>, vector<16x32xf32> -> vector<16x32xf32>
    %286 = arith.addf %262, %285 : vector<16x32xf32>
    %287 = vector.extract_strided_slice %212 {offsets = [0, 24], sizes = [16, 8], strides = [1, 1]} : vector<16x96xf32> to vector<16x8xf32>
    %cst_135 = arith.constant 0.353553385 : f32
    %288 = vector.broadcast %cst_135 : f32 to vector<16x8xf32>
    %289 = arith.mulf %287, %288 : vector<16x8xf32>
    %290 = vector.extract_strided_slice %212 {offsets = [0, 56], sizes = [16, 8], strides = [1, 1]} : vector<16x96xf32> to vector<16x8xf32>
    %291 = vector.extract_strided_slice %212 {offsets = [0, 88], sizes = [16, 8], strides = [1, 1]} : vector<16x96xf32> to vector<16x8xf32>
    %292 = vector.shape_cast %289 : vector<16x8xf32> to vector<2x8x8xf32>
    %293 = vector.shape_cast %290 : vector<16x8xf32> to vector<2x8x8xf32>
    %294 = vector.shape_cast %291 : vector<16x8xf32> to vector<2x8x8xf32>
    "tpu.trace_start"() <{level = 10 : i32, message = "bqd,bkd->bqk"}> : () -> ()
    %cst_136 = arith.constant dense<0.000000e+00> : vector<2x8x8xf32>
    %295 = tpu.matmul %292, %293, %cst_136 {dimension_numbers = #tpu.dot_dimension_numbers<[2], [2], [1], [1], [0, 0, 0, 1, 1, 1], [0], [0]>} : vector<2x8x8xf32>, vector<2x8x8xf32>, vector<2x8x8xf32> -> vector<2x8x8xf32>
    "tpu.trace_stop"() : () -> ()
    %cst_137 = arith.constant dense<0xFF800000> : vector<2x8xf32>
    %296 = vector.multi_reduction <maximumf>, %295, %cst_137 [2] : vector<2x8x8xf32> to vector<2x8xf32>
    %297 = vector.shape_cast %296 : vector<2x8xf32> to vector<2x8x1xf32>
    %298 = vector.broadcast %297 : vector<2x8x1xf32> to vector<2x8x8xf32>
    %299 = arith.subf %295, %298 : vector<2x8x8xf32>
    %300 = math.exp %299 : vector<2x8x8xf32>
    %cst_138 = arith.constant dense<0.000000e+00> : vector<2x8xf32>
    %301 = vector.multi_reduction <add>, %300, %cst_138 [2] : vector<2x8x8xf32> to vector<2x8xf32>
    %302 = vector.shape_cast %301 : vector<2x8xf32> to vector<2x8x1xf32>
    %303 = tpu.reciprocal %302 {approx = true} : vector<2x8x1xf32> -> vector<2x8x1xf32>
    %304 = vector.broadcast %303 : vector<2x8x1xf32> to vector<2x8x8xf32>
    %305 = arith.mulf %300, %304 : vector<2x8x8xf32>
    "tpu.trace_start"() <{level = 10 : i32, message = "bqk,bkd->bqd"}> : () -> ()
    %cst_139 = arith.constant dense<0.000000e+00> : vector<2x8x8xf32>
    %306 = tpu.matmul %305, %294, %cst_139 {dimension_numbers = #tpu.dot_dimension_numbers<[2], [1], [1], [2], [0, 0, 0, 1, 1, 2], [0], [0]>} : vector<2x8x8xf32>, vector<2x8x8xf32>, vector<2x8x8xf32> -> vector<2x8x8xf32>
    "tpu.trace_stop"() : () -> ()
    %307 = vector.shape_cast %306 : vector<2x8x8xf32> to vector<16x8xf32>
    %308 = vector.extract_strided_slice %191 {offsets = [24, 0], sizes = [8, 32], strides = [1, 1]} : vector<32x32xf32> to vector<8x32xf32>
    %cst_140 = arith.constant dense<0.000000e+00> : vector<16x32xf32>
    %309 = tpu.matmul %307, %308, %cst_140 {dimension_numbers = #tpu.dot_dimension_numbers<[1], [0], [0], [1], [0, 0, 1, 1], [], []>} : vector<16x8xf32>, vector<8x32xf32>, vector<16x32xf32> -> vector<16x32xf32>
    %310 = arith.addf %286, %309 : vector<16x32xf32>
    %cst_141 = arith.constant dense<0.000000e+00> : vector<16xf32>
    %311 = vector.multi_reduction <add>, %310, %cst_141 [1] : vector<16x32xf32> to vector<16xf32>
    %312 = vector.shape_cast %311 : vector<16xf32> to vector<16x1xf32>
    %cst_142 = arith.constant 3.200000e+01 : f32
    %313 = vector.broadcast %cst_142 : f32 to vector<16x1xf32>
    %314 = arith.divf %312, %313 : vector<16x1xf32>
    %315 = vector.broadcast %314 : vector<16x1xf32> to vector<16x32xf32>
    %316 = arith.subf %310, %315 : vector<16x32xf32>
    %317 = arith.mulf %316, %316 : vector<16x32xf32>
    %cst_143 = arith.constant dense<0.000000e+00> : vector<16xf32>
    %318 = vector.multi_reduction <add>, %317, %cst_143 [1] : vector<16x32xf32> to vector<16xf32>
    %319 = vector.shape_cast %318 : vector<16xf32> to vector<16x1xf32>
    %cst_144 = arith.constant 3.200000e+01 : f32
    %320 = vector.broadcast %cst_144 : f32 to vector<16x1xf32>
    %321 = arith.divf %319, %320 : vector<16x1xf32>
    %322 = vector.broadcast %314 : vector<16x1xf32> to vector<16x32xf32>
    %323 = arith.subf %310, %322 : vector<16x32xf32>
    %cst_145 = arith.constant 9.99999974E-6 : f32
    %324 = vector.broadcast %cst_145 : f32 to vector<16x1xf32>
    %325 = arith.addf %321, %324 : vector<16x1xf32>
    %326 = math.rsqrt %325 : vector<16x1xf32>
    %327 = vector.broadcast %326 : vector<16x1xf32> to vector<16x32xf32>
    %328 = arith.mulf %323, %327 : vector<16x32xf32>
    %329 = vector.broadcast %195 : vector<1x32xf32> to vector<16x32xf32>
    %330 = arith.mulf %328, %329 : vector<16x32xf32>
    %331 = vector.broadcast %197 : vector<1x32xf32> to vector<16x32xf32>
    %332 = arith.addf %330, %331 : vector<16x32xf32>
    %cst_146 = arith.constant dense<0.000000e+00> : vector<16x64xf32>
    %333 = tpu.matmul %332, %199, %cst_146 {dimension_numbers = #tpu.dot_dimension_numbers<[1], [0], [0], [1], [0, 0, 1, 1], [], []>} : vector<16x32xf32>, vector<32x64xf32>, vector<16x64xf32> -> vector<16x64xf32>
    %334 = vector.broadcast %201 : vector<1x64xf32> to vector<16x64xf32>
    %335 = arith.addf %333, %334 : vector<16x64xf32>
    %cst_147 = arith.constant 0.000000e+00 : f32
    %336 = vector.broadcast %cst_147 : f32 to vector<16x64xf32>
    %337 = arith.maximumf %335, %336 : vector<16x64xf32>
    %cst_148 = arith.constant dense<0.000000e+00> : vector<16x32xf32>
    %338 = tpu.matmul %337, %203, %cst_148 {dimension_numbers = #tpu.dot_dimension_numbers<[1], [0], [0], [1], [0, 0, 1, 1], [], []>} : vector<16x64xf32>, vector<64x32xf32>, vector<16x32xf32> -> vector<16x32xf32>
    %339 = vector.broadcast %205 : vector<1x32xf32> to vector<16x32xf32>
    %340 = arith.addf %338, %339 : vector<16x32xf32>
    %341 = arith.addf %340, %332 : vector<16x32xf32>
    %cst_149 = arith.constant dense<0.000000e+00> : vector<16xf32>
    %342 = vector.multi_reduction <add>, %341, %cst_149 [1] : vector<16x32xf32> to vector<16xf32>
    %343 = vector.shape_cast %342 : vector<16xf32> to vector<16x1xf32>
    %cst_150 = arith.constant 3.200000e+01 : f32
    %344 = vector.broadcast %cst_150 : f32 to vector<16x1xf32>
    %345 = arith.divf %343, %344 : vector<16x1xf32>
    %346 = vector.broadcast %345 : vector<16x1xf32> to vector<16x32xf32>
    %347 = arith.subf %341, %346 : vector<16x32xf32>
    %348 = arith.mulf %347, %347 : vector<16x32xf32>
    %cst_151 = arith.constant dense<0.000000e+00> : vector<16xf32>
    %349 = vector.multi_reduction <add>, %348, %cst_151 [1] : vector<16x32xf32> to vector<16xf32>
    %350 = vector.shape_cast %349 : vector<16xf32> to vector<16x1xf32>
    %cst_152 = arith.constant 3.200000e+01 : f32
    %351 = vector.broadcast %cst_152 : f32 to vector<16x1xf32>
    %352 = arith.divf %350, %351 : vector<16x1xf32>
    %353 = vector.broadcast %345 : vector<16x1xf32> to vector<16x32xf32>
    %354 = arith.subf %341, %353 : vector<16x32xf32>
    %cst_153 = arith.constant 9.99999974E-6 : f32
    %355 = vector.broadcast %cst_153 : f32 to vector<16x1xf32>
    %356 = arith.addf %352, %355 : vector<16x1xf32>
    %357 = math.rsqrt %356 : vector<16x1xf32>
    %358 = vector.broadcast %357 : vector<16x1xf32> to vector<16x32xf32>
    %359 = arith.mulf %354, %358 : vector<16x32xf32>
    %360 = vector.broadcast %207 : vector<1x32xf32> to vector<16x32xf32>
    %361 = arith.mulf %359, %360 : vector<16x32xf32>
    %362 = vector.broadcast %209 : vector<1x32xf32> to vector<16x32xf32>
    %363 = arith.addf %361, %362 : vector<16x32xf32>
    %c0_154 = arith.constant 0 : index
    %c0_155 = arith.constant 0 : index
    %364 = vector.load %arg17[%c0_154, %c0_155] : memref<16x32xf32, #tpu.memory_space<vmem>>, vector<16x32xf32>
    tpu.vector_store %arg17[%c0_154, %c0_155], %363 {strides = array<i32>} : memref<16x32xf32, #tpu.memory_space<vmem>>, vector<16x32xf32>,
    return
  }
  func.func @transform_0(%arg0: i32) -> (i32, i32) {
    %c0_i32 = arith.constant 0 : i32
    %c0_i32_0 = arith.constant 0 : i32
    %c0_i32_1 = arith.constant 0 : i32
    return %c0_i32, %c0_i32_0 : i32, i32
  }
  func.func @transform_1(%arg0: i32) -> (i32, i32) {
    %c0_i32 = arith.constant 0 : i32
    %c0_i32_0 = arith.constant 0 : i32
    %c0_i32_1 = arith.constant 0 : i32
    return %c0_i32, %c0_i32_0 : i32, i32
  }
  func.func @transform_2(%arg0: i32) -> (i32, i32) {
    %c0_i32 = arith.constant 0 : i32
    %c0_i32_0 = arith.constant 0 : i32
    %c0_i32_1 = arith.constant 0 : i32
    return %c0_i32, %c0_i32_0 : i32, i32
  }
  func.func @transform_3(%arg0: i32) -> (i32, i32) {
    %c0_i32 = arith.constant 0 : i32
    %c0_i32_0 = arith.constant 0 : i32
    %c0_i32_1 = arith.constant 0 : i32
    return %c0_i32, %c0_i32_0 : i32, i32
  }
  func.func @transform_4(%arg0: i32) -> (i32, i32, i32) {
    %c0_i32 = arith.constant 0 : i32
    %c0_i32_0 = arith.constant 0 : i32
    %c0_i32_1 = arith.constant 0 : i32
    %c0_i32_2 = arith.constant 0 : i32
    return %c0_i32, %c0_i32_0, %c0_i32_1 : i32, i32, i32
  }
  func.func @transform_5(%arg0: i32) -> (i32, i32, i32) {
    %c0_i32 = arith.constant 0 : i32
    %c0_i32_0 = arith.constant 0 : i32
    %c0_i32_1 = arith.constant 0 : i32
    %c0_i32_2 = arith.constant 0 : i32
    return %c0_i32, %c0_i32_0, %c0_i32_1 : i32, i32, i32
  }
  func.func @transform_6(%arg0: i32) -> (i32, i32, i32) {
    %c0_i32 = arith.constant 0 : i32
    %c0_i32_0 = arith.constant 0 : i32
    %c0_i32_1 = arith.constant 0 : i32
    %c0_i32_2 = arith.constant 0 : i32
    return %c0_i32, %c0_i32_0, %c0_i32_1 : i32, i32, i32
  }
  func.func @transform_7(%arg0: i32) -> (i32, i32, i32) {
    %c0_i32 = arith.constant 0 : i32
    %c0_i32_0 = arith.constant 0 : i32
    %c0_i32_1 = arith.constant 0 : i32
    %c0_i32_2 = arith.constant 0 : i32
    return %c0_i32, %c0_i32_0, %c0_i32_1 : i32, i32, i32
  }
  func.func @transform_8(%arg0: i32) -> (i32, i32, i32) {
    %c0_i32 = arith.constant 0 : i32
    %c0_i32_0 = arith.constant 0 : i32
    %c0_i32_1 = arith.constant 0 : i32
    %c0_i32_2 = arith.constant 0 : i32
    return %c0_i32, %c0_i32_0, %c0_i32_1 : i32, i32, i32
  }
  func.func @transform_9(%arg0: i32) -> (i32, i32, i32) {
    %c0_i32 = arith.constant 0 : i32
    %c0_i32_0 = arith.constant 0 : i32
    %c0_i32_1 = arith.constant 0 : i32
    %c0_i32_2 = arith.constant 0 : i32
    return %c0_i32, %c0_i32_0, %c0_i32_1 : i32, i32, i32
  }
  func.func @transform_10(%arg0: i32) -> (i32, i32, i32) {
    %c0_i32 = arith.constant 0 : i32
    %c0_i32_0 = arith.constant 0 : i32
    %c0_i32_1 = arith.constant 0 : i32
    %c0_i32_2 = arith.constant 0 : i32
    return %c0_i32, %c0_i32_0, %c0_i32_1 : i32, i32, i32
  }
  func.func @transform_11(%arg0: i32) -> (i32, i32, i32) {
    %c0_i32 = arith.constant 0 : i32
    %c0_i32_0 = arith.constant 0 : i32
    %c0_i32_1 = arith.constant 0 : i32
    %c0_i32_2 = arith.constant 0 : i32
    return %c0_i32, %c0_i32_0, %c0_i32_1 : i32, i32, i32
  }
  func.func @transform_12(%arg0: i32) -> (i32, i32, i32) {
    %c0_i32 = arith.constant 0 : i32
    %c0_i32_0 = arith.constant 0 : i32
    %c0_i32_1 = arith.constant 0 : i32
    %c0_i32_2 = arith.constant 0 : i32
    return %c0_i32, %c0_i32_0, %c0_i32_1 : i32, i32, i32
  }
  func.func @transform_13(%arg0: i32) -> (i32, i32, i32) {
    %c0_i32 = arith.constant 0 : i32
    %c0_i32_0 = arith.constant 0 : i32
    %c0_i32_1 = arith.constant 0 : i32
    %c0_i32_2 = arith.constant 0 : i32
    return %c0_i32, %c0_i32_0, %c0_i32_1 : i32, i32, i32
  }
  func.func @transform_14(%arg0: i32) -> (i32, i32, i32) {
    %c0_i32 = arith.constant 0 : i32
    %c0_i32_0 = arith.constant 0 : i32
    %c0_i32_1 = arith.constant 0 : i32
    %c0_i32_2 = arith.constant 0 : i32
    return %c0_i32, %c0_i32_0, %c0_i32_1 : i32, i32, i32
  }
  func.func @transform_15(%arg0: i32) -> (i32, i32, i32) {
    %c0_i32 = arith.constant 0 : i32
    %c0_i32_0 = arith.constant 0 : i32
    %c0_i32_1 = arith.constant 0 : i32
    %c0_i32_2 = arith.constant 0 : i32
    return %c0_i32, %c0_i32_0, %c0_i32_1 : i32, i32, i32
  }
  func.func @transform_16(%arg0: i32) -> (i32, i32) {
    %c0_i32 = arith.constant 0 : i32
    %c0_i32_0 = arith.constant 0 : i32
    %c0_i32_1 = arith.constant 0 : i32
    return %c0_i32, %c0_i32_0 : i32, i32
  }
}

</mosaic_0001>

<llo_original>
// kernel: tpu_custom_call.1
$region0: #{tpu_custom_call.1}
  #allocation0 [shape = 'u32[]', space=smem, size = 0x4, offset = 0x4, fixed_abs, tag = 'smem constant byte address 0x4 - core index']
  #allocation1 [shape = 'u32[144,128]{1,0:T(1,128)}', space=vmem, size = 0x12000, scoped, tag = 'internal scratch']
  %s0 = inlined_call_operand.hbm [shape: f32[16,16], index: 0, kind: input, shape index: {}]
  %s1 = inlined_call_operand.hbm [shape: f32[16,32], index: 1, kind: input, shape index: {}]
  %s2 = inlined_call_operand.hbm [shape: f32[16,32], index: 2, kind: input, shape index: {}]
  %s3 = inlined_call_operand.vmem [shape: f32[1,32], index: 3, kind: input, shape index: {}]
  %s4 = inlined_call_operand.vmem [shape: f32[2,32,96], index: 4, kind: input, shape index: {}]
  %s5 = inlined_call_operand.vmem [shape: f32[2,1,96], index: 5, kind: input, shape index: {}]
  %s6 = inlined_call_operand.vmem [shape: f32[2,32,32], index: 6, kind: input, shape index: {}]
  %s7 = inlined_call_operand.vmem [shape: f32[2,1,32], index: 7, kind: input, shape index: {}]
  %s8 = inlined_call_operand.vmem [shape: f32[2,1,32], index: 8, kind: input, shape index: {}]
  %s9 = inlined_call_operand.vmem [shape: f32[2,1,32], index: 9, kind: input, shape index: {}]
  %s10 = inlined_call_operand.vmem [shape: f32[2,32,64], index: 10, kind: input, shape index: {}]
  %s11 = inlined_call_operand.vmem [shape: f32[2,1,64], index: 11, kind: input, shape index: {}]
  %s12 = inlined_call_operand.vmem [shape: f32[2,64,32], index: 12, kind: input, shape index: {}]
  %s13 = inlined_call_operand.vmem [shape: f32[2,1,32], index: 13, kind: input, shape index: {}]
  %s14 = inlined_call_operand.vmem [shape: f32[2,1,32], index: 14, kind: input, shape index: {}]
  %s15 = inlined_call_operand.vmem [shape: f32[2,1,32], index: 15, kind: input, shape index: {}]
  %s16 = inlined_call_operand.hbm [shape: f32[16,32], index: 16, kind: output, shape index: {}]
  %s17 = sld [smem:[#allocation0]]
  $region86: #{tpu_custom_call.1} parent=0
    _
  %s19 = ssub.s32 1, %s17
  %s20 = scalar_select 0, %s19, %s17
  $region1: #{tpu_custom_call.1} parent=0
    #allocation2 [shape = 'u8[8192]{0}', space=vmem, size = 0x2000, scoped, tag = 'input window, operand 0, single buffered']
    #allocation3 [shape = 's32[1]{0}', space=sflag, size = 0x4, scoped, tag = 'scoped memory for tpu_custom_call.1']
    #allocation4 [shape = 's32[1]{0}', space=sflag, size = 0x4, scoped, tag = 'scoped memory for tpu_custom_call.1']
    #allocation5 [shape = 'u8[8192]{0}', space=vmem, size = 0x2000, scoped, tag = 'input window, operand 1, single buffered']
    #allocation6 [shape = 's32[1]{0}', space=sflag, size = 0x4, scoped, tag = 'scoped memory for tpu_custom_call.1']
    #allocation7 [shape = 'u8[8192]{0}', space=vmem, size = 0x2000, scoped, tag = 'input window, operand 2, single buffered']
    #allocation8 [shape = 'u8[8192]{0}', space=vmem, size = 0x2000, scoped, tag = 'output window, operand 0, single buffered']
    %21 = vsyncpa [#allocation3], 0
    %22 = vsyncpa [#allocation6], 0
    %23 = vsyncpa [#allocation4], 0
    // Predicated region
    $region2: #{tpu_custom_call.1} parent=1 // pred_check
      _
    $region3: #{tpu_custom_call.1} parent=1 // pred_check_branch
      %25 = sbr.rel (0) target = $region5
    $region4: #{tpu_custom_call.1} parent=1 // pred_region
      %s27 = ssub.s32 256, 256
      %28 = vsyncadd [#allocation3], %s27
      %s29 = sshll.u32 [#allocation2], 4
      %s30 = int_to_ptr.vmem [resolvable:$true] %s29
      %35 = dma.hbm_to_vmem [thread:$0]  %s0, 256, %s30, [#allocation3], 128, 128, 8
    $region5: #{tpu_custom_call.1} parent=1 // pred_fallthru
      _
    // Predicated region
    $region6: #{tpu_custom_call.1} parent=1 // pred_check
      _
    $region7: #{tpu_custom_call.1} parent=1 // pred_check_branch
      %37 = sbr.rel (0) target = $region9
    $region8: #{tpu_custom_call.1} parent=1 // pred_region
      %s39 = ssub.s32 256, 256
      %40 = vsyncadd [#allocation6], %s39
      %s41 = sshll.u32 [#allocation5], 4
      %s42 = int_to_ptr.vmem [resolvable:$true] %s41
      %47 = dma.hbm_to_vmem [thread:$0]  %s1, 256, %s42, [#allocation6], 128, 128, 8
    $region9: #{tpu_custom_call.1} parent=1 // pred_fallthru
      _
    // Predicated region
    $region10: #{tpu_custom_call.1} parent=1 // pred_check
      _
    $region11: #{tpu_custom_call.1} parent=1 // pred_check_branch
      %49 = sbr.rel (0) target = $region13
    $region12: #{tpu_custom_call.1} parent=1 // pred_region
      %s51 = ssub.s32 256, 256
      %52 = vsyncadd [#allocation6], %s51
      %s53 = sshll.u32 [#allocation7], 4
      %s54 = int_to_ptr.vmem [resolvable:$true] %s53
      %59 = dma.hbm_to_vmem [thread:$0]  %s2, 256, %s54, [#allocation6], 128, 128, 8
    $region13: #{tpu_custom_call.1} parent=1 // pred_fallthru
      _
    // Predicated region
    $region14: #{tpu_custom_call.1} parent=1 // pred_check
      _
    $region15: #{tpu_custom_call.1} parent=1 // pred_check_branch
      %61 = sbr.rel (0) target = $region17
    $region16: #{tpu_custom_call.1} parent=1 // pred_region
      _
    $region17: #{tpu_custom_call.1} parent=1 // pred_fallthru
      _
    // Predicated region
    $region18: #{tpu_custom_call.1} parent=1 // pred_check
      _
    $region19: #{tpu_custom_call.1} parent=1 // pred_check_branch
      %63 = sbr.rel (0) target = $region21
    $region20: #{tpu_custom_call.1} parent=1 // pred_region
      _
    $region21: #{tpu_custom_call.1} parent=1 // pred_fallthru
      _
    // Predicated region
    $region22: #{tpu_custom_call.1} parent=1 // pred_check
      _
    $region23: #{tpu_custom_call.1} parent=1 // pred_check_branch
      %65 = sbr.rel (0) target = $region25
    $region24: #{tpu_custom_call.1} parent=1 // pred_region
      _
    $region25: #{tpu_custom_call.1} parent=1 // pred_fallthru
      _
    // Predicated region
    $region26: #{tpu_custom_call.1} parent=1 // pred_check
      _
    $region27: #{tpu_custom_call.1} parent=1 // pred_check_branch
      %67 = sbr.rel (0) target = $region29
    $region28: #{tpu_custom_call.1} parent=1 // pred_region
      _
    $region29: #{tpu_custom_call.1} parent=1 // pred_fallthru
      _
    // Predicated region
    $region30: #{tpu_custom_call.1} parent=1 // pred_check
      _
    $region31: #{tpu_custom_call.1} parent=1 // pred_check_branch
      %69 = sbr.rel (0) target = $region33
    $region32: #{tpu_custom_call.1} parent=1 // pred_region
      _
    $region33: #{tpu_custom_call.1} parent=1 // pred_fallthru
      _
    // Predicated region
    $region34: #{tpu_custom_call.1} parent=1 // pred_check
      _
    $region35: #{tpu_custom_call.1} parent=1 // pred_check_branch
      %71 = sbr.rel (0) target = $region37
    $region36: #{tpu_custom_call.1} parent=1 // pred_region
      _
    $region37: #{tpu_custom_call.1} parent=1 // pred_fallthru
      _
    // Predicated region
    $region38: #{tpu_custom_call.1} parent=1 // pred_check
      _
    $region39: #{tpu_custom_call.1} parent=1 // pred_check_branch
      %73 = sbr.rel (0) target = $region41
    $region40: #{tpu_custom_call.1} parent=1 // pred_region
      _
    $region41: #{tpu_custom_call.1} parent=1 // pred_fallthru
      _
    // Predicated region
    $region42: #{tpu_custom_call.1} parent=1 // pred_check
      _
    $region43: #{tpu_custom_call.1} parent=1 // pred_check_branch
      %75 = sbr.rel (0) target = $region45
    $region44: #{tpu_custom_call.1} parent=1 // pred_region
      _
    $region45: #{tpu_custom_call.1} parent=1 // pred_fallthru
      _
    // Predicated region
    $region46: #{tpu_custom_call.1} parent=1 // pred_check
      _
    $region47: #{tpu_custom_call.1} parent=1 // pred_check_branch
      %77 = sbr.rel (0) target = $region49
    $region48: #{tpu_custom_call.1} parent=1 // pred_region
      _
    $region49: #{tpu_custom_call.1} parent=1 // pred_fallthru
      _
    // Predicated region
    $region50: #{tpu_custom_call.1} parent=1 // pred_check
      _
    $region51: #{tpu_custom_call.1} parent=1 // pred_check_branch
      %79 = sbr.rel (0) target = $region53
    $region52: #{tpu_custom_call.1} parent=1 // pred_region
      _
    $region53: #{tpu_custom_call.1} parent=1 // pred_fallthru
      _
    // Predicated region
    $region54: #{tpu_custom_call.1} parent=1 // pred_check
      _
    $region55: #{tpu_custom_call.1} parent=1 // pred_check_branch
      %81 = sbr.rel (0) target = $region57
    $region56: #{tpu_custom_call.1} parent=1 // pred_region
      _
    $region57: #{tpu_custom_call.1} parent=1 // pred_fallthru
      _
    // Predicated region
    $region58: #{tpu_custom_call.1} parent=1 // pred_check
      _
    $region59: #{tpu_custom_call.1} parent=1 // pred_check_branch
      %83 = sbr.rel (0) target = $region61
    $region60: #{tpu_custom_call.1} parent=1 // pred_region
      _
    $region61: #{tpu_custom_call.1} parent=1 // pred_fallthru
      _
    // Predicated region
    $region62: #{tpu_custom_call.1} parent=1 // pred_check
      _
    $region63: #{tpu_custom_call.1} parent=1 // pred_check_branch
      %85 = sbr.rel (0) target = $region65
    $region64: #{tpu_custom_call.1} parent=1 // pred_region
      _
    $region65: #{tpu_custom_call.1} parent=1 // pred_fallthru
      _
    // Predicated region
    $region66: #{tpu_custom_call.1} parent=1 // pred_check
      _
    $region67: #{tpu_custom_call.1} parent=1 // pred_check_branch
      %87 = sbr.rel (0) target = $region69
    $region68: #{tpu_custom_call.1} parent=1 // pred_region
      %88 = dma.done [#allocation3], 256
    $region69: #{tpu_custom_call.1} parent=1 // pred_fallthru
      _
    // Predicated region
    $region70: #{tpu_custom_call.1} parent=1 // pred_check
      _
    $region71: #{tpu_custom_call.1} parent=1 // pred_check_branch
      %90 = sbr.rel (0) target = $region73
    $region72: #{tpu_custom_call.1} parent=1 // pred_region
      %91 = dma.done [#allocation6], 256
    $region73: #{tpu_custom_call.1} parent=1 // pred_fallthru
      _
    // Predicated region
    $region74: #{tpu_custom_call.1} parent=1 // pred_check
      _
    $region75: #{tpu_custom_call.1} parent=1 // pred_check_branch
      %93 = sbr.rel (0) target = $region77
    $region76: #{tpu_custom_call.1} parent=1 // pred_region
      %94 = dma.done [#allocation6], 256
    $region77: #{tpu_custom_call.1} parent=1 // pred_fallthru
      _
    %v95 = vld [vmem:[#allocation2] sm:$0xff]
    %v96 = vld [vmem:[#allocation2 + $0x8] sm:$0xff]
    %v97 = vld [vmem:[#allocation7] sm:$0xff]
    %v98 = vld [vmem:[#allocation7 + $0x8] sm:$0xff]
    %v99 = vld [vmem:[%s3] sm:$0x1]
    %v101 = vlaneseq
    %v102 = vshrl.u32 %v101, 7
    %v103 = vsub.s32 0, %v102
    %v104 = vrot.slane %v99, %v103
    %vm106 = vcmask 130048
    %v108 = vsel %vm106, %v95, 0
    %v111 = vsel %vm106, %v96, 0
    %113 = vmatprep.subr.mxu0 0.0
    %114 = vmatpush1.msra.mxu0 %v97
    %115 = vmatprep.subr.mxu0 0.0
    %116 = vmatpush1.msra.mxu0 %v98
    %117 = vmatprep.subr.mxu0 0.0
    %118 = vmatpush1.msra.mxu0 0.0
    %119 = vmatprep.subr.mxu0 0.0
    %120 = vmatpush1.msra.mxu0 0.0
    %121 = vmatprep.subr.mxu0 0.0
    %122 = vmatpush1.msra.mxu0 0.0
    %123 = vmatprep.subr.mxu0 0.0
    %124 = vmatpush1.msra.mxu0 0.0
    %125 = vmatprep.subr.mxu0 0.0
    %126 = vmatpush1.msra.mxu0 0.0
    %127 = vmatprep.subr.mxu0 0.0
    %128 = vmatpush1.msra.mxu0 0.0
    %129 = vmatprep.subr.mxu0 0.0
    %130 = vmatpush1.msra.mxu0 0.0
    %131 = vmatprep.subr.mxu0 0.0
    %132 = vmatpush1.msra.mxu0 0.0
    %133 = vmatprep.subr.mxu0 0.0
    %134 = vmatpush1.msra.mxu0 0.0
    %135 = vmatprep.subr.mxu0 0.0
    %136 = vmatpush1.msra.mxu0 0.0
    %137 = vmatprep.subr.mxu0 0.0
    %138 = vmatpush1.msra.mxu0 0.0
    %139 = vmatprep.subr.mxu0 0.0
    %140 = vmatpush1.msra.mxu0 0.0
    %141 = vmatprep.subr.mxu0 0.0
    %142 = vmatpush1.msra.mxu0 0.0
    %143 = vmatprep.subr.mxu0 0.0
    %144 = vmatpush1.msra.mxu0 0.0
    %145 = vmatprep.subr.mxu0 0.0
    %146 = vmatpush1.msra.mxu0 0.0
    %147 = vmatprep.subr.mxu0 0.0
    %148 = vmatpush1.msra.mxu0 0.0
    %149 = vmatprep.subr.mxu0 0.0
    %150 = vmatpush1.msra.mxu0 0.0
    %151 = vmatprep.subr.mxu0 0.0
    %152 = vmatpush1.msra.mxu0 0.0
    %153 = vmatprep.subr.mxu0 0.0
    %154 = vmatpush1.msra.mxu0 0.0
    %155 = vmatprep.subr.mxu0 0.0
    %156 = vmatpush1.msra.mxu0 0.0
    %157 = vmatprep.subr.mxu0 0.0
    %158 = vmatpush1.msra.mxu0 0.0
    %159 = vmatprep.subr.mxu0 0.0
    %160 = vmatpush1.msra.mxu0 0.0
    %161 = vmatprep.subr.mxu0 0.0
    %162 = vmatpush1.msra.mxu0 0.0
    %163 = vmatprep.subr.mxu0 0.0
    %164 = vmatpush1.msra.mxu0 0.0
    %165 = vmatprep.subr.mxu0 0.0
    %166 = vmatpush1.msra.mxu0 0.0
    %167 = vmatprep.subr.mxu0 0.0
    %168 = vmatpush1.msra.mxu0 0.0
    %169 = vmatprep.subr.mxu0 0.0
    %170 = vmatpush1.msra.mxu0 0.0
    %171 = vmatprep.subr.mxu0 0.0
    %172 = vmatpush1.msra.mxu0 0.0
    %173 = vmatprep.subr.mxu0 0.0
    %174 = vmatpush1.msra.mxu0 0.0
    %175 = vmatprep.subr.mxu0 0.0
    %176 = vmatpush1.msra.mxu0 0.0
    %177 = vmatprep.mubr.f32.mxu0 0.0
    %178 = vmatmul.mubr.f32.gmra.mrb[0].mxu0 %v108
    %v179 = vpop.f32.mrb[0].mxu0
    %v180 = vadd.f32 %v104, %v179
    %v181 = vpop.f32.mrb[0].mxu0
    %182 = vmatprep.mubr.f32.mxu0 0.0
    %183 = vmatmul.mubr.f32.gmra.mrb[0].mxu0 %v111
    %v184 = vpop.f32.mrb[0].mxu0
    %v185 = vadd.f32 %v104, %v184
    %v186 = vpop.f32.mrb[0].mxu0
    %187 = vdwg.mxu0
    %v188 = vld [vmem:[#allocation5] sm:$0xff]
    %v189 = vld [vmem:[#allocation5 + $0x8] sm:$0xff]
    %v190 = vadd.f32 %v180, %v188
    %v191 = vadd.f32 %v185, %v189
    %v192 = vld [vmem:[%s4] sm:$0xff]
    %v193 = vld [vmem:[%s4 + $0x8] sm:$0xff]
    %v194 = vld [vmem:[%s4 + $0x10] sm:$0xff]
    %v195 = vld [vmem:[%s4 + $0x18] sm:$0xff]
    %v196 = vld [vmem:[%s5] sm:$0x1]
    %v197 = vld [vmem:[%s6] sm:$0xff]
    %v198 = vld [vmem:[%s6 + $0x8] sm:$0xff]
    %v199 = vld [vmem:[%s6 + $0x10] sm:$0xff]
    %v200 = vld [vmem:[%s6 + $0x18] sm:$0xff]
    %v201 = vld [vmem:[%s7] sm:$0x1]
    %v202 = vld [vmem:[%s8] sm:$0x1]
    %v203 = vld [vmem:[%s9] sm:$0x1]
    %v204 = vld [vmem:[%s10] sm:$0xff]
    %v205 = vld [vmem:[%s10 + $0x8] sm:$0xff]
    %v206 = vld [vmem:[%s10 + $0x10] sm:$0xff]
    %v207 = vld [vmem:[%s10 + $0x18] sm:$0xff]
    %v208 = vld [vmem:[%s11] sm:$0x1]
    %v209 = vld [vmem:[%s12] sm:$0xff]
    %v210 = vld [vmem:[%s12 + $0x8] sm:$0xff]
    %v211 = vld [vmem:[%s12 + $0x10] sm:$0xff]
    %v212 = vld [vmem:[%s12 + $0x18] sm:$0xff]
    %v213 = vld [vmem:[%s12 + $0x20] sm:$0xff]
    %v214 = vld [vmem:[%s12 + $0x28] sm:$0xff]
    %v215 = vld [vmem:[%s12 + $0x30] sm:$0xff]
    %v216 = vld [vmem:[%s12 + $0x38] sm:$0xff]
    %v217 = vld [vmem:[%s13] sm:$0x1]
    %v218 = vld [vmem:[%s14] sm:$0x1]
    %v219 = vld [vmem:[%s15] sm:$0x1]
    %v221 = vlaneseq
    %v222 = vshrl.u32 %v221, 7
    %v223 = vsub.s32 0, %v222
    %v224 = vrot.slane %v196, %v223
    %vm226 = vcmask 261120
    %v228 = vsel %vm226, %v190, 0
    %v231 = vsel %vm226, %v191, 0
    %233 = vmatprep.subr.mxu0 0.0
    %234 = vmatpush1.msra.mxu0 %v192
    %235 = vmatprep.subr.mxu0 0.0
    %236 = vmatpush1.msra.mxu0 %v193
    %237 = vmatprep.subr.mxu0 0.0
    %238 = vmatpush1.msra.mxu0 %v194
    %239 = vmatprep.subr.mxu0 0.0
    %240 = vmatpush1.msra.mxu0 %v195
    %241 = vmatprep.subr.mxu0 0.0
    %242 = vmatpush1.msra.mxu0 0.0
    %243 = vmatprep.subr.mxu0 0.0
    %244 = vmatpush1.msra.mxu0 0.0
    %245 = vmatprep.subr.mxu0 0.0
    %246 = vmatpush1.msra.mxu0 0.0
    %247 = vmatprep.subr.mxu0 0.0
    %248 = vmatpush1.msra.mxu0 0.0
    %249 = vmatprep.subr.mxu0 0.0
    %250 = vmatpush1.msra.mxu0 0.0
    %251 = vmatprep.subr.mxu0 0.0
    %252 = vmatpush1.msra.mxu0 0.0
    %253 = vmatprep.subr.mxu0 0.0
    %254 = vmatpush1.msra.mxu0 0.0
    %255 = vmatprep.subr.mxu0 0.0
    %256 = vmatpush1.msra.mxu0 0.0
    %257 = vmatprep.subr.mxu0 0.0
    %258 = vmatpush1.msra.mxu0 0.0
    %259 = vmatprep.subr.mxu0 0.0
    %260 = vmatpush1.msra.mxu0 0.0
    %261 = vmatprep.subr.mxu0 0.0
    %262 = vmatpush1.msra.mxu0 0.0
    %263 = vmatprep.subr.mxu0 0.0
    %264 = vmatpush1.msra.mxu0 0.0
    %265 = vmatprep.subr.mxu0 0.0
    %266 = vmatpush1.msra.mxu0 0.0
    %267 = vmatprep.subr.mxu0 0.0
    %268 = vmatpush1.msra.mxu0 0.0
    %269 = vmatprep.subr.mxu0 0.0
    %270 = vmatpush1.msra.mxu0 0.0
    %271 = vmatprep.subr.mxu0 0.0
    %272 = vmatpush1.msra.mxu0 0.0
    %273 = vmatprep.subr.mxu0 0.0
    %274 = vmatpush1.msra.mxu0 0.0
    %275 = vmatprep.subr.mxu0 0.0
    %276 = vmatpush1.msra.mxu0 0.0
    %277 = vmatprep.subr.mxu0 0.0
    %278 = vmatpush1.msra.mxu0 0.0
    %279 = vmatprep.subr.mxu0 0.0
    %280 = vmatpush1.msra.mxu0 0.0
    %281 = vmatprep.subr.mxu0 0.0
    %282 = vmatpush1.msra.mxu0 0.0
    %283 = vmatprep.subr.mxu0 0.0
    %284 = vmatpush1.msra.mxu0 0.0
    %285 = vmatprep.subr.mxu0 0.0
    %286 = vmatpush1.msra.mxu0 0.0
    %287 = vmatprep.subr.mxu0 0.0
    %288 = vmatpush1.msra.mxu0 0.0
    %289 = vmatprep.subr.mxu0 0.0
    %290 = vmatpush1.msra.mxu0 0.0
    %291 = vmatprep.subr.mxu0 0.0
    %292 = vmatpush1.msra.mxu0 0.0
    %293 = vmatprep.subr.mxu0 0.0
    %294 = vmatpush1.msra.mxu0 0.0
    %295 = vmatprep.subr.mxu0 0.0
    %296 = vmatpush1.msra.mxu0 0.0
    %297 = vmatprep.mubr.f32.mxu0 0.0
    %298 = vmatmul.mubr.f32.gmra.mrb[0].mxu0 %v228
    %v299 = vpop.f32.mrb[0].mxu0
    %v300 = vadd.f32 %v224, %v299
    %v301 = vpop.f32.mrb[0].mxu0
    %302 = vmatprep.mubr.f32.mxu0 0.0
    %303 = vmatmul.mubr.f32.gmra.mrb[0].mxu0 %v231
    %v304 = vpop.f32.mrb[0].mxu0
    %v305 = vadd.f32 %v224, %v304
    %v306 = vpop.f32.mrb[0].mxu0
    %307 = vdwg.mxu0
    %v309 = vlaneseq
    %v310 = vshrl.u32 %v309, 7
    %v311 = vsub.s32 0, %v310
    %v312 = vrot.slane %v201, %v311
    %v314 = vadd.f32 %v190, %v312
    %v315 = vadd.f32 %v191, %v312
    %v316 = vmul.f32 %v300, 0.35355338
    %v317 = vmul.f32 %v305, 0.35355338
    %319 = vrot.lane.b32.xlu0 %v300, 96
    %v320 = vpop.permute.xlu0 %319
    %vm321 = vcmask 64512
    %v323 = vsel %vm321, %v316, 0
    %v325 = vsel %vm321, %v320, 0
    %327 = vmatprep.subr.mxu0 0.0
    %328 = vmatpush1.xpose.msra.mxu0 %v325
    %329 = vmatprep.subr.mxu0 0.0
    %330 = vmatpush1.xpose.msra.mxu0 0.0
    %331 = vmatprep.subr.mxu0 0.0
    %332 = vmatpush1.xpose.msra.mxu0 0.0
    %333 = vmatprep.subr.mxu0 0.0
    %334 = vmatpush1.xpose.msra.mxu0 0.0
    %335 = vmatprep.subr.mxu0 0.0
    %336 = vmatpush1.xpose.msra.mxu0 0.0
    %337 = vmatprep.subr.mxu0 0.0
    %338 = vmatpush1.xpose.msra.mxu0 0.0
    %339 = vmatprep.subr.mxu0 0.0
    %340 = vmatpush1.xpose.msra.mxu0 0.0
    %341 = vmatprep.subr.mxu0 0.0
    %342 = vmatpush1.xpose.msra.mxu0 0.0
    %343 = vmatprep.subr.mxu0 0.0
    %344 = vmatpush1.xpose.msra.mxu0 0.0
    %345 = vmatprep.subr.mxu0 0.0
    %346 = vmatpush1.xpose.msra.mxu0 0.0
    %347 = vmatprep.subr.mxu0 0.0
    %348 = vmatpush1.xpose.msra.mxu0 0.0
    %349 = vmatprep.subr.mxu0 0.0
    %350 = vmatpush1.xpose.msra.mxu0 0.0
    %351 = vmatprep.subr.mxu0 0.0
    %352 = vmatpush1.xpose.msra.mxu0 0.0
    %353 = vmatprep.subr.mxu0 0.0
    %354 = vmatpush1.xpose.msra.mxu0 0.0
    %355 = vmatprep.subr.mxu0 0.0
    %356 = vmatpush1.xpose.msra.mxu0 0.0
    %357 = vmatprep.subr.mxu0 0.0
    %358 = vmatpush1.xpose.msra.mxu0 0.0
    %359 = vmatprep.subr.mxu0 0.0
    %360 = vmatpush1.xpose.msra.mxu0 0.0
    %361 = vmatprep.subr.mxu0 0.0
    %362 = vmatpush1.xpose.msra.mxu0 0.0
    %363 = vmatprep.subr.mxu0 0.0
    %364 = vmatpush1.xpose.msra.mxu0 0.0
    %365 = vmatprep.subr.mxu0 0.0
    %366 = vmatpush1.xpose.msra.mxu0 0.0
    %367 = vmatprep.subr.mxu0 0.0
    %368 = vmatpush1.xpose.msra.mxu0 0.0
    %369 = vmatprep.subr.mxu0 0.0
    %370 = vmatpush1.xpose.msra.mxu0 0.0
    %371 = vmatprep.subr.mxu0 0.0
    %372 = vmatpush1.xpose.msra.mxu0 0.0
    %373 = vmatprep.subr.mxu0 0.0
    %374 = vmatpush1.xpose.msra.mxu0 0.0
    %375 = vmatprep.subr.mxu0 0.0
    %376 = vmatpush1.xpose.msra.mxu0 0.0
    %377 = vmatprep.subr.mxu0 0.0
    %378 = vmatpush1.xpose.msra.mxu0 0.0
    %379 = vmatprep.subr.mxu0 0.0
    %380 = vmatpush1.xpose.msra.mxu0 0.0
    %381 = vmatprep.subr.mxu0 0.0
    %382 = vmatpush1.xpose.msra.mxu0 0.0
    %383 = vmatprep.subr.mxu0 0.0
    %384 = vmatpush1.xpose.msra.mxu0 0.0
    %385 = vmatprep.subr.mxu0 0.0
    %386 = vmatpush1.xpose.msra.mxu0 0.0
    %387 = vmatprep.subr.mxu0 0.0
    %388 = vmatpush1.xpose.msra.mxu0 0.0
    %389 = vmatprep.subr.mxu0 0.0
    %390 = vmatpush1.xpose.msra.mxu0 0.0
    %391 = vmatprep.mubr.f32.mxu0 0.0
    %392 = vmatmul.mubr.f32.gmra.mrb[0].mxu0 %v323
    %v393 = vpop.f32.mrb[0].mxu0
    %v394 = vadd.f32 0.0, %v393
    %v395 = vpop.f32.mrb[0].mxu0
    %396 = vdwg.mxu0
    %398 = vrot.lane.b32.xlu0 %v305, 96
    %v399 = vpop.permute.xlu0 %398
    %v401 = vsel %vm321, %v317, 0
    %v403 = vsel %vm321, %v399, 0
    %405 = vmatprep.subr.mxu0 0.0
    %406 = vmatpush1.xpose.msra.mxu0 %v403
    %407 = vmatprep.subr.mxu0 0.0
    %408 = vmatpush1.xpose.msra.mxu0 0.0
    %409 = vmatprep.subr.mxu0 0.0
    %410 = vmatpush1.xpose.msra.mxu0 0.0
    %411 = vmatprep.subr.mxu0 0.0
    %412 = vmatpush1.xpose.msra.mxu0 0.0
    %413 = vmatprep.subr.mxu0 0.0
    %414 = vmatpush1.xpose.msra.mxu0 0.0
    %415 = vmatprep.subr.mxu0 0.0
    %416 = vmatpush1.xpose.msra.mxu0 0.0
    %417 = vmatprep.subr.mxu0 0.0
    %418 = vmatpush1.xpose.msra.mxu0 0.0
    %419 = vmatprep.subr.mxu0 0.0
    %420 = vmatpush1.xpose.msra.mxu0 0.0
    %421 = vmatprep.subr.mxu0 0.0
    %422 = vmatpush1.xpose.msra.mxu0 0.0
    %423 = vmatprep.subr.mxu0 0.0
    %424 = vmatpush1.xpose.msra.mxu0 0.0
    %425 = vmatprep.subr.mxu0 0.0
    %426 = vmatpush1.xpose.msra.mxu0 0.0
    %427 = vmatprep.subr.mxu0 0.0
    %428 = vmatpush1.xpose.msra.mxu0 0.0
    %429 = vmatprep.subr.mxu0 0.0
    %430 = vmatpush1.xpose.msra.mxu0 0.0
    %431 = vmatprep.subr.mxu0 0.0
    %432 = vmatpush1.xpose.msra.mxu0 0.0
    %433 = vmatprep.subr.mxu0 0.0
    %434 = vmatpush1.xpose.msra.mxu0 0.0
    %435 = vmatprep.subr.mxu0 0.0
    %436 = vmatpush1.xpose.msra.mxu0 0.0
    %437 = vmatprep.subr.mxu0 0.0
    %438 = vmatpush1.xpose.msra.mxu0 0.0
    %439 = vmatprep.subr.mxu0 0.0
    %440 = vmatpush1.xpose.msra.mxu0 0.0
    %441 = vmatprep.subr.mxu0 0.0
    %442 = vmatpush1.xpose.msra.mxu0 0.0
    %443 = vmatprep.subr.mxu0 0.0
    %444 = vmatpush1.xpose.msra.mxu0 0.0
    %445 = vmatprep.subr.mxu0 0.0
    %446 = vmatpush1.xpose.msra.mxu0 0.0
    %447 = vmatprep.subr.mxu0 0.0
    %448 = vmatpush1.xpose.msra.mxu0 0.0
    %449 = vmatprep.subr.mxu0 0.0
    %450 = vmatpush1.xpose.msra.mxu0 0.0
    %451 = vmatprep.subr.mxu0 0.0
    %452 = vmatpush1.xpose.msra.mxu0 0.0
    %453 = vmatprep.subr.mxu0 0.0
    %454 = vmatpush1.xpose.msra.mxu0 0.0
    %455 = vmatprep.subr.mxu0 0.0
    %456 = vmatpush1.xpose.msra.mxu0 0.0
    %457 = vmatprep.subr.mxu0 0.0
    %458 = vmatpush1.xpose.msra.mxu0 0.0
    %459 = vmatprep.subr.mxu0 0.0
    %460 = vmatpush1.xpose.msra.mxu0 0.0
    %461 = vmatprep.subr.mxu0 0.0
    %462 = vmatpush1.xpose.msra.mxu0 0.0
    %463 = vmatprep.subr.mxu0 0.0
    %464 = vmatpush1.xpose.msra.mxu0 0.0
    %465 = vmatprep.subr.mxu0 0.0
    %466 = vmatpush1.xpose.msra.mxu0 0.0
    %467 = vmatprep.subr.mxu0 0.0
    %468 = vmatpush1.xpose.msra.mxu0 0.0
    %469 = vmatprep.mubr.f32.mxu0 0.0
    %470 = vmatmul.mubr.f32.gmra.mrb[0].mxu0 %v401
    %v471 = vpop.f32.mrb[0].mxu0
    %v472 = vadd.f32 0.0, %v471
    %v473 = vpop.f32.mrb[0].mxu0
    %474 = vdwg.mxu0
    %v475 = vsel %vm321, %v394, -inf
    %476 = vmax.xlane.f32.xlu0 %v475
    %v477 = vpop.xlane.xlu0 %476
    %v478 = vsel %vm321, %v472, -inf
    %479 = vmax.xlane.f32.xlu0 %v478
    %v480 = vpop.xlane.xlu0 %479
    %v481 = vsub.f32 %v394, %v477
    %v482 = vsub.f32 %v472, %v480
    %v483 = vmul.f32 %v481, 1.442695
    %v484 = vpow.pop %v483
    %v485 = vmul.f32 %v482, 1.442695
    %v486 = vpow.pop %v485
    %v487 = vsel %vm321, %v484, 0.0
    %488 = vadd.xlane.f32.xlu0 %v487
    %v489 = vpop.xlane.xlu0 %488
    %v490 = vsel %vm321, %v486, 0.0
    %491 = vadd.xlane.f32.xlu0 %v490
    %v492 = vpop.xlane.xlu0 %491
    %v493 = vrcp.pop %v489
    %v494 = vrcp.pop %v492
    %v495 = vmul.f32 %v484, %v493
    %v496 = vmul.f32 %v486, %v494
    %497 = vrot.lane.b32.xlu0 %v300, 64
    %v498 = vpop.permute.xlu0 %497
    %v501 = vsel %vm321, %v495, 0
    %503 = vmatprep.subr.mxu0 0.0
    %504 = vmatpush1.msra.mxu0 %v498
    %505 = vmatprep.subr.mxu0 0.0
    %506 = vmatpush1.msra.mxu0 0.0
    %507 = vmatprep.subr.mxu0 0.0
    %508 = vmatpush1.msra.mxu0 0.0
    %509 = vmatprep.subr.mxu0 0.0
    %510 = vmatpush1.msra.mxu0 0.0
    %511 = vmatprep.subr.mxu0 0.0
    %512 = vmatpush1.msra.mxu0 0.0
    %513 = vmatprep.subr.mxu0 0.0
    %514 = vmatpush1.msra.mxu0 0.0
    %515 = vmatprep.subr.mxu0 0.0
    %516 = vmatpush1.msra.mxu0 0.0
    %517 = vmatprep.subr.mxu0 0.0
    %518 = vmatpush1.msra.mxu0 0.0
    %519 = vmatprep.subr.mxu0 0.0
    %520 = vmatpush1.msra.mxu0 0.0
    %521 = vmatprep.subr.mxu0 0.0
    %522 = vmatpush1.msra.mxu0 0.0
    %523 = vmatprep.subr.mxu0 0.0
    %524 = vmatpush1.msra.mxu0 0.0
    %525 = vmatprep.subr.mxu0 0.0
    %526 = vmatpush1.msra.mxu0 0.0
    %527 = vmatprep.subr.mxu0 0.0
    %528 = vmatpush1.msra.mxu0 0.0
    %529 = vmatprep.subr.mxu0 0.0
    %530 = vmatpush1.msra.mxu0 0.0
    %531 = vmatprep.subr.mxu0 0.0
    %532 = vmatpush1.msra.mxu0 0.0
    %533 = vmatprep.subr.mxu0 0.0
    %534 = vmatpush1.msra.mxu0 0.0
    %535 = vmatprep.subr.mxu0 0.0
    %536 = vmatpush1.msra.mxu0 0.0
    %537 = vmatprep.subr.mxu0 0.0
    %538 = vmatpush1.msra.mxu0 0.0
    %539 = vmatprep.subr.mxu0 0.0
    %540 = vmatpush1.msra.mxu0 0.0
    %541 = vmatprep.subr.mxu0 0.0
    %542 = vmatpush1.msra.mxu0 0.0
    %543 = vmatprep.subr.mxu0 0.0
    %544 = vmatpush1.msra.mxu0 0.0
    %545 = vmatprep.subr.mxu0 0.0
    %546 = vmatpush1.msra.mxu0 0.0
    %547 = vmatprep.subr.mxu0 0.0
    %548 = vmatpush1.msra.mxu0 0.0
    %549 = vmatprep.subr.mxu0 0.0
    %550 = vmatpush1.msra.mxu0 0.0
    %551 = vmatprep.subr.mxu0 0.0
    %552 = vmatpush1.msra.mxu0 0.0
    %553 = vmatprep.subr.mxu0 0.0
    %554 = vmatpush1.msra.mxu0 0.0
    %555 = vmatprep.subr.mxu0 0.0
    %556 = vmatpush1.msra.mxu0 0.0
    %557 = vmatprep.subr.mxu0 0.0
    %558 = vmatpush1.msra.mxu0 0.0
    %559 = vmatprep.subr.mxu0 0.0
    %560 = vmatpush1.msra.mxu0 0.0
    %561 = vmatprep.subr.mxu0 0.0
    %562 = vmatpush1.msra.mxu0 0.0
    %563 = vmatprep.subr.mxu0 0.0
    %564 = vmatpush1.msra.mxu0 0.0
    %565 = vmatprep.subr.mxu0 0.0
    %566 = vmatpush1.msra.mxu0 0.0
    %567 = vmatprep.mubr.f32.mxu0 0.0
    %568 = vmatmul.mubr.f32.gmra.mrb[0].mxu0 %v501
    %v569 = vpop.f32.mrb[0].mxu0
    %v570 = vadd.f32 0.0, %v569
    %v571 = vpop.f32.mrb[0].mxu0
    %572 = vdwg.mxu0
    %573 = vrot.lane.b32.xlu0 %v305, 64
    %v574 = vpop.permute.xlu0 %573
    %v577 = vsel %vm321, %v496, 0
    %579 = vmatprep.subr.mxu0 0.0
    %580 = vmatpush1.msra.mxu0 %v574
    %581 = vmatprep.subr.mxu0 0.0
    %582 = vmatpush1.msra.mxu0 0.0
    %583 = vmatprep.subr.mxu0 0.0
    %584 = vmatpush1.msra.mxu0 0.0
    %585 = vmatprep.subr.mxu0 0.0
    %586 = vmatpush1.msra.mxu0 0.0
    %587 = vmatprep.subr.mxu0 0.0
    %588 = vmatpush1.msra.mxu0 0.0
    %589 = vmatprep.subr.mxu0 0.0
    %590 = vmatpush1.msra.mxu0 0.0
    %591 = vmatprep.subr.mxu0 0.0
    %592 = vmatpush1.msra.mxu0 0.0
    %593 = vmatprep.subr.mxu0 0.0
    %594 = vmatpush1.msra.mxu0 0.0
    %595 = vmatprep.subr.mxu0 0.0
    %596 = vmatpush1.msra.mxu0 0.0
    %597 = vmatprep.subr.mxu0 0.0
    %598 = vmatpush1.msra.mxu0 0.0
    %599 = vmatprep.subr.mxu0 0.0
    %600 = vmatpush1.msra.mxu0 0.0
    %601 = vmatprep.subr.mxu0 0.0
    %602 = vmatpush1.msra.mxu0 0.0
    %603 = vmatprep.subr.mxu0 0.0
    %604 = vmatpush1.msra.mxu0 0.0
    %605 = vmatprep.subr.mxu0 0.0
    %606 = vmatpush1.msra.mxu0 0.0
    %607 = vmatprep.subr.mxu0 0.0
    %608 = vmatpush1.msra.mxu0 0.0
    %609 = vmatprep.subr.mxu0 0.0
    %610 = vmatpush1.msra.mxu0 0.0
    %611 = vmatprep.subr.mxu0 0.0
    %612 = vmatpush1.msra.mxu0 0.0
    %613 = vmatprep.subr.mxu0 0.0
    %614 = vmatpush1.msra.mxu0 0.0
    %615 = vmatprep.subr.mxu0 0.0
    %616 = vmatpush1.msra.mxu0 0.0
    %617 = vmatprep.subr.mxu0 0.0
    %618 = vmatpush1.msra.mxu0 0.0
    %619 = vmatprep.subr.mxu0 0.0
    %620 = vmatpush1.msra.mxu0 0.0
    %621 = vmatprep.subr.mxu0 0.0
    %622 = vmatpush1.msra.mxu0 0.0
    %623 = vmatprep.subr.mxu0 0.0
    %624 = vmatpush1.msra.mxu0 0.0
    %625 = vmatprep.subr.mxu0 0.0
    %626 = vmatpush1.msra.mxu0 0.0
    %627 = vmatprep.subr.mxu0 0.0
    %628 = vmatpush1.msra.mxu0 0.0
    %629 = vmatprep.subr.mxu0 0.0
    %630 = vmatpush1.msra.mxu0 0.0
    %631 = vmatprep.subr.mxu0 0.0
    %632 = vmatpush1.msra.mxu0 0.0
    %633 = vmatprep.subr.mxu0 0.0
    %634 = vmatpush1.msra.mxu0 0.0
    %635 = vmatprep.subr.mxu0 0.0
    %636 = vmatpush1.msra.mxu0 0.0
    %637 = vmatprep.subr.mxu0 0.0
    %638 = vmatpush1.msra.mxu0 0.0
    %639 = vmatprep.subr.mxu0 0.0
    %640 = vmatpush1.msra.mxu0 0.0
    %641 = vmatprep.subr.mxu0 0.0
    %642 = vmatpush1.msra.mxu0 0.0
    %643 = vmatprep.mubr.f32.mxu0 0.0
    %644 = vmatmul.mubr.f32.gmra.mrb[0].mxu0 %v577
    %v645 = vpop.f32.mrb[0].mxu0
    %v646 = vadd.f32 0.0, %v645
    %v647 = vpop.f32.mrb[0].mxu0
    %648 = vdwg.mxu0
    %v650 = vsel %vm321, %v570, 0
    %v653 = vsel %vm321, %v646, 0
    %655 = vmatprep.subr.mxu0 0.0
    %656 = vmatpush1.msra.mxu0 %v197
    %657 = vmatprep.subr.mxu0 0.0
    %658 = vmatpush1.msra.mxu0 0.0
    %659 = vmatprep.subr.mxu0 0.0
    %660 = vmatpush1.msra.mxu0 0.0
    %661 = vmatprep.subr.mxu0 0.0
    %662 = vmatpush1.msra.mxu0 0.0
    %663 = vmatprep.subr.mxu0 0.0
    %664 = vmatpush1.msra.mxu0 0.0
    %665 = vmatprep.subr.mxu0 0.0
    %666 = vmatpush1.msra.mxu0 0.0
    %667 = vmatprep.subr.mxu0 0.0
    %668 = vmatpush1.msra.mxu0 0.0
    %669 = vmatprep.subr.mxu0 0.0
    %670 = vmatpush1.msra.mxu0 0.0
    %671 = vmatprep.subr.mxu0 0.0
    %672 = vmatpush1.msra.mxu0 0.0
    %673 = vmatprep.subr.mxu0 0.0
    %674 = vmatpush1.msra.mxu0 0.0
    %675 = vmatprep.subr.mxu0 0.0
    %676 = vmatpush1.msra.mxu0 0.0
    %677 = vmatprep.subr.mxu0 0.0
    %678 = vmatpush1.msra.mxu0 0.0
    %679 = vmatprep.subr.mxu0 0.0
    %680 = vmatpush1.msra.mxu0 0.0
    %681 = vmatprep.subr.mxu0 0.0
    %682 = vmatpush1.msra.mxu0 0.0
    %683 = vmatprep.subr.mxu0 0.0
    %684 = vmatpush1.msra.mxu0 0.0
    %685 = vmatprep.subr.mxu0 0.0
    %686 = vmatpush1.msra.mxu0 0.0
    %687 = vmatprep.subr.mxu0 0.0
    %688 = vmatpush1.msra.mxu0 0.0
    %689 = vmatprep.subr.mxu0 0.0
    %690 = vmatpush1.msra.mxu0 0.0
    %691 = vmatprep.subr.mxu0 0.0
    %692 = vmatpush1.msra.mxu0 0.0
    %693 = vmatprep.subr.mxu0 0.0
    %694 = vmatpush1.msra.mxu0 0.0
    %695 = vmatprep.subr.mxu0 0.0
    %696 = vmatpush1.msra.mxu0 0.0
    %697 = vmatprep.subr.mxu0 0.0
    %698 = vmatpush1.msra.mxu0 0.0
    %699 = vmatprep.subr.mxu0 0.0
    %700 = vmatpush1.msra.mxu0 0.0
    %701 = vmatprep.subr.mxu0 0.0
    %702 = vmatpush1.msra.mxu0 0.0
    %703 = vmatprep.subr.mxu0 0.0
    %704 = vmatpush1.msra.mxu0 0.0
    %705 = vmatprep.subr.mxu0 0.0
    %706 = vmatpush1.msra.mxu0 0.0
    %707 = vmatprep.subr.mxu0 0.0
    %708 = vmatpush1.msra.mxu0 0.0
    %709 = vmatprep.subr.mxu0 0.0
    %710 = vmatpush1.msra.mxu0 0.0
    %711 = vmatprep.subr.mxu0 0.0
    %712 = vmatpush1.msra.mxu0 0.0
    %713 = vmatprep.subr.mxu0 0.0
    %714 = vmatpush1.msra.mxu0 0.0
    %715 = vmatprep.subr.mxu0 0.0
    %716 = vmatpush1.msra.mxu0 0.0
    %717 = vmatprep.subr.mxu0 0.0
    %718 = vmatpush1.msra.mxu0 0.0
    %719 = vmatprep.mubr.f32.mxu0 0.0
    %720 = vmatmul.mubr.f32.gmra.mrb[0].mxu0 %v650
    %v721 = vpop.f32.mrb[0].mxu0
    %v722 = vadd.f32 0.0, %v721
    %v723 = vpop.f32.mrb[0].mxu0
    %724 = vmatprep.mubr.f32.mxu0 0.0
    %725 = vmatmul.mubr.f32.gmra.mrb[0].mxu0 %v653
    %v726 = vpop.f32.mrb[0].mxu0
    %v727 = vadd.f32 0.0, %v726
    %v728 = vpop.f32.mrb[0].mxu0
    %729 = vdwg.mxu0
    %v730 = vadd.f32 %v314, %v722
    %v731 = vadd.f32 %v315, %v727
    %732 = vrot.lane.b32.xlu0 %v316, 120
    %v733 = vpop.permute.xlu0 %732
    %734 = vrot.lane.b32.xlu0 %v300, 88
    %v735 = vpop.permute.xlu0 %734
    %v736 = vsel %vm321, %v733, 0
    %v738 = vsel %vm321, %v735, 0
    %740 = vmatprep.subr.mxu0 0.0
    %741 = vmatpush1.xpose.msra.mxu0 %v738
    %742 = vmatprep.subr.mxu0 0.0
    %743 = vmatpush1.xpose.msra.mxu0 0.0
    %744 = vmatprep.subr.mxu0 0.0
    %745 = vmatpush1.xpose.msra.mxu0 0.0
    %746 = vmatprep.subr.mxu0 0.0
    %747 = vmatpush1.xpose.msra.mxu0 0.0
    %748 = vmatprep.subr.mxu0 0.0
    %749 = vmatpush1.xpose.msra.mxu0 0.0
    %750 = vmatprep.subr.mxu0 0.0
    %751 = vmatpush1.xpose.msra.mxu0 0.0
    %752 = vmatprep.subr.mxu0 0.0
    %753 = vmatpush1.xpose.msra.mxu0 0.0
    %754 = vmatprep.subr.mxu0 0.0
    %755 = vmatpush1.xpose.msra.mxu0 0.0
    %756 = vmatprep.subr.mxu0 0.0
    %757 = vmatpush1.xpose.msra.mxu0 0.0
    %758 = vmatprep.subr.mxu0 0.0
    %759 = vmatpush1.xpose.msra.mxu0 0.0
    %760 = vmatprep.subr.mxu0 0.0
    %761 = vmatpush1.xpose.msra.mxu0 0.0
    %762 = vmatprep.subr.mxu0 0.0
    %763 = vmatpush1.xpose.msra.mxu0 0.0
    %764 = vmatprep.subr.mxu0 0.0
    %765 = vmatpush1.xpose.msra.mxu0 0.0
    %766 = vmatprep.subr.mxu0 0.0
    %767 = vmatpush1.xpose.msra.mxu0 0.0
    %768 = vmatprep.subr.mxu0 0.0
    %769 = vmatpush1.xpose.msra.mxu0 0.0
    %770 = vmatprep.subr.mxu0 0.0
    %771 = vmatpush1.xpose.msra.mxu0 0.0
    %772 = vmatprep.subr.mxu0 0.0
    %773 = vmatpush1.xpose.msra.mxu0 0.0
    %774 = vmatprep.subr.mxu0 0.0
    %775 = vmatpush1.xpose.msra.mxu0 0.0
    %776 = vmatprep.subr.mxu0 0.0
    %777 = vmatpush1.xpose.msra.mxu0 0.0
    %778 = vmatprep.subr.mxu0 0.0
    %779 = vmatpush1.xpose.msra.mxu0 0.0
    %780 = vmatprep.subr.mxu0 0.0
    %781 = vmatpush1.xpose.msra.mxu0 0.0
    %782 = vmatprep.subr.mxu0 0.0
    %783 = vmatpush1.xpose.msra.mxu0 0.0
    %784 = vmatprep.subr.mxu0 0.0
    %785 = vmatpush1.xpose.msra.mxu0 0.0
    %786 = vmatprep.subr.mxu0 0.0
    %787 = vmatpush1.xpose.msra.mxu0 0.0
    %788 = vmatprep.subr.mxu0 0.0
    %789 = vmatpush1.xpose.msra.mxu0 0.0
    %790 = vmatprep.subr.mxu0 0.0
    %791 = vmatpush1.xpose.msra.mxu0 0.0
    %792 = vmatprep.subr.mxu0 0.0
    %793 = vmatpush1.xpose.msra.mxu0 0.0
    %794 = vmatprep.subr.mxu0 0.0
    %795 = vmatpush1.xpose.msra.mxu0 0.0
    %796 = vmatprep.subr.mxu0 0.0
    %797 = vmatpush1.xpose.msra.mxu0 0.0
    %798 = vmatprep.subr.mxu0 0.0
    %799 = vmatpush1.xpose.msra.mxu0 0.0
    %800 = vmatprep.subr.mxu0 0.0
    %801 = vmatpush1.xpose.msra.mxu0 0.0
    %802 = vmatprep.subr.mxu0 0.0
    %803 = vmatpush1.xpose.msra.mxu0 0.0
    %804 = vmatprep.mubr.f32.mxu0 0.0
    %805 = vmatmul.mubr.f32.gmra.mrb[0].mxu0 %v736
    %v806 = vpop.f32.mrb[0].mxu0
    %v807 = vadd.f32 0.0, %v806
    %v808 = vpop.f32.mrb[0].mxu0
    %809 = vdwg.mxu0
    %810 = vrot.lane.b32.xlu0 %v317, 120
    %v811 = vpop.permute.xlu0 %810
    %812 = vrot.lane.b32.xlu0 %v305, 88
    %v813 = vpop.permute.xlu0 %812
    %v814 = vsel %vm321, %v811, 0
    %v816 = vsel %vm321, %v813, 0
    %818 = vmatprep.subr.mxu0 0.0
    %819 = vmatpush1.xpose.msra.mxu0 %v816
    %820 = vmatprep.subr.mxu0 0.0
    %821 = vmatpush1.xpose.msra.mxu0 0.0
    %822 = vmatprep.subr.mxu0 0.0
    %823 = vmatpush1.xpose.msra.mxu0 0.0
    %824 = vmatprep.subr.mxu0 0.0
    %825 = vmatpush1.xpose.msra.mxu0 0.0
    %826 = vmatprep.subr.mxu0 0.0
    %827 = vmatpush1.xpose.msra.mxu0 0.0
    %828 = vmatprep.subr.mxu0 0.0
    %829 = vmatpush1.xpose.msra.mxu0 0.0
    %830 = vmatprep.subr.mxu0 0.0
    %831 = vmatpush1.xpose.msra.mxu0 0.0
    %832 = vmatprep.subr.mxu0 0.0
    %833 = vmatpush1.xpose.msra.mxu0 0.0
    %834 = vmatprep.subr.mxu0 0.0
    %835 = vmatpush1.xpose.msra.mxu0 0.0
    %836 = vmatprep.subr.mxu0 0.0
    %837 = vmatpush1.xpose.msra.mxu0 0.0
    %838 = vmatprep.subr.mxu0 0.0
    %839 = vmatpush1.xpose.msra.mxu0 0.0
    %840 = vmatprep.subr.mxu0 0.0
    %841 = vmatpush1.xpose.msra.mxu0 0.0
    %842 = vmatprep.subr.mxu0 0.0
    %843 = vmatpush1.xpose.msra.mxu0 0.0
    %844 = vmatprep.subr.mxu0 0.0
    %845 = vmatpush1.xpose.msra.mxu0 0.0
    %846 = vmatprep.subr.mxu0 0.0
    %847 = vmatpush1.xpose.msra.mxu0 0.0
    %848 = vmatprep.subr.mxu0 0.0
    %849 = vmatpush1.xpose.msra.mxu0 0.0
    %850 = vmatprep.subr.mxu0 0.0
    %851 = vmatpush1.xpose.msra.mxu0 0.0
    %852 = vmatprep.subr.mxu0 0.0
    %853 = vmatpush1.xpose.msra.mxu0 0.0
    %854 = vmatprep.subr.mxu0 0.0
    %855 = vmatpush1.xpose.msra.mxu0 0.0
    %856 = vmatprep.subr.mxu0 0.0
    %857 = vmatpush1.xpose.msra.mxu0 0.0
    %858 = vmatprep.subr.mxu0 0.0
    %859 = vmatpush1.xpose.msra.mxu0 0.0
    %860 = vmatprep.subr.mxu0 0.0
    %861 = vmatpush1.xpose.msra.mxu0 0.0
    %862 = vmatprep.subr.mxu0 0.0
    %863 = vmatpush1.xpose.msra.mxu0 0.0
    %864 = vmatprep.subr.mxu0 0.0
    %865 = vmatpush1.xpose.msra.mxu0 0.0
    %866 = vmatprep.subr.mxu0 0.0
    %867 = vmatpush1.xpose.msra.mxu0 0.0
    %868 = vmatprep.subr.mxu0 0.0
    %869 = vmatpush1.xpose.msra.mxu0 0.0
    %870 = vmatprep.subr.mxu0 0.0
    %871 = vmatpush1.xpose.msra.mxu0 0.0
    %872 = vmatprep.subr.mxu0 0.0
    %873 = vmatpush1.xpose.msra.mxu0 0.0
    %874 = vmatprep.subr.mxu0 0.0
    %875 = vmatpush1.xpose.msra.mxu0 0.0
    %876 = vmatprep.subr.mxu0 0.0
    %877 = vmatpush1.xpose.msra.mxu0 0.0
    %878 = vmatprep.subr.mxu0 0.0
    %879 = vmatpush1.xpose.msra.mxu0 0.0
    %880 = vmatprep.subr.mxu0 0.0
    %881 = vmatpush1.xpose.msra.mxu0 0.0
    %882 = vmatprep.mubr.f32.mxu0 0.0
    %883 = vmatmul.mubr.f32.gmra.mrb[0].mxu0 %v814
    %v884 = vpop.f32.mrb[0].mxu0
    %v885 = vadd.f32 0.0, %v884
    %v886 = vpop.f32.mrb[0].mxu0
    %887 = vdwg.mxu0
    %v888 = vsel %vm321, %v807, -inf
    %889 = vmax.xlane.f32.xlu0 %v888
    %v890 = vpop.xlane.xlu0 %889
    %v891 = vsel %vm321, %v885, -inf
    %892 = vmax.xlane.f32.xlu0 %v891
    %v893 = vpop.xlane.xlu0 %892
    %v894 = vsub.f32 %v807, %v890
    %v895 = vsub.f32 %v885, %v893
    %v896 = vmul.f32 %v894, 1.442695
    %v897 = vpow.pop %v896
    %v898 = vmul.f32 %v895, 1.442695
    %v899 = vpow.pop %v898
    %v900 = vsel %vm321, %v897, 0.0
    %901 = vadd.xlane.f32.xlu0 %v900
    %v902 = vpop.xlane.xlu0 %901
    %v903 = vsel %vm321, %v899, 0.0
    %904 = vadd.xlane.f32.xlu0 %v903
    %v905 = vpop.xlane.xlu0 %904
    %v906 = vrcp.pop %v902
    %v907 = vrcp.pop %v905
    %v908 = vmul.f32 %v897, %v906
    %v909 = vmul.f32 %v899, %v907
    %910 = vrot.lane.b32.xlu0 %v300, 56
    %v911 = vpop.permute.xlu0 %910
    %v914 = vsel %vm321, %v908, 0
    %916 = vmatprep.subr.mxu0 0.0
    %917 = vmatpush1.msra.mxu0 %v911
    %918 = vmatprep.subr.mxu0 0.0
    %919 = vmatpush1.msra.mxu0 0.0
    %920 = vmatprep.subr.mxu0 0.0
    %921 = vmatpush1.msra.mxu0 0.0
    %922 = vmatprep.subr.mxu0 0.0
    %923 = vmatpush1.msra.mxu0 0.0
    %924 = vmatprep.subr.mxu0 0.0
    %925 = vmatpush1.msra.mxu0 0.0
    %926 = vmatprep.subr.mxu0 0.0
    %927 = vmatpush1.msra.mxu0 0.0
    %928 = vmatprep.subr.mxu0 0.0
    %929 = vmatpush1.msra.mxu0 0.0
    %930 = vmatprep.subr.mxu0 0.0
    %931 = vmatpush1.msra.mxu0 0.0
    %932 = vmatprep.subr.mxu0 0.0
    %933 = vmatpush1.msra.mxu0 0.0
    %934 = vmatprep.subr.mxu0 0.0
    %935 = vmatpush1.msra.mxu0 0.0
    %936 = vmatprep.subr.mxu0 0.0
    %937 = vmatpush1.msra.mxu0 0.0
    %938 = vmatprep.subr.mxu0 0.0
    %939 = vmatpush1.msra.mxu0 0.0
    %940 = vmatprep.subr.mxu0 0.0
    %941 = vmatpush1.msra.mxu0 0.0
    %942 = vmatprep.subr.mxu0 0.0
    %943 = vmatpush1.msra.mxu0 0.0
    %944 = vmatprep.subr.mxu0 0.0
    %945 = vmatpush1.msra.mxu0 0.0
    %946 = vmatprep.subr.mxu0 0.0
    %947 = vmatpush1.msra.mxu0 0.0
    %948 = vmatprep.subr.mxu0 0.0
    %949 = vmatpush1.msra.mxu0 0.0
    %950 = vmatprep.subr.mxu0 0.0
    %951 = vmatpush1.msra.mxu0 0.0
    %952 = vmatprep.subr.mxu0 0.0
    %953 = vmatpush1.msra.mxu0 0.0
    %954 = vmatprep.subr.mxu0 0.0
    %955 = vmatpush1.msra.mxu0 0.0
    %956 = vmatprep.subr.mxu0 0.0
    %957 = vmatpush1.msra.mxu0 0.0
    %958 = vmatprep.subr.mxu0 0.0
    %959 = vmatpush1.msra.mxu0 0.0
    %960 = vmatprep.subr.mxu0 0.0
    %961 = vmatpush1.msra.mxu0 0.0
    %962 = vmatprep.subr.mxu0 0.0
    %963 = vmatpush1.msra.mxu0 0.0
    %964 = vmatprep.subr.mxu0 0.0
    %965 = vmatpush1.msra.mxu0 0.0
    %966 = vmatprep.subr.mxu0 0.0
    %967 = vmatpush1.msra.mxu0 0.0
    %968 = vmatprep.subr.mxu0 0.0
    %969 = vmatpush1.msra.mxu0 0.0
    %970 = vmatprep.subr.mxu0 0.0
    %971 = vmatpush1.msra.mxu0 0.0
    %972 = vmatprep.subr.mxu0 0.0
    %973 = vmatpush1.msra.mxu0 0.0
    %974 = vmatprep.subr.mxu0 0.0
    %975 = vmatpush1.msra.mxu0 0.0
    %976 = vmatprep.subr.mxu0 0.0
    %977 = vmatpush1.msra.mxu0 0.0
    %978 = vmatprep.subr.mxu0 0.0
    %979 = vmatpush1.msra.mxu0 0.0
    %980 = vmatprep.mubr.f32.mxu0 0.0
    %981 = vmatmul.mubr.f32.gmra.mrb[0].mxu0 %v914
    %v982 = vpop.f32.mrb[0].mxu0
    %v983 = vadd.f32 0.0, %v982
    %v984 = vpop.f32.mrb[0].mxu0
    %985 = vdwg.mxu0
    %986 = vrot.lane.b32.xlu0 %v305, 56
    %v987 = vpop.permute.xlu0 %986
    %v990 = vsel %vm321, %v909, 0
    %992 = vmatprep.subr.mxu0 0.0
    %993 = vmatpush1.msra.mxu0 %v987
    %994 = vmatprep.subr.mxu0 0.0
    %995 = vmatpush1.msra.mxu0 0.0
    %996 = vmatprep.subr.mxu0 0.0
    %997 = vmatpush1.msra.mxu0 0.0
    %998 = vmatprep.subr.mxu0 0.0
    %999 = vmatpush1.msra.mxu0 0.0
    %1000 = vmatprep.subr.mxu0 0.0
    %1001 = vmatpush1.msra.mxu0 0.0
    %1002 = vmatprep.subr.mxu0 0.0
    %1003 = vmatpush1.msra.mxu0 0.0
    %1004 = vmatprep.subr.mxu0 0.0
    %1005 = vmatpush1.msra.mxu0 0.0
    %1006 = vmatprep.subr.mxu0 0.0
    %1007 = vmatpush1.msra.mxu0 0.0
    %1008 = vmatprep.subr.mxu0 0.0
    %1009 = vmatpush1.msra.mxu0 0.0
    %1010 = vmatprep.subr.mxu0 0.0
    %1011 = vmatpush1.msra.mxu0 0.0
    %1012 = vmatprep.subr.mxu0 0.0
    %1013 = vmatpush1.msra.mxu0 0.0
    %1014 = vmatprep.subr.mxu0 0.0
    %1015 = vmatpush1.msra.mxu0 0.0
    %1016 = vmatprep.subr.mxu0 0.0
    %1017 = vmatpush1.msra.mxu0 0.0
    %1018 = vmatprep.subr.mxu0 0.0
    %1019 = vmatpush1.msra.mxu0 0.0
    %1020 = vmatprep.subr.mxu0 0.0
    %1021 = vmatpush1.msra.mxu0 0.0
    %1022 = vmatprep.subr.mxu0 0.0
    %1023 = vmatpush1.msra.mxu0 0.0
    %1024 = vmatprep.subr.mxu0 0.0
    %1025 = vmatpush1.msra.mxu0 0.0
    %1026 = vmatprep.subr.mxu0 0.0
    %1027 = vmatpush1.msra.mxu0 0.0
    %1028 = vmatprep.subr.mxu0 0.0
    %1029 = vmatpush1.msra.mxu0 0.0
    %1030 = vmatprep.subr.mxu0 0.0
    %1031 = vmatpush1.msra.mxu0 0.0
    %1032 = vmatprep.subr.mxu0 0.0
    %1033 = vmatpush1.msra.mxu0 0.0
    %1034 = vmatprep.subr.mxu0 0.0
    %1035 = vmatpush1.msra.mxu0 0.0
    %1036 = vmatprep.subr.mxu0 0.0
    %1037 = vmatpush1.msra.mxu0 0.0
    %1038 = vmatprep.subr.mxu0 0.0
    %1039 = vmatpush1.msra.mxu0 0.0
    %1040 = vmatprep.subr.mxu0 0.0
    %1041 = vmatpush1.msra.mxu0 0.0
    %1042 = vmatprep.subr.mxu0 0.0
    %1043 = vmatpush1.msra.mxu0 0.0
    %1044 = vmatprep.subr.mxu0 0.0
    %1045 = vmatpush1.msra.mxu0 0.0
    %1046 = vmatprep.subr.mxu0 0.0
    %1047 = vmatpush1.msra.mxu0 0.0
    %1048 = vmatprep.subr.mxu0 0.0
    %1049 = vmatpush1.msra.mxu0 0.0
    %1050 = vmatprep.subr.mxu0 0.0
    %1051 = vmatpush1.msra.mxu0 0.0
    %1052 = vmatprep.subr.mxu0 0.0
    %1053 = vmatpush1.msra.mxu0 0.0
    %1054 = vmatprep.subr.mxu0 0.0
    %1055 = vmatpush1.msra.mxu0 0.0
    %1056 = vmatprep.mubr.f32.mxu0 0.0
    %1057 = vmatmul.mubr.f32.gmra.mrb[0].mxu0 %v990
    %v1058 = vpop.f32.mrb[0].mxu0
    %v1059 = vadd.f32 0.0, %v1058
    %v1060 = vpop.f32.mrb[0].mxu0
    %1061 = vdwg.mxu0
    %v1063 = vsel %vm321, %v983, 0
    %v1066 = vsel %vm321, %v1059, 0
    %1068 = vmatprep.subr.mxu0 0.0
    %1069 = vmatpush1.msra.mxu0 %v198
    %1070 = vmatprep.subr.mxu0 0.0
    %1071 = vmatpush1.msra.mxu0 0.0
    %1072 = vmatprep.subr.mxu0 0.0
    %1073 = vmatpush1.msra.mxu0 0.0
    %1074 = vmatprep.subr.mxu0 0.0
    %1075 = vmatpush1.msra.mxu0 0.0
    %1076 = vmatprep.subr.mxu0 0.0
    %1077 = vmatpush1.msra.mxu0 0.0
    %1078 = vmatprep.subr.mxu0 0.0
    %1079 = vmatpush1.msra.mxu0 0.0
    %1080 = vmatprep.subr.mxu0 0.0
    %1081 = vmatpush1.msra.mxu0 0.0
    %1082 = vmatprep.subr.mxu0 0.0
    %1083 = vmatpush1.msra.mxu0 0.0
    %1084 = vmatprep.subr.mxu0 0.0
    %1085 = vmatpush1.msra.mxu0 0.0
    %1086 = vmatprep.subr.mxu0 0.0
    %1087 = vmatpush1.msra.mxu0 0.0
    %1088 = vmatprep.subr.mxu0 0.0
    %1089 = vmatpush1.msra.mxu0 0.0
    %1090 = vmatprep.subr.mxu0 0.0
    %1091 = vmatpush1.msra.mxu0 0.0
    %1092 = vmatprep.subr.mxu0 0.0
    %1093 = vmatpush1.msra.mxu0 0.0
    %1094 = vmatprep.subr.mxu0 0.0
    %1095 = vmatpush1.msra.mxu0 0.0
    %1096 = vmatprep.subr.mxu0 0.0
    %1097 = vmatpush1.msra.mxu0 0.0
    %1098 = vmatprep.subr.mxu0 0.0
    %1099 = vmatpush1.msra.mxu0 0.0
    %1100 = vmatprep.subr.mxu0 0.0
    %1101 = vmatpush1.msra.mxu0 0.0
    %1102 = vmatprep.subr.mxu0 0.0
    %1103 = vmatpush1.msra.mxu0 0.0
    %1104 = vmatprep.subr.mxu0 0.0
    %1105 = vmatpush1.msra.mxu0 0.0
    %1106 = vmatprep.subr.mxu0 0.0
    %1107 = vmatpush1.msra.mxu0 0.0
    %1108 = vmatprep.subr.mxu0 0.0
    %1109 = vmatpush1.msra.mxu0 0.0
    %1110 = vmatprep.subr.mxu0 0.0
    %1111 = vmatpush1.msra.mxu0 0.0
    %1112 = vmatprep.subr.mxu0 0.0
    %1113 = vmatpush1.msra.mxu0 0.0
    %1114 = vmatprep.subr.mxu0 0.0
    %1115 = vmatpush1.msra.mxu0 0.0
    %1116 = vmatprep.subr.mxu0 0.0
    %1117 = vmatpush1.msra.mxu0 0.0
    %1118 = vmatprep.subr.mxu0 0.0
    %1119 = vmatpush1.msra.mxu0 0.0
    %1120 = vmatprep.subr.mxu0 0.0
    %1121 = vmatpush1.msra.mxu0 0.0
    %1122 = vmatprep.subr.mxu0 0.0
    %1123 = vmatpush1.msra.mxu0 0.0
    %1124 = vmatprep.subr.mxu0 0.0
    %1125 = vmatpush1.msra.mxu0 0.0
    %1126 = vmatprep.subr.mxu0 0.0
    %1127 = vmatpush1.msra.mxu0 0.0
    %1128 = vmatprep.subr.mxu0 0.0
    %1129 = vmatpush1.msra.mxu0 0.0
    %1130 = vmatprep.subr.mxu0 0.0
    %1131 = vmatpush1.msra.mxu0 0.0
    %1132 = vmatprep.mubr.f32.mxu0 0.0
    %1133 = vmatmul.mubr.f32.gmra.mrb[0].mxu0 %v1063
    %v1134 = vpop.f32.mrb[0].mxu0
    %v1135 = vadd.f32 0.0, %v1134
    %v1136 = vpop.f32.mrb[0].mxu0
    %1137 = vmatprep.mubr.f32.mxu0 0.0
    %1138 = vmatmul.mubr.f32.gmra.mrb[0].mxu0 %v1066
    %v1139 = vpop.f32.mrb[0].mxu0
    %v1140 = vadd.f32 0.0, %v1139
    %v1141 = vpop.f32.mrb[0].mxu0
    %1142 = vdwg.mxu0
    %v1143 = vadd.f32 %v730, %v1135
    %v1144 = vadd.f32 %v731, %v1140
    %1145 = vrot.lane.b32.xlu0 %v316, 112
    %v1146 = vpop.permute.xlu0 %1145
    %1147 = vrot.lane.b32.xlu0 %v300, 80
    %v1148 = vpop.permute.xlu0 %1147
    %v1149 = vsel %vm321, %v1146, 0
    %v1151 = vsel %vm321, %v1148, 0
    %1153 = vmatprep.subr.mxu0 0.0
    %1154 = vmatpush1.xpose.msra.mxu0 %v1151
    %1155 = vmatprep.subr.mxu0 0.0
    %1156 = vmatpush1.xpose.msra.mxu0 0.0
    %1157 = vmatprep.subr.mxu0 0.0
    %1158 = vmatpush1.xpose.msra.mxu0 0.0
    %1159 = vmatprep.subr.mxu0 0.0
    %1160 = vmatpush1.xpose.msra.mxu0 0.0
    %1161 = vmatprep.subr.mxu0 0.0
    %1162 = vmatpush1.xpose.msra.mxu0 0.0
    %1163 = vmatprep.subr.mxu0 0.0
    %1164 = vmatpush1.xpose.msra.mxu0 0.0
    %1165 = vmatprep.subr.mxu0 0.0
    %1166 = vmatpush1.xpose.msra.mxu0 0.0
    %1167 = vmatprep.subr.mxu0 0.0
    %1168 = vmatpush1.xpose.msra.mxu0 0.0
    %1169 = vmatprep.subr.mxu0 0.0
    %1170 = vmatpush1.xpose.msra.mxu0 0.0
    %1171 = vmatprep.subr.mxu0 0.0
    %1172 = vmatpush1.xpose.msra.mxu0 0.0
    %1173 = vmatprep.subr.mxu0 0.0
    %1174 = vmatpush1.xpose.msra.mxu0 0.0
    %1175 = vmatprep.subr.mxu0 0.0
    %1176 = vmatpush1.xpose.msra.mxu0 0.0
    %1177 = vmatprep.subr.mxu0 0.0
    %1178 = vmatpush1.xpose.msra.mxu0 0.0
    %1179 = vmatprep.subr.mxu0 0.0
    %1180 = vmatpush1.xpose.msra.mxu0 0.0
    %1181 = vmatprep.subr.mxu0 0.0
    %1182 = vmatpush1.xpose.msra.mxu0 0.0
    %1183 = vmatprep.subr.mxu0 0.0
    %1184 = vmatpush1.xpose.msra.mxu0 0.0
    %1185 = vmatprep.subr.mxu0 0.0
    %1186 = vmatpush1.xpose.msra.mxu0 0.0
    %1187 = vmatprep.subr.mxu0 0.0
    %1188 = vmatpush1.xpose.msra.mxu0 0.0
    %1189 = vmatprep.subr.mxu0 0.0
    %1190 = vmatpush1.xpose.msra.mxu0 0.0
    %1191 = vmatprep.subr.mxu0 0.0
    %1192 = vmatpush1.xpose.msra.mxu0 0.0
    %1193 = vmatprep.subr.mxu0 0.0
    %1194 = vmatpush1.xpose.msra.mxu0 0.0
    %1195 = vmatprep.subr.mxu0 0.0
    %1196 = vmatpush1.xpose.msra.mxu0 0.0
    %1197 = vmatprep.subr.mxu0 0.0
    %1198 = vmatpush1.xpose.msra.mxu0 0.0
    %1199 = vmatprep.subr.mxu0 0.0
    %1200 = vmatpush1.xpose.msra.mxu0 0.0
    %1201 = vmatprep.subr.mxu0 0.0
    %1202 = vmatpush1.xpose.msra.mxu0 0.0
    %1203 = vmatprep.subr.mxu0 0.0
    %1204 = vmatpush1.xpose.msra.mxu0 0.0
    %1205 = vmatprep.subr.mxu0 0.0
    %1206 = vmatpush1.xpose.msra.mxu0 0.0
    %1207 = vmatprep.subr.mxu0 0.0
    %1208 = vmatpush1.xpose.msra.mxu0 0.0
    %1209 = vmatprep.subr.mxu0 0.0
    %1210 = vmatpush1.xpose.msra.mxu0 0.0
    %1211 = vmatprep.subr.mxu0 0.0
    %1212 = vmatpush1.xpose.msra.mxu0 0.0
    %1213 = vmatprep.subr.mxu0 0.0
    %1214 = vmatpush1.xpose.msra.mxu0 0.0
    %1215 = vmatprep.subr.mxu0 0.0
    %1216 = vmatpush1.xpose.msra.mxu0 0.0
    %1217 = vmatprep.mubr.f32.mxu0 0.0
    %1218 = vmatmul.mubr.f32.gmra.mrb[0].mxu0 %v1149
    %v1219 = vpop.f32.mrb[0].mxu0
    %v1220 = vadd.f32 0.0, %v1219
    %v1221 = vpop.f32.mrb[0].mxu0
    %1222 = vdwg.mxu0
    %1223 = vrot.lane.b32.xlu0 %v317, 112
    %v1224 = vpop.permute.xlu0 %1223
    %1225 = vrot.lane.b32.xlu0 %v305, 80
    %v1226 = vpop.permute.xlu0 %1225
    %v1227 = vsel %vm321, %v1224, 0
    %v1229 = vsel %vm321, %v1226, 0
    %1231 = vmatprep.subr.mxu0 0.0
    %1232 = vmatpush1.xpose.msra.mxu0 %v1229
    %1233 = vmatprep.subr.mxu0 0.0
    %1234 = vmatpush1.xpose.msra.mxu0 0.0
    %1235 = vmatprep.subr.mxu0 0.0
    %1236 = vmatpush1.xpose.msra.mxu0 0.0
    %1237 = vmatprep.subr.mxu0 0.0
    %1238 = vmatpush1.xpose.msra.mxu0 0.0
    %1239 = vmatprep.subr.mxu0 0.0
    %1240 = vmatpush1.xpose.msra.mxu0 0.0
    %1241 = vmatprep.subr.mxu0 0.0
    %1242 = vmatpush1.xpose.msra.mxu0 0.0
    %1243 = vmatprep.subr.mxu0 0.0
    %1244 = vmatpush1.xpose.msra.mxu0 0.0
    %1245 = vmatprep.subr.mxu0 0.0
    %1246 = vmatpush1.xpose.msra.mxu0 0.0
    %1247 = vmatprep.subr.mxu0 0.0
    %1248 = vmatpush1.xpose.msra.mxu0 0.0
    %1249 = vmatprep.subr.mxu0 0.0
    %1250 = vmatpush1.xpose.msra.mxu0 0.0
    %1251 = vmatprep.subr.mxu0 0.0
    %1252 = vmatpush1.xpose.msra.mxu0 0.0
    %1253 = vmatprep.subr.mxu0 0.0
    %1254 = vmatpush1.xpose.msra.mxu0 0.0
    %1255 = vmatprep.subr.mxu0 0.0
    %1256 = vmatpush1.xpose.msra.mxu0 0.0
    %1257 = vmatprep.subr.mxu0 0.0
    %1258 = vmatpush1.xpose.msra.mxu0 0.0
    %1259 = vmatprep.subr.mxu0 0.0
    %1260 = vmatpush1.xpose.msra.mxu0 0.0
    %1261 = vmatprep.subr.mxu0 0.0
    %1262 = vmatpush1.xpose.msra.mxu0 0.0
    %1263 = vmatprep.subr.mxu0 0.0
    %1264 = vmatpush1.xpose.msra.mxu0 0.0
    %1265 = vmatprep.subr.mxu0 0.0
    %1266 = vmatpush1.xpose.msra.mxu0 0.0
    %1267 = vmatprep.subr.mxu0 0.0
    %1268 = vmatpush1.xpose.msra.mxu0 0.0
    %1269 = vmatprep.subr.mxu0 0.0
    %1270 = vmatpush1.xpose.msra.mxu0 0.0
    %1271 = vmatprep.subr.mxu0 0.0
    %1272 = vmatpush1.xpose.msra.mxu0 0.0
    %1273 = vmatprep.subr.mxu0 0.0
    %1274 = vmatpush1.xpose.msra.mxu0 0.0
    %1275 = vmatprep.subr.mxu0 0.0
    %1276 = vmatpush1.xpose.msra.mxu0 0.0
    %1277 = vmatprep.subr.mxu0 0.0
    %1278 = vmatpush1.xpose.msra.mxu0 0.0
    %1279 = vmatprep.subr.mxu0 0.0
    %1280 = vmatpush1.xpose.msra.mxu0 0.0
    %1281 = vmatprep.subr.mxu0 0.0
    %1282 = vmatpush1.xpose.msra.mxu0 0.0
    %1283 = vmatprep.subr.mxu0 0.0
    %1284 = vmatpush1.xpose.msra.mxu0 0.0
    %1285 = vmatprep.subr.mxu0 0.0
    %1286 = vmatpush1.xpose.msra.mxu0 0.0
    %1287 = vmatprep.subr.mxu0 0.0
    %1288 = vmatpush1.xpose.msra.mxu0 0.0
    %1289 = vmatprep.subr.mxu0 0.0
    %1290 = vmatpush1.xpose.msra.mxu0 0.0
    %1291 = vmatprep.subr.mxu0 0.0
    %1292 = vmatpush1.xpose.msra.mxu0 0.0
    %1293 = vmatprep.subr.mxu0 0.0
    %1294 = vmatpush1.xpose.msra.mxu0 0.0
    %1295 = vmatprep.mubr.f32.mxu0 0.0
    %1296 = vmatmul.mubr.f32.gmra.mrb[0].mxu0 %v1227
    %v1297 = vpop.f32.mrb[0].mxu0
    %v1298 = vadd.f32 0.0, %v1297
    %v1299 = vpop.f32.mrb[0].mxu0
    %1300 = vdwg.mxu0
    %v1301 = vsel %vm321, %v1220, -inf
    %1302 = vmax.xlane.f32.xlu0 %v1301
    %v1303 = vpop.xlane.xlu0 %1302
    %v1304 = vsel %vm321, %v1298, -inf
    %1305 = vmax.xlane.f32.xlu0 %v1304
    %v1306 = vpop.xlane.xlu0 %1305
    %v1307 = vsub.f32 %v1220, %v1303
    %v1308 = vsub.f32 %v1298, %v1306
    %v1309 = vmul.f32 %v1307, 1.442695
    %v1310 = vpow.pop %v1309
    %v1311 = vmul.f32 %v1308, 1.442695
    %v1312 = vpow.pop %v1311
    %v1313 = vsel %vm321, %v1310, 0.0
    %1314 = vadd.xlane.f32.xlu0 %v1313
    %v1315 = vpop.xlane.xlu0 %1314
    %v1316 = vsel %vm321, %v1312, 0.0
    %1317 = vadd.xlane.f32.xlu0 %v1316
    %v1318 = vpop.xlane.xlu0 %1317
    %v1319 = vrcp.pop %v1315
    %v1320 = vrcp.pop %v1318
    %v1321 = vmul.f32 %v1310, %v1319
    %v1322 = vmul.f32 %v1312, %v1320
    %1323 = vrot.lane.b32.xlu0 %v300, 48
    %v1324 = vpop.permute.xlu0 %1323
    %v1327 = vsel %vm321, %v1321, 0
    %1329 = vmatprep.subr.mxu0 0.0
    %1330 = vmatpush1.msra.mxu0 %v1324
    %1331 = vmatprep.subr.mxu0 0.0
    %1332 = vmatpush1.msra.mxu0 0.0
    %1333 = vmatprep.subr.mxu0 0.0
    %1334 = vmatpush1.msra.mxu0 0.0
    %1335 = vmatprep.subr.mxu0 0.0
    %1336 = vmatpush1.msra.mxu0 0.0
    %1337 = vmatprep.subr.mxu0 0.0
    %1338 = vmatpush1.msra.mxu0 0.0
    %1339 = vmatprep.subr.mxu0 0.0
    %1340 = vmatpush1.msra.mxu0 0.0
    %1341 = vmatprep.subr.mxu0 0.0
    %1342 = vmatpush1.msra.mxu0 0.0
    %1343 = vmatprep.subr.mxu0 0.0
    %1344 = vmatpush1.msra.mxu0 0.0
    %1345 = vmatprep.subr.mxu0 0.0
    %1346 = vmatpush1.msra.mxu0 0.0
    %1347 = vmatprep.subr.mxu0 0.0
    %1348 = vmatpush1.msra.mxu0 0.0
    %1349 = vmatprep.subr.mxu0 0.0
    %1350 = vmatpush1.msra.mxu0 0.0
    %1351 = vmatprep.subr.mxu0 0.0
    %1352 = vmatpush1.msra.mxu0 0.0
    %1353 = vmatprep.subr.mxu0 0.0
    %1354 = vmatpush1.msra.mxu0 0.0
    %1355 = vmatprep.subr.mxu0 0.0
    %1356 = vmatpush1.msra.mxu0 0.0
    %1357 = vmatprep.subr.mxu0 0.0
    %1358 = vmatpush1.msra.mxu0 0.0
    %1359 = vmatprep.subr.mxu0 0.0
    %1360 = vmatpush1.msra.mxu0 0.0
    %1361 = vmatprep.subr.mxu0 0.0
    %1362 = vmatpush1.msra.mxu0 0.0
    %1363 = vmatprep.subr.mxu0 0.0
    %1364 = vmatpush1.msra.mxu0 0.0
    %1365 = vmatprep.subr.mxu0 0.0
    %1366 = vmatpush1.msra.mxu0 0.0
    %1367 = vmatprep.subr.mxu0 0.0
    %1368 = vmatpush1.msra.mxu0 0.0
    %1369 = vmatprep.subr.mxu0 0.0
    %1370 = vmatpush1.msra.mxu0 0.0
    %1371 = vmatprep.subr.mxu0 0.0
    %1372 = vmatpush1.msra.mxu0 0.0
    %1373 = vmatprep.subr.mxu0 0.0
    %1374 = vmatpush1.msra.mxu0 0.0
    %1375 = vmatprep.subr.mxu0 0.0
    %1376 = vmatpush1.msra.mxu0 0.0
    %1377 = vmatprep.subr.mxu0 0.0
    %1378 = vmatpush1.msra.mxu0 0.0
    %1379 = vmatprep.subr.mxu0 0.0
    %1380 = vmatpush1.msra.mxu0 0.0
    %1381 = vmatprep.subr.mxu0 0.0
    %1382 = vmatpush1.msra.mxu0 0.0
    %1383 = vmatprep.subr.mxu0 0.0
    %1384 = vmatpush1.msra.mxu0 0.0
    %1385 = vmatprep.subr.mxu0 0.0
    %1386 = vmatpush1.msra.mxu0 0.0
    %1387 = vmatprep.subr.mxu0 0.0
    %1388 = vmatpush1.msra.mxu0 0.0
    %1389 = vmatprep.subr.mxu0 0.0
    %1390 = vmatpush1.msra.mxu0 0.0
    %1391 = vmatprep.subr.mxu0 0.0
    %1392 = vmatpush1.msra.mxu0 0.0
    %1393 = vmatprep.mubr.f32.mxu0 0.0
    %1394 = vmatmul.mubr.f32.gmra.mrb[0].mxu0 %v1327
    %v1395 = vpop.f32.mrb[0].mxu0
    %v1396 = vadd.f32 0.0, %v1395
    %v1397 = vpop.f32.mrb[0].mxu0
    %1398 = vdwg.mxu0
    %1399 = vrot.lane.b32.xlu0 %v305, 48
    %v1400 = vpop.permute.xlu0 %1399
    %v1403 = vsel %vm321, %v1322, 0
    %1405 = vmatprep.subr.mxu0 0.0
    %1406 = vmatpush1.msra.mxu0 %v1400
    %1407 = vmatprep.subr.mxu0 0.0
    %1408 = vmatpush1.msra.mxu0 0.0
    %1409 = vmatprep.subr.mxu0 0.0
    %1410 = vmatpush1.msra.mxu0 0.0
    %1411 = vmatprep.subr.mxu0 0.0
    %1412 = vmatpush1.msra.mxu0 0.0
    %1413 = vmatprep.subr.mxu0 0.0
    %1414 = vmatpush1.msra.mxu0 0.0
    %1415 = vmatprep.subr.mxu0 0.0
    %1416 = vmatpush1.msra.mxu0 0.0
    %1417 = vmatprep.subr.mxu0 0.0
    %1418 = vmatpush1.msra.mxu0 0.0
    %1419 = vmatprep.subr.mxu0 0.0
    %1420 = vmatpush1.msra.mxu0 0.0
    %1421 = vmatprep.subr.mxu0 0.0
    %1422 = vmatpush1.msra.mxu0 0.0
    %1423 = vmatprep.subr.mxu0 0.0
    %1424 = vmatpush1.msra.mxu0 0.0
    %1425 = vmatprep.subr.mxu0 0.0
    %1426 = vmatpush1.msra.mxu0 0.0
    %1427 = vmatprep.subr.mxu0 0.0
    %1428 = vmatpush1.msra.mxu0 0.0
    %1429 = vmatprep.subr.mxu0 0.0
    %1430 = vmatpush1.msra.mxu0 0.0
    %1431 = vmatprep.subr.mxu0 0.0
    %1432 = vmatpush1.msra.mxu0 0.0
    %1433 = vmatprep.subr.mxu0 0.0
    %1434 = vmatpush1.msra.mxu0 0.0
    %1435 = vmatprep.subr.mxu0 0.0
    %1436 = vmatpush1.msra.mxu0 0.0
    %1437 = vmatprep.subr.mxu0 0.0
    %1438 = vmatpush1.msra.mxu0 0.0
    %1439 = vmatprep.subr.mxu0 0.0
    %1440 = vmatpush1.msra.mxu0 0.0
    %1441 = vmatprep.subr.mxu0 0.0
    %1442 = vmatpush1.msra.mxu0 0.0
    %1443 = vmatprep.subr.mxu0 0.0
    %1444 = vmatpush1.msra.mxu0 0.0
    %1445 = vmatprep.subr.mxu0 0.0
    %1446 = vmatpush1.msra.mxu0 0.0
    %1447 = vmatprep.subr.mxu0 0.0
    %1448 = vmatpush1.msra.mxu0 0.0
    %1449 = vmatprep.subr.mxu0 0.0
    %1450 = vmatpush1.msra.mxu0 0.0
    %1451 = vmatprep.subr.mxu0 0.0
    %1452 = vmatpush1.msra.mxu0 0.0
    %1453 = vmatprep.subr.mxu0 0.0
    %1454 = vmatpush1.msra.mxu0 0.0
    %1455 = vmatprep.subr.mxu0 0.0
    %1456 = vmatpush1.msra.mxu0 0.0
    %1457 = vmatprep.subr.mxu0 0.0
    %1458 = vmatpush1.msra.mxu0 0.0
    %1459 = vmatprep.subr.mxu0 0.0
    %1460 = vmatpush1.msra.mxu0 0.0
    %1461 = vmatprep.subr.mxu0 0.0
    %1462 = vmatpush1.msra.mxu0 0.0
    %1463 = vmatprep.subr.mxu0 0.0
    %1464 = vmatpush1.msra.mxu0 0.0
    %1465 = vmatprep.subr.mxu0 0.0
    %1466 = vmatpush1.msra.mxu0 0.0
    %1467 = vmatprep.subr.mxu0 0.0
    %1468 = vmatpush1.msra.mxu0 0.0
    %1469 = vmatprep.mubr.f32.mxu0 0.0
    %1470 = vmatmul.mubr.f32.gmra.mrb[0].mxu0 %v1403
    %v1471 = vpop.f32.mrb[0].mxu0
    %v1472 = vadd.f32 0.0, %v1471
    %v1473 = vpop.f32.mrb[0].mxu0
    %1474 = vdwg.mxu0
    %v1476 = vsel %vm321, %v1396, 0
    %v1479 = vsel %vm321, %v1472, 0
    %1481 = vmatprep.subr.mxu0 0.0
    %1482 = vmatpush1.msra.mxu0 %v199
    %1483 = vmatprep.subr.mxu0 0.0
    %1484 = vmatpush1.msra.mxu0 0.0
    %1485 = vmatprep.subr.mxu0 0.0
    %1486 = vmatpush1.msra.mxu0 0.0
    %1487 = vmatprep.subr.mxu0 0.0
    %1488 = vmatpush1.msra.mxu0 0.0
    %1489 = vmatprep.subr.mxu0 0.0
    %1490 = vmatpush1.msra.mxu0 0.0
    %1491 = vmatprep.subr.mxu0 0.0
    %1492 = vmatpush1.msra.mxu0 0.0
    %1493 = vmatprep.subr.mxu0 0.0
    %1494 = vmatpush1.msra.mxu0 0.0
    %1495 = vmatprep.subr.mxu0 0.0
    %1496 = vmatpush1.msra.mxu0 0.0
    %1497 = vmatprep.subr.mxu0 0.0
    %1498 = vmatpush1.msra.mxu0 0.0
    %1499 = vmatprep.subr.mxu0 0.0
    %1500 = vmatpush1.msra.mxu0 0.0
    %1501 = vmatprep.subr.mxu0 0.0
    %1502 = vmatpush1.msra.mxu0 0.0
    %1503 = vmatprep.subr.mxu0 0.0
    %1504 = vmatpush1.msra.mxu0 0.0
    %1505 = vmatprep.subr.mxu0 0.0
    %1506 = vmatpush1.msra.mxu0 0.0
    %1507 = vmatprep.subr.mxu0 0.0
    %1508 = vmatpush1.msra.mxu0 0.0
    %1509 = vmatprep.subr.mxu0 0.0
    %1510 = vmatpush1.msra.mxu0 0.0
    %1511 = vmatprep.subr.mxu0 0.0
    %1512 = vmatpush1.msra.mxu0 0.0
    %1513 = vmatprep.subr.mxu0 0.0
    %1514 = vmatpush1.msra.mxu0 0.0
    %1515 = vmatprep.subr.mxu0 0.0
    %1516 = vmatpush1.msra.mxu0 0.0
    %1517 = vmatprep.subr.mxu0 0.0
    %1518 = vmatpush1.msra.mxu0 0.0
    %1519 = vmatprep.subr.mxu0 0.0
    %1520 = vmatpush1.msra.mxu0 0.0
    %1521 = vmatprep.subr.mxu0 0.0
    %1522 = vmatpush1.msra.mxu0 0.0
    %1523 = vmatprep.subr.mxu0 0.0
    %1524 = vmatpush1.msra.mxu0 0.0
    %1525 = vmatprep.subr.mxu0 0.0
    %1526 = vmatpush1.msra.mxu0 0.0
    %1527 = vmatprep.subr.mxu0 0.0
    %1528 = vmatpush1.msra.mxu0 0.0
    %1529 = vmatprep.subr.mxu0 0.0
    %1530 = vmatpush1.msra.mxu0 0.0
    %1531 = vmatprep.subr.mxu0 0.0
    %1532 = vmatpush1.msra.mxu0 0.0
    %1533 = vmatprep.subr.mxu0 0.0
    %1534 = vmatpush1.msra.mxu0 0.0
    %1535 = vmatprep.subr.mxu0 0.0
    %1536 = vmatpush1.msra.mxu0 0.0
    %1537 = vmatprep.subr.mxu0 0.0
    %1538 = vmatpush1.msra.mxu0 0.0
    %1539 = vmatprep.subr.mxu0 0.0
    %1540 = vmatpush1.msra.mxu0 0.0
    %1541 = vmatprep.subr.mxu0 0.0
    %1542 = vmatpush1.msra.mxu0 0.0
    %1543 = vmatprep.subr.mxu0 0.0
    %1544 = vmatpush1.msra.mxu0 0.0
    %1545 = vmatprep.mubr.f32.mxu0 0.0
    %1546 = vmatmul.mubr.f32.gmra.mrb[0].mxu0 %v1476
    %v1547 = vpop.f32.mrb[0].mxu0
    %v1548 = vadd.f32 0.0, %v1547
    %v1549 = vpop.f32.mrb[0].mxu0
    %1550 = vmatprep.mubr.f32.mxu0 0.0
    %1551 = vmatmul.mubr.f32.gmra.mrb[0].mxu0 %v1479
    %v1552 = vpop.f32.mrb[0].mxu0
    %v1553 = vadd.f32 0.0, %v1552
    %v1554 = vpop.f32.mrb[0].mxu0
    %1555 = vdwg.mxu0
    %v1556 = vadd.f32 %v1143, %v1548
    %v1557 = vadd.f32 %v1144, %v1553
    %1558 = vrot.lane.b32.xlu0 %v316, 104
    %v1559 = vpop.permute.xlu0 %1558
    %1560 = vrot.lane.b32.xlu0 %v300, 72
    %v1561 = vpop.permute.xlu0 %1560
    %v1562 = vsel %vm321, %v1559, 0
    %v1564 = vsel %vm321, %v1561, 0
    %1566 = vmatprep.subr.mxu0 0.0
    %1567 = vmatpush1.xpose.msra.mxu0 %v1564
    %1568 = vmatprep.subr.mxu0 0.0
    %1569 = vmatpush1.xpose.msra.mxu0 0.0
    %1570 = vmatprep.subr.mxu0 0.0
    %1571 = vmatpush1.xpose.msra.mxu0 0.0
    %1572 = vmatprep.subr.mxu0 0.0
    %1573 = vmatpush1.xpose.msra.mxu0 0.0
    %1574 = vmatprep.subr.mxu0 0.0
    %1575 = vmatpush1.xpose.msra.mxu0 0.0
    %1576 = vmatprep.subr.mxu0 0.0
    %1577 = vmatpush1.xpose.msra.mxu0 0.0
    %1578 = vmatprep.subr.mxu0 0.0
    %1579 = vmatpush1.xpose.msra.mxu0 0.0
    %1580 = vmatprep.subr.mxu0 0.0
    %1581 = vmatpush1.xpose.msra.mxu0 0.0
    %1582 = vmatprep.subr.mxu0 0.0
    %1583 = vmatpush1.xpose.msra.mxu0 0.0
    %1584 = vmatprep.subr.mxu0 0.0
    %1585 = vmatpush1.xpose.msra.mxu0 0.0
    %1586 = vmatprep.subr.mxu0 0.0
    %1587 = vmatpush1.xpose.msra.mxu0 0.0
    %1588 = vmatprep.subr.mxu0 0.0
    %1589 = vmatpush1.xpose.msra.mxu0 0.0
    %1590 = vmatprep.subr.mxu0 0.0
    %1591 = vmatpush1.xpose.msra.mxu0 0.0
    %1592 = vmatprep.subr.mxu0 0.0
    %1593 = vmatpush1.xpose.msra.mxu0 0.0
    %1594 = vmatprep.subr.mxu0 0.0
    %1595 = vmatpush1.xpose.msra.mxu0 0.0
    %1596 = vmatprep.subr.mxu0 0.0
    %1597 = vmatpush1.xpose.msra.mxu0 0.0
    %1598 = vmatprep.subr.mxu0 0.0
    %1599 = vmatpush1.xpose.msra.mxu0 0.0
    %1600 = vmatprep.subr.mxu0 0.0
    %1601 = vmatpush1.xpose.msra.mxu0 0.0
    %1602 = vmatprep.subr.mxu0 0.0
    %1603 = vmatpush1.xpose.msra.mxu0 0.0
    %1604 = vmatprep.subr.mxu0 0.0
    %1605 = vmatpush1.xpose.msra.mxu0 0.0
    %1606 = vmatprep.subr.mxu0 0.0
    %1607 = vmatpush1.xpose.msra.mxu0 0.0
    %1608 = vmatprep.subr.mxu0 0.0
    %1609 = vmatpush1.xpose.msra.mxu0 0.0
    %1610 = vmatprep.subr.mxu0 0.0
    %1611 = vmatpush1.xpose.msra.mxu0 0.0
    %1612 = vmatprep.subr.mxu0 0.0
    %1613 = vmatpush1.xpose.msra.mxu0 0.0
    %1614 = vmatprep.subr.mxu0 0.0
    %1615 = vmatpush1.xpose.msra.mxu0 0.0
    %1616 = vmatprep.subr.mxu0 0.0
    %1617 = vmatpush1.xpose.msra.mxu0 0.0
    %1618 = vmatprep.subr.mxu0 0.0
    %1619 = vmatpush1.xpose.msra.mxu0 0.0
    %1620 = vmatprep.subr.mxu0 0.0
    %1621 = vmatpush1.xpose.msra.mxu0 0.0
    %1622 = vmatprep.subr.mxu0 0.0
    %1623 = vmatpush1.xpose.msra.mxu0 0.0
    %1624 = vmatprep.subr.mxu0 0.0
    %1625 = vmatpush1.xpose.msra.mxu0 0.0
    %1626 = vmatprep.subr.mxu0 0.0
    %1627 = vmatpush1.xpose.msra.mxu0 0.0
    %1628 = vmatprep.subr.mxu0 0.0
    %1629 = vmatpush1.xpose.msra.mxu0 0.0
    %1630 = vmatprep.mubr.f32.mxu0 0.0
    %1631 = vmatmul.mubr.f32.gmra.mrb[0].mxu0 %v1562
    %v1632 = vpop.f32.mrb[0].mxu0
    %v1633 = vadd.f32 0.0, %v1632
    %v1634 = vpop.f32.mrb[0].mxu0
    %1635 = vdwg.mxu0
    %1636 = vrot.lane.b32.xlu0 %v317, 104
    %v1637 = vpop.permute.xlu0 %1636
    %1638 = vrot.lane.b32.xlu0 %v305, 72
    %v1639 = vpop.permute.xlu0 %1638
    %v1640 = vsel %vm321, %v1637, 0
    %v1642 = vsel %vm321, %v1639, 0
    %1644 = vmatprep.subr.mxu0 0.0
    %1645 = vmatpush1.xpose.msra.mxu0 %v1642
    %1646 = vmatprep.subr.mxu0 0.0
    %1647 = vmatpush1.xpose.msra.mxu0 0.0
    %1648 = vmatprep.subr.mxu0 0.0
    %1649 = vmatpush1.xpose.msra.mxu0 0.0
    %1650 = vmatprep.subr.mxu0 0.0
    %1651 = vmatpush1.xpose.msra.mxu0 0.0
    %1652 = vmatprep.subr.mxu0 0.0
    %1653 = vmatpush1.xpose.msra.mxu0 0.0
    %1654 = vmatprep.subr.mxu0 0.0
    %1655 = vmatpush1.xpose.msra.mxu0 0.0
    %1656 = vmatprep.subr.mxu0 0.0
    %1657 = vmatpush1.xpose.msra.mxu0 0.0
    %1658 = vmatprep.subr.mxu0 0.0
    %1659 = vmatpush1.xpose.msra.mxu0 0.0
    %1660 = vmatprep.subr.mxu0 0.0
    %1661 = vmatpush1.xpose.msra.mxu0 0.0
    %1662 = vmatprep.subr.mxu0 0.0
    %1663 = vmatpush1.xpose.msra.mxu0 0.0
    %1664 = vmatprep.subr.mxu0 0.0
    %1665 = vmatpush1.xpose.msra.mxu0 0.0
    %1666 = vmatprep.subr.mxu0 0.0
    %1667 = vmatpush1.xpose.msra.mxu0 0.0
    %1668 = vmatprep.subr.mxu0 0.0
    %1669 = vmatpush1.xpose.msra.mxu0 0.0
    %1670 = vmatprep.subr.mxu0 0.0
    %1671 = vmatpush1.xpose.msra.mxu0 0.0
    %1672 = vmatprep.subr.mxu0 0.0
    %1673 = vmatpush1.xpose.msra.mxu0 0.0
    %1674 = vmatprep.subr.mxu0 0.0
    %1675 = vmatpush1.xpose.msra.mxu0 0.0
    %1676 = vmatprep.subr.mxu0 0.0
    %1677 = vmatpush1.xpose.msra.mxu0 0.0
    %1678 = vmatprep.subr.mxu0 0.0
    %1679 = vmatpush1.xpose.msra.mxu0 0.0
    %1680 = vmatprep.subr.mxu0 0.0
    %1681 = vmatpush1.xpose.msra.mxu0 0.0
    %1682 = vmatprep.subr.mxu0 0.0
    %1683 = vmatpush1.xpose.msra.mxu0 0.0
    %1684 = vmatprep.subr.mxu0 0.0
    %1685 = vmatpush1.xpose.msra.mxu0 0.0
    %1686 = vmatprep.subr.mxu0 0.0
    %1687 = vmatpush1.xpose.msra.mxu0 0.0
    %1688 = vmatprep.subr.mxu0 0.0
    %1689 = vmatpush1.xpose.msra.mxu0 0.0
    %1690 = vmatprep.subr.mxu0 0.0
    %1691 = vmatpush1.xpose.msra.mxu0 0.0
    %1692 = vmatprep.subr.mxu0 0.0
    %1693 = vmatpush1.xpose.msra.mxu0 0.0
    %1694 = vmatprep.subr.mxu0 0.0
    %1695 = vmatpush1.xpose.msra.mxu0 0.0
    %1696 = vmatprep.subr.mxu0 0.0
    %1697 = vmatpush1.xpose.msra.mxu0 0.0
    %1698 = vmatprep.subr.mxu0 0.0
    %1699 = vmatpush1.xpose.msra.mxu0 0.0
    %1700 = vmatprep.subr.mxu0 0.0
    %1701 = vmatpush1.xpose.msra.mxu0 0.0
    %1702 = vmatprep.subr.mxu0 0.0
    %1703 = vmatpush1.xpose.msra.mxu0 0.0
    %1704 = vmatprep.subr.mxu0 0.0
    %1705 = vmatpush1.xpose.msra.mxu0 0.0
    %1706 = vmatprep.subr.mxu0 0.0
    %1707 = vmatpush1.xpose.msra.mxu0 0.0
    %1708 = vmatprep.mubr.f32.mxu0 0.0
    %1709 = vmatmul.mubr.f32.gmra.mrb[0].mxu0 %v1640
    %v1710 = vpop.f32.mrb[0].mxu0
    %v1711 = vadd.f32 0.0, %v1710
    %v1712 = vpop.f32.mrb[0].mxu0
    %1713 = vdwg.mxu0
    %v1714 = vsel %vm321, %v1633, -inf
    %1715 = vmax.xlane.f32.xlu0 %v1714
    %v1716 = vpop.xlane.xlu0 %1715
    %v1717 = vsel %vm321, %v1711, -inf
    %1718 = vmax.xlane.f32.xlu0 %v1717
    %v1719 = vpop.xlane.xlu0 %1718
    %v1720 = vsub.f32 %v1633, %v1716
    %v1721 = vsub.f32 %v1711, %v1719
    %v1722 = vmul.f32 %v1720, 1.442695
    %v1723 = vpow.pop %v1722
    %v1724 = vmul.f32 %v1721, 1.442695
    %v1725 = vpow.pop %v1724
    %v1726 = vsel %vm321, %v1723, 0.0
    %1727 = vadd.xlane.f32.xlu0 %v1726
    %v1728 = vpop.xlane.xlu0 %1727
    %v1729 = vsel %vm321, %v1725, 0.0
    %1730 = vadd.xlane.f32.xlu0 %v1729
    %v1731 = vpop.xlane.xlu0 %1730
    %v1732 = vrcp.pop %v1728
    %v1733 = vrcp.pop %v1731
    %v1734 = vmul.f32 %v1723, %v1732
    %v1735 = vmul.f32 %v1725, %v1733
    %1736 = vrot.lane.b32.xlu0 %v300, 40
    %v1737 = vpop.permute.xlu0 %1736
    %v1740 = vsel %vm321, %v1734, 0
    %1742 = vmatprep.subr.mxu0 0.0
    %1743 = vmatpush1.msra.mxu0 %v1737
    %1744 = vmatprep.subr.mxu0 0.0
    %1745 = vmatpush1.msra.mxu0 0.0
    %1746 = vmatprep.subr.mxu0 0.0
    %1747 = vmatpush1.msra.mxu0 0.0
    %1748 = vmatprep.subr.mxu0 0.0
    %1749 = vmatpush1.msra.mxu0 0.0
    %1750 = vmatprep.subr.mxu0 0.0
    %1751 = vmatpush1.msra.mxu0 0.0
    %1752 = vmatprep.subr.mxu0 0.0
    %1753 = vmatpush1.msra.mxu0 0.0
    %1754 = vmatprep.subr.mxu0 0.0
    %1755 = vmatpush1.msra.mxu0 0.0
    %1756 = vmatprep.subr.mxu0 0.0
    %1757 = vmatpush1.msra.mxu0 0.0
    %1758 = vmatprep.subr.mxu0 0.0
    %1759 = vmatpush1.msra.mxu0 0.0
    %1760 = vmatprep.subr.mxu0 0.0
    %1761 = vmatpush1.msra.mxu0 0.0
    %1762 = vmatprep.subr.mxu0 0.0
    %1763 = vmatpush1.msra.mxu0 0.0
    %1764 = vmatprep.subr.mxu0 0.0
    %1765 = vmatpush1.msra.mxu0 0.0
    %1766 = vmatprep.subr.mxu0 0.0
    %1767 = vmatpush1.msra.mxu0 0.0
    %1768 = vmatprep.subr.mxu0 0.0
    %1769 = vmatpush1.msra.mxu0 0.0
    %1770 = vmatprep.subr.mxu0 0.0
    %1771 = vmatpush1.msra.mxu0 0.0
    %1772 = vmatprep.subr.mxu0 0.0
    %1773 = vmatpush1.msra.mxu0 0.0
    %1774 = vmatprep.subr.mxu0 0.0
    %1775 = vmatpush1.msra.mxu0 0.0
    %1776 = vmatprep.subr.mxu0 0.0
    %1777 = vmatpush1.msra.mxu0 0.0
    %1778 = vmatprep.subr.mxu0 0.0
    %1779 = vmatpush1.msra.mxu0 0.0
    %1780 = vmatprep.subr.mxu0 0.0
    %1781 = vmatpush1.msra.mxu0 0.0
    %1782 = vmatprep.subr.mxu0 0.0
    %1783 = vmatpush1.msra.mxu0 0.0
    %1784 = vmatprep.subr.mxu0 0.0
    %1785 = vmatpush1.msra.mxu0 0.0
    %1786 = vmatprep.subr.mxu0 0.0
    %1787 = vmatpush1.msra.mxu0 0.0
    %1788 = vmatprep.subr.mxu0 0.0
    %1789 = vmatpush1.msra.mxu0 0.0
    %1790 = vmatprep.subr.mxu0 0.0
    %1791 = vmatpush1.msra.mxu0 0.0
    %1792 = vmatprep.subr.mxu0 0.0
    %1793 = vmatpush1.msra.mxu0 0.0
    %1794 = vmatprep.subr.mxu0 0.0
    %1795 = vmatpush1.msra.mxu0 0.0
    %1796 = vmatprep.subr.mxu0 0.0
    %1797 = vmatpush1.msra.mxu0 0.0
    %1798 = vmatprep.subr.mxu0 0.0
    %1799 = vmatpush1.msra.mxu0 0.0
    %1800 = vmatprep.subr.mxu0 0.0
    %1801 = vmatpush1.msra.mxu0 0.0
    %1802 = vmatprep.subr.mxu0 0.0
    %1803 = vmatpush1.msra.mxu0 0.0
    %1804 = vmatprep.subr.mxu0 0.0
    %1805 = vmatpush1.msra.mxu0 0.0
    %1806 = vmatprep.mubr.f32.mxu0 0.0
    %1807 = vmatmul.mubr.f32.gmra.mrb[0].mxu0 %v1740
    %v1808 = vpop.f32.mrb[0].mxu0
    %v1809 = vadd.f32 0.0, %v1808
    %v1810 = vpop.f32.mrb[0].mxu0
    %1811 = vdwg.mxu0
    %1812 = vrot.lane.b32.xlu0 %v305, 40
    %v1813 = vpop.permute.xlu0 %1812
    %v1816 = vsel %vm321, %v1735, 0
    %1818 = vmatprep.subr.mxu0 0.0
    %1819 = vmatpush1.msra.mxu0 %v1813
    %1820 = vmatprep.subr.mxu0 0.0
    %1821 = vmatpush1.msra.mxu0 0.0
    %1822 = vmatprep.subr.mxu0 0.0
    %1823 = vmatpush1.msra.mxu0 0.0
    %1824 = vmatprep.subr.mxu0 0.0
    %1825 = vmatpush1.msra.mxu0 0.0
    %1826 = vmatprep.subr.mxu0 0.0
    %1827 = vmatpush1.msra.mxu0 0.0
    %1828 = vmatprep.subr.mxu0 0.0
    %1829 = vmatpush1.msra.mxu0 0.0
    %1830 = vmatprep.subr.mxu0 0.0
    %1831 = vmatpush1.msra.mxu0 0.0
    %1832 = vmatprep.subr.mxu0 0.0
    %1833 = vmatpush1.msra.mxu0 0.0
    %1834 = vmatprep.subr.mxu0 0.0
    %1835 = vmatpush1.msra.mxu0 0.0
    %1836 = vmatprep.subr.mxu0 0.0
    %1837 = vmatpush1.msra.mxu0 0.0
    %1838 = vmatprep.subr.mxu0 0.0
    %1839 = vmatpush1.msra.mxu0 0.0
    %1840 = vmatprep.subr.mxu0 0.0
    %1841 = vmatpush1.msra.mxu0 0.0
    %1842 = vmatprep.subr.mxu0 0.0
    %1843 = vmatpush1.msra.mxu0 0.0
    %1844 = vmatprep.subr.mxu0 0.0
    %1845 = vmatpush1.msra.mxu0 0.0
    %1846 = vmatprep.subr.mxu0 0.0
    %1847 = vmatpush1.msra.mxu0 0.0
    %1848 = vmatprep.subr.mxu0 0.0
    %1849 = vmatpush1.msra.mxu0 0.0
    %1850 = vmatprep.subr.mxu0 0.0
    %1851 = vmatpush1.msra.mxu0 0.0
    %1852 = vmatprep.subr.mxu0 0.0
    %1853 = vmatpush1.msra.mxu0 0.0
    %1854 = vmatprep.subr.mxu0 0.0
    %1855 = vmatpush1.msra.mxu0 0.0
    %1856 = vmatprep.subr.mxu0 0.0
    %1857 = vmatpush1.msra.mxu0 0.0
    %1858 = vmatprep.subr.mxu0 0.0
    %1859 = vmatpush1.msra.mxu0 0.0
    %1860 = vmatprep.subr.mxu0 0.0
    %1861 = vmatpush1.msra.mxu0 0.0
    %1862 = vmatprep.subr.mxu0 0.0
    %1863 = vmatpush1.msra.mxu0 0.0
    %1864 = vmatprep.subr.mxu0 0.0
    %1865 = vmatpush1.msra.mxu0 0.0
    %1866 = vmatprep.subr.mxu0 0.0
    %1867 = vmatpush1.msra.mxu0 0.0
    %1868 = vmatprep.subr.mxu0 0.0
    %1869 = vmatpush1.msra.mxu0 0.0
    %1870 = vmatprep.subr.mxu0 0.0
    %1871 = vmatpush1.msra.mxu0 0.0
    %1872 = vmatprep.subr.mxu0 0.0
    %1873 = vmatpush1.msra.mxu0 0.0
    %1874 = vmatprep.subr.mxu0 0.0
    %1875 = vmatpush1.msra.mxu0 0.0
    %1876 = vmatprep.subr.mxu0 0.0
    %1877 = vmatpush1.msra.mxu0 0.0
    %1878 = vmatprep.subr.mxu0 0.0
    %1879 = vmatpush1.msra.mxu0 0.0
    %1880 = vmatprep.subr.mxu0 0.0
    %1881 = vmatpush1.msra.mxu0 0.0
    %1882 = vmatprep.mubr.f32.mxu0 0.0
    %1883 = vmatmul.mubr.f32.gmra.mrb[0].mxu0 %v1816
    %v1884 = vpop.f32.mrb[0].mxu0
    %v1885 = vadd.f32 0.0, %v1884
    %v1886 = vpop.f32.mrb[0].mxu0
    %1887 = vdwg.mxu0
    %v1889 = vsel %vm321, %v1809, 0
    %v1892 = vsel %vm321, %v1885, 0
    %1894 = vmatprep.subr.mxu0 0.0
    %1895 = vmatpush1.msra.mxu0 %v200
    %1896 = vmatprep.subr.mxu0 0.0
    %1897 = vmatpush1.msra.mxu0 0.0
    %1898 = vmatprep.subr.mxu0 0.0
    %1899 = vmatpush1.msra.mxu0 0.0
    %1900 = vmatprep.subr.mxu0 0.0
    %1901 = vmatpush1.msra.mxu0 0.0
    %1902 = vmatprep.subr.mxu0 0.0
    %1903 = vmatpush1.msra.mxu0 0.0
    %1904 = vmatprep.subr.mxu0 0.0
    %1905 = vmatpush1.msra.mxu0 0.0
    %1906 = vmatprep.subr.mxu0 0.0
    %1907 = vmatpush1.msra.mxu0 0.0
    %1908 = vmatprep.subr.mxu0 0.0
    %1909 = vmatpush1.msra.mxu0 0.0
    %1910 = vmatprep.subr.mxu0 0.0
    %1911 = vmatpush1.msra.mxu0 0.0
    %1912 = vmatprep.subr.mxu0 0.0
    %1913 = vmatpush1.msra.mxu0 0.0
    %1914 = vmatprep.subr.mxu0 0.0
    %1915 = vmatpush1.msra.mxu0 0.0
    %1916 = vmatprep.subr.mxu0 0.0
    %1917 = vmatpush1.msra.mxu0 0.0
    %1918 = vmatprep.subr.mxu0 0.0
    %1919 = vmatpush1.msra.mxu0 0.0
    %1920 = vmatprep.subr.mxu0 0.0
    %1921 = vmatpush1.msra.mxu0 0.0
    %1922 = vmatprep.subr.mxu0 0.0
    %1923 = vmatpush1.msra.mxu0 0.0
    %1924 = vmatprep.subr.mxu0 0.0
    %1925 = vmatpush1.msra.mxu0 0.0
    %1926 = vmatprep.subr.mxu0 0.0
    %1927 = vmatpush1.msra.mxu0 0.0
    %1928 = vmatprep.subr.mxu0 0.0
    %1929 = vmatpush1.msra.mxu0 0.0
    %1930 = vmatprep.subr.mxu0 0.0
    %1931 = vmatpush1.msra.mxu0 0.0
    %1932 = vmatprep.subr.mxu0 0.0
    %1933 = vmatpush1.msra.mxu0 0.0
    %1934 = vmatprep.subr.mxu0 0.0
    %1935 = vmatpush1.msra.mxu0 0.0
    %1936 = vmatprep.subr.mxu0 0.0
    %1937 = vmatpush1.msra.mxu0 0.0
    %1938 = vmatprep.subr.mxu0 0.0
    %1939 = vmatpush1.msra.mxu0 0.0
    %1940 = vmatprep.subr.mxu0 0.0
    %1941 = vmatpush1.msra.mxu0 0.0
    %1942 = vmatprep.subr.mxu0 0.0
    %1943 = vmatpush1.msra.mxu0 0.0
    %1944 = vmatprep.subr.mxu0 0.0
    %1945 = vmatpush1.msra.mxu0 0.0
    %1946 = vmatprep.subr.mxu0 0.0
    %1947 = vmatpush1.msra.mxu0 0.0
    %1948 = vmatprep.subr.mxu0 0.0
    %1949 = vmatpush1.msra.mxu0 0.0
    %1950 = vmatprep.subr.mxu0 0.0
    %1951 = vmatpush1.msra.mxu0 0.0
    %1952 = vmatprep.subr.mxu0 0.0
    %1953 = vmatpush1.msra.mxu0 0.0
    %1954 = vmatprep.subr.mxu0 0.0
    %1955 = vmatpush1.msra.mxu0 0.0
    %1956 = vmatprep.subr.mxu0 0.0
    %1957 = vmatpush1.msra.mxu0 0.0
    %1958 = vmatprep.mubr.f32.mxu0 0.0
    %1959 = vmatmul.mubr.f32.gmra.mrb[0].mxu0 %v1889
    %v1960 = vpop.f32.mrb[0].mxu0
    %v1961 = vadd.f32 0.0, %v1960
    %v1962 = vpop.f32.mrb[0].mxu0
    %1963 = vmatprep.mubr.f32.mxu0 0.0
    %1964 = vmatmul.mubr.f32.gmra.mrb[0].mxu0 %v1892
    %v1965 = vpop.f32.mrb[0].mxu0
    %v1966 = vadd.f32 0.0, %v1965
    %v1967 = vpop.f32.mrb[0].mxu0
    %1968 = vdwg.mxu0
    %v1969 = vadd.f32 %v1556, %v1961
    %v1970 = vadd.f32 %v1557, %v1966
    %v1971 = vsel %vm226, %v1969, 0.0
    %1972 = vadd.xlane.f32.xlu0 %v1971
    %v1973 = vpop.xlane.xlu0 %1972
    %v1974 = vsel %vm226, %v1970, 0.0
    %1975 = vadd.xlane.f32.xlu0 %v1974
    %v1976 = vpop.xlane.xlu0 %1975
    %v1977 = vrcp.pop 32.0
    %v1978 = vmul.f32 %v1973, %v1977
    %v1979 = vmul.f32 %v1976, %v1977
    %v1980 = vsub.f32 %v1969, %v1978
    %v1981 = vsub.f32 %v1970, %v1979
    %v1982 = vmul.f32 %v1980, %v1980
    %v1983 = vmul.f32 %v1981, %v1981
    %v1984 = vsel %vm226, %v1982, 0.0
    %1985 = vadd.xlane.f32.xlu0 %v1984
    %v1986 = vpop.xlane.xlu0 %1985
    %v1987 = vsel %vm226, %v1983, 0.0
    %1988 = vadd.xlane.f32.xlu0 %v1987
    %v1989 = vpop.xlane.xlu0 %1988
    %v1990 = vmul.f32 %v1986, %v1977
    %v1991 = vmul.f32 %v1989, %v1977
    %v1992 = vadd.f32 %v1990, 1e-05
    %v1993 = vadd.f32 %v1991, 1e-05
    %v1994 = vrsqrt.pop %v1992
    %v1995 = vrsqrt.pop %v1993
    %v1996 = vmul.f32 %v1980, %v1994
    %v1997 = vmul.f32 %v1981, %v1995
    %v1999 = vlaneseq
    %v2000 = vshrl.u32 %v1999, 7
    %v2001 = vsub.s32 0, %v2000
    %v2002 = vrot.slane %v202, %v2001
    %v2004 = vmul.f32 %v1996, %v2002
    %v2005 = vmul.f32 %v1997, %v2002
    %v2007 = vlaneseq
    %v2008 = vshrl.u32 %v2007, 7
    %v2009 = vsub.s32 0, %v2008
    %v2010 = vrot.slane %v203, %v2009
    %v2012 = vadd.f32 %v2004, %v2010
    %v2013 = vadd.f32 %v2005, %v2010
    %v2015 = vlaneseq
    %v2016 = vshrl.u32 %v2015, 7
    %v2017 = vsub.s32 0, %v2016
    %v2018 = vrot.slane %v208, %v2017
    %v2021 = vsel %vm226, %v2012, 0
    %v2024 = vsel %vm226, %v2013, 0
    %2026 = vmatprep.subr.mxu0 0.0
    %2027 = vmatpush1.msra.mxu0 %v204
    %2028 = vmatprep.subr.mxu0 0.0
    %2029 = vmatpush1.msra.mxu0 %v205
    %2030 = vmatprep.subr.mxu0 0.0
    %2031 = vmatpush1.msra.mxu0 %v206
    %2032 = vmatprep.subr.mxu0 0.0
    %2033 = vmatpush1.msra.mxu0 %v207
    %2034 = vmatprep.subr.mxu0 0.0
    %2035 = vmatpush1.msra.mxu0 0.0
    %2036 = vmatprep.subr.mxu0 0.0
    %2037 = vmatpush1.msra.mxu0 0.0
    %2038 = vmatprep.subr.mxu0 0.0
    %2039 = vmatpush1.msra.mxu0 0.0
    %2040 = vmatprep.subr.mxu0 0.0
    %2041 = vmatpush1.msra.mxu0 0.0
    %2042 = vmatprep.subr.mxu0 0.0
    %2043 = vmatpush1.msra.mxu0 0.0
    %2044 = vmatprep.subr.mxu0 0.0
    %2045 = vmatpush1.msra.mxu0 0.0
    %2046 = vmatprep.subr.mxu0 0.0
    %2047 = vmatpush1.msra.mxu0 0.0
    %2048 = vmatprep.subr.mxu0 0.0
    %2049 = vmatpush1.msra.mxu0 0.0
    %2050 = vmatprep.subr.mxu0 0.0
    %2051 = vmatpush1.msra.mxu0 0.0
    %2052 = vmatprep.subr.mxu0 0.0
    %2053 = vmatpush1.msra.mxu0 0.0
    %2054 = vmatprep.subr.mxu0 0.0
    %2055 = vmatpush1.msra.mxu0 0.0
    %2056 = vmatprep.subr.mxu0 0.0
    %2057 = vmatpush1.msra.mxu0 0.0
    %2058 = vmatprep.subr.mxu0 0.0
    %2059 = vmatpush1.msra.mxu0 0.0
    %2060 = vmatprep.subr.mxu0 0.0
    %2061 = vmatpush1.msra.mxu0 0.0
    %2062 = vmatprep.subr.mxu0 0.0
    %2063 = vmatpush1.msra.mxu0 0.0
    %2064 = vmatprep.subr.mxu0 0.0
    %2065 = vmatpush1.msra.mxu0 0.0
    %2066 = vmatprep.subr.mxu0 0.0
    %2067 = vmatpush1.msra.mxu0 0.0
    %2068 = vmatprep.subr.mxu0 0.0
    %2069 = vmatpush1.msra.mxu0 0.0
    %2070 = vmatprep.subr.mxu0 0.0
    %2071 = vmatpush1.msra.mxu0 0.0
    %2072 = vmatprep.subr.mxu0 0.0
    %2073 = vmatpush1.msra.mxu0 0.0
    %2074 = vmatprep.subr.mxu0 0.0
    %2075 = vmatpush1.msra.mxu0 0.0
    %2076 = vmatprep.subr.mxu0 0.0
    %2077 = vmatpush1.msra.mxu0 0.0
    %2078 = vmatprep.subr.mxu0 0.0
    %2079 = vmatpush1.msra.mxu0 0.0
    %2080 = vmatprep.subr.mxu0 0.0
    %2081 = vmatpush1.msra.mxu0 0.0
    %2082 = vmatprep.subr.mxu0 0.0
    %2083 = vmatpush1.msra.mxu0 0.0
    %2084 = vmatprep.subr.mxu0 0.0
    %2085 = vmatpush1.msra.mxu0 0.0
    %2086 = vmatprep.subr.mxu0 0.0
    %2087 = vmatpush1.msra.mxu0 0.0
    %2088 = vmatprep.subr.mxu0 0.0
    %2089 = vmatpush1.msra.mxu0 0.0
    %2090 = vmatprep.mubr.f32.mxu0 0.0
    %2091 = vmatmul.mubr.f32.gmra.mrb[0].mxu0 %v2021
    %v2092 = vpop.f32.mrb[0].mxu0
    %v2093 = vadd.f32 %v2018, %v2092
    %v2094 = vpop.f32.mrb[0].mxu0
    %2095 = vmatprep.mubr.f32.mxu0 0.0
    %2096 = vmatmul.mubr.f32.gmra.mrb[0].mxu0 %v2024
    %v2097 = vpop.f32.mrb[0].mxu0
    %v2098 = vadd.f32 %v2018, %v2097
    %v2099 = vpop.f32.mrb[0].mxu0
    %2100 = vdwg.mxu0
    %v2101 = vmax.f32 %v2093, 0.0
    %v2102 = vmax.f32 %v2098, 0.0
    %v2104 = vlaneseq
    %v2105 = vshrl.u32 %v2104, 7
    %v2106 = vsub.s32 0, %v2105
    %v2107 = vrot.slane %v217, %v2106
    %vm2109 = vcmask 523264
    %v2111 = vsel %vm2109, %v2101, 0
    %v2114 = vsel %vm2109, %v2102, 0
    %2116 = vmatprep.subr.mxu0 0.0
    %2117 = vmatpush1.msra.mxu0 %v209
    %2118 = vmatprep.subr.mxu0 0.0
    %2119 = vmatpush1.msra.mxu0 %v210
    %2120 = vmatprep.subr.mxu0 0.0
    %2121 = vmatpush1.msra.mxu0 %v211
    %2122 = vmatprep.subr.mxu0 0.0
    %2123 = vmatpush1.msra.mxu0 %v212
    %2124 = vmatprep.subr.mxu0 0.0
    %2125 = vmatpush1.msra.mxu0 %v213
    %2126 = vmatprep.subr.mxu0 0.0
    %2127 = vmatpush1.msra.mxu0 %v214
    %2128 = vmatprep.subr.mxu0 0.0
    %2129 = vmatpush1.msra.mxu0 %v215
    %2130 = vmatprep.subr.mxu0 0.0
    %2131 = vmatpush1.msra.mxu0 %v216
    %2132 = vmatprep.subr.mxu0 0.0
    %2133 = vmatpush1.msra.mxu0 0.0
    %2134 = vmatprep.subr.mxu0 0.0
    %2135 = vmatpush1.msra.mxu0 0.0
    %2136 = vmatprep.subr.mxu0 0.0
    %2137 = vmatpush1.msra.mxu0 0.0
    %2138 = vmatprep.subr.mxu0 0.0
    %2139 = vmatpush1.msra.mxu0 0.0
    %2140 = vmatprep.subr.mxu0 0.0
    %2141 = vmatpush1.msra.mxu0 0.0
    %2142 = vmatprep.subr.mxu0 0.0
    %2143 = vmatpush1.msra.mxu0 0.0
    %2144 = vmatprep.subr.mxu0 0.0
    %2145 = vmatpush1.msra.mxu0 0.0
    %2146 = vmatprep.subr.mxu0 0.0
    %2147 = vmatpush1.msra.mxu0 0.0
    %2148 = vmatprep.subr.mxu0 0.0
    %2149 = vmatpush1.msra.mxu0 0.0
    %2150 = vmatprep.subr.mxu0 0.0
    %2151 = vmatpush1.msra.mxu0 0.0
    %2152 = vmatprep.subr.mxu0 0.0
    %2153 = vmatpush1.msra.mxu0 0.0
    %2154 = vmatprep.subr.mxu0 0.0
    %2155 = vmatpush1.msra.mxu0 0.0
    %2156 = vmatprep.subr.mxu0 0.0
    %2157 = vmatpush1.msra.mxu0 0.0
    %2158 = vmatprep.subr.mxu0 0.0
    %2159 = vmatpush1.msra.mxu0 0.0
    %2160 = vmatprep.subr.mxu0 0.0
    %2161 = vmatpush1.msra.mxu0 0.0
    %2162 = vmatprep.subr.mxu0 0.0
    %2163 = vmatpush1.msra.mxu0 0.0
    %2164 = vmatprep.subr.mxu0 0.0
    %2165 = vmatpush1.msra.mxu0 0.0
    %2166 = vmatprep.subr.mxu0 0.0
    %2167 = vmatpush1.msra.mxu0 0.0
    %2168 = vmatprep.subr.mxu0 0.0
    %2169 = vmatpush1.msra.mxu0 0.0
    %2170 = vmatprep.subr.mxu0 0.0
    %2171 = vmatpush1.msra.mxu0 0.0
    %2172 = vmatprep.subr.mxu0 0.0
    %2173 = vmatpush1.msra.mxu0 0.0
    %2174 = vmatprep.subr.mxu0 0.0
    %2175 = vmatpush1.msra.mxu0 0.0
    %2176 = vmatprep.subr.mxu0 0.0
    %2177 = vmatpush1.msra.mxu0 0.0
    %2178 = vmatprep.subr.mxu0 0.0
    %2179 = vmatpush1.msra.mxu0 0.0
    %2180 = vmatprep.mubr.f32.mxu0 0.0
    %2181 = vmatmul.mubr.f32.gmra.mrb[0].mxu0 %v2111
    %v2182 = vpop.f32.mrb[0].mxu0
    %v2183 = vadd.f32 %v2107, %v2182
    %v2184 = vpop.f32.mrb[0].mxu0
    %2185 = vmatprep.mubr.f32.mxu0 0.0
    %2186 = vmatmul.mubr.f32.gmra.mrb[0].mxu0 %v2114
    %v2187 = vpop.f32.mrb[0].mxu0
    %v2188 = vadd.f32 %v2107, %v2187
    %v2189 = vpop.f32.mrb[0].mxu0
    %2190 = vdwg.mxu0
    %v2191 = vadd.f32 %v2183, %v2012
    %v2192 = vadd.f32 %v2188, %v2013
    %v2193 = vsel %vm226, %v2191, 0.0
    %2194 = vadd.xlane.f32.xlu0 %v2193
    %v2195 = vpop.xlane.xlu0 %2194
    %v2196 = vsel %vm226, %v2192, 0.0
    %2197 = vadd.xlane.f32.xlu0 %v2196
    %v2198 = vpop.xlane.xlu0 %2197
    %v2199 = vmul.f32 %v2195, %v1977
    %v2200 = vmul.f32 %v2198, %v1977
    %v2201 = vsub.f32 %v2191, %v2199
    %v2202 = vsub.f32 %v2192, %v2200
    %v2203 = vmul.f32 %v2201, %v2201
    %v2204 = vmul.f32 %v2202, %v2202
    %v2205 = vsel %vm226, %v2203, 0.0
    %2206 = vadd.xlane.f32.xlu0 %v2205
    %v2207 = vpop.xlane.xlu0 %2206
    %v2208 = vsel %vm226, %v2204, 0.0
    %2209 = vadd.xlane.f32.xlu0 %v2208
    %v2210 = vpop.xlane.xlu0 %2209
    %v2211 = vmul.f32 %v2207, %v1977
    %v2212 = vmul.f32 %v2210, %v1977
    %v2213 = vadd.f32 %v2211, 1e-05
    %v2214 = vadd.f32 %v2212, 1e-05
    %v2215 = vrsqrt.pop %v2213
    %v2216 = vrsqrt.pop %v2214
    %v2217 = vmul.f32 %v2201, %v2215
    %v2218 = vmul.f32 %v2202, %v2216
    %v2220 = vlaneseq
    %v2221 = vshrl.u32 %v2220, 7
    %v2222 = vsub.s32 0, %v2221
    %v2223 = vrot.slane %v218, %v2222
    %v2225 = vmul.f32 %v2217, %v2223
    %v2226 = vmul.f32 %v2218, %v2223
    %v2228 = vlaneseq
    %v2229 = vshrl.u32 %v2228, 7
    %v2230 = vsub.s32 0, %v2229
    %v2231 = vrot.slane %v219, %v2230
    %v2233 = vadd.f32 %v2225, %v2231
    %v2234 = vadd.f32 %v2226, %v2231
    %s2235 = scalar_lea.vmem %s4, 32
    %v2236 = vld [vmem:[%s2235] sm:$0xff]
    %v2237 = vld [vmem:[%s2235 + $0x8] sm:$0xff]
    %v2238 = vld [vmem:[%s2235 + $0x10] sm:$0xff]
    %v2239 = vld [vmem:[%s2235 + $0x18] sm:$0xff]
    %s2240 = scalar_lea.vmem %s5, 1
    %v2241 = vld [vmem:[%s2240] sm:$0x1]
    %s2242 = scalar_lea.vmem %s6, 32
    %v2243 = vld [vmem:[%s2242] sm:$0xff]
    %v2244 = vld [vmem:[%s2242 + $0x8] sm:$0xff]
    %v2245 = vld [vmem:[%s2242 + $0x10] sm:$0xff]
    %v2246 = vld [vmem:[%s2242 + $0x18] sm:$0xff]
    %s2247 = scalar_lea.vmem %s7, 1
    %v2248 = vld [vmem:[%s2247] sm:$0x1]
    %s2249 = scalar_lea.vmem %s8, 1
    %v2250 = vld [vmem:[%s2249] sm:$0x1]
    %s2251 = scalar_lea.vmem %s9, 1
    %v2252 = vld [vmem:[%s2251] sm:$0x1]
    %s2253 = scalar_lea.vmem %s10, 32
    %v2254 = vld [vmem:[%s2253] sm:$0xff]
    %v2255 = vld [vmem:[%s2253 + $0x8] sm:$0xff]
    %v2256 = vld [vmem:[%s2253 + $0x10] sm:$0xff]
    %v2257 = vld [vmem:[%s2253 + $0x18] sm:$0xff]
    %s2258 = scalar_lea.vmem %s11, 1
    %v2259 = vld [vmem:[%s2258] sm:$0x1]
    %s2260 = scalar_lea.vmem %s12, 64
    %v2261 = vld [vmem:[%s2260] sm:$0xff]
    %v2262 = vld [vmem:[%s2260 + $0x8] sm:$0xff]
    %v2263 = vld [vmem:[%s2260 + $0x10] sm:$0xff]
    %v2264 = vld [vmem:[%s2260 + $0x18] sm:$0xff]
    %v2265 = vld [vmem:[%s2260 + $0x20] sm:$0xff]
    %v2266 = vld [vmem:[%s2260 + $0x28] sm:$0xff]
    %v2267 = vld [vmem:[%s2260 + $0x30] sm:$0xff]
    %v2268 = vld [vmem:[%s2260 + $0x38] sm:$0xff]
    %s2269 = scalar_lea.vmem %s13, 1
    %v2270 = vld [vmem:[%s2269] sm:$0x1]
    %s2271 = scalar_lea.vmem %s14, 1
    %v2272 = vld [vmem:[%s2271] sm:$0x1]
    %s2273 = scalar_lea.vmem %s15, 1
    %v2274 = vld [vmem:[%s2273] sm:$0x1]
    %v2276 = vlaneseq
    %v2277 = vshrl.u32 %v2276, 7
    %v2278 = vsub.s32 0, %v2277
    %v2279 = vrot.slane %v2241, %v2278
    %v2282 = vsel %vm226, %v2233, 0
    %v2285 = vsel %vm226, %v2234, 0
    %2287 = vmatprep.subr.mxu0 0.0
    %2288 = vmatpush1.msra.mxu0 %v2236
    %2289 = vmatprep.subr.mxu0 0.0
    %2290 = vmatpush1.msra.mxu0 %v2237
    %2291 = vmatprep.subr.mxu0 0.0
    %2292 = vmatpush1.msra.mxu0 %v2238
    %2293 = vmatprep.subr.mxu0 0.0
    %2294 = vmatpush1.msra.mxu0 %v2239
    %2295 = vmatprep.subr.mxu0 0.0
    %2296 = vmatpush1.msra.mxu0 0.0
    %2297 = vmatprep.subr.mxu0 0.0
    %2298 = vmatpush1.msra.mxu0 0.0
    %2299 = vmatprep.subr.mxu0 0.0
    %2300 = vmatpush1.msra.mxu0 0.0
    %2301 = vmatprep.subr.mxu0 0.0
    %2302 = vmatpush1.msra.mxu0 0.0
    %2303 = vmatprep.subr.mxu0 0.0
    %2304 = vmatpush1.msra.mxu0 0.0
    %2305 = vmatprep.subr.mxu0 0.0
    %2306 = vmatpush1.msra.mxu0 0.0
    %2307 = vmatprep.subr.mxu0 0.0
    %2308 = vmatpush1.msra.mxu0 0.0
    %2309 = vmatprep.subr.mxu0 0.0
    %2310 = vmatpush1.msra.mxu0 0.0
    %2311 = vmatprep.subr.mxu0 0.0
    %2312 = vmatpush1.msra.mxu0 0.0
    %2313 = vmatprep.subr.mxu0 0.0
    %2314 = vmatpush1.msra.mxu0 0.0
    %2315 = vmatprep.subr.mxu0 0.0
    %2316 = vmatpush1.msra.mxu0 0.0
    %2317 = vmatprep.subr.mxu0 0.0
    %2318 = vmatpush1.msra.mxu0 0.0
    %2319 = vmatprep.subr.mxu0 0.0
    %2320 = vmatpush1.msra.mxu0 0.0
    %2321 = vmatprep.subr.mxu0 0.0
    %2322 = vmatpush1.msra.mxu0 0.0
    %2323 = vmatprep.subr.mxu0 0.0
    %2324 = vmatpush1.msra.mxu0 0.0
    %2325 = vmatprep.subr.mxu0 0.0
    %2326 = vmatpush1.msra.mxu0 0.0
    %2327 = vmatprep.subr.mxu0 0.0
    %2328 = vmatpush1.msra.mxu0 0.0
    %2329 = vmatprep.subr.mxu0 0.0
    %2330 = vmatpush1.msra.mxu0 0.0
    %2331 = vmatprep.subr.mxu0 0.0
    %2332 = vmatpush1.msra.mxu0 0.0
    %2333 = vmatprep.subr.mxu0 0.0
    %2334 = vmatpush1.msra.mxu0 0.0
    %2335 = vmatprep.subr.mxu0 0.0
    %2336 = vmatpush1.msra.mxu0 0.0
    %2337 = vmatprep.subr.mxu0 0.0
    %2338 = vmatpush1.msra.mxu0 0.0
    %2339 = vmatprep.subr.mxu0 0.0
    %2340 = vmatpush1.msra.mxu0 0.0
    %2341 = vmatprep.subr.mxu0 0.0
    %2342 = vmatpush1.msra.mxu0 0.0
    %2343 = vmatprep.subr.mxu0 0.0
    %2344 = vmatpush1.msra.mxu0 0.0
    %2345 = vmatprep.subr.mxu0 0.0
    %2346 = vmatpush1.msra.mxu0 0.0
    %2347 = vmatprep.subr.mxu0 0.0
    %2348 = vmatpush1.msra.mxu0 0.0
    %2349 = vmatprep.subr.mxu0 0.0
    %2350 = vmatpush1.msra.mxu0 0.0
    %2351 = vmatprep.mubr.f32.mxu0 0.0
    %2352 = vmatmul.mubr.f32.gmra.mrb[0].mxu0 %v2282
    %v2353 = vpop.f32.mrb[0].mxu0
    %v2354 = vadd.f32 %v2279, %v2353
    %v2355 = vpop.f32.mrb[0].mxu0
    %2356 = vmatprep.mubr.f32.mxu0 0.0
    %2357 = vmatmul.mubr.f32.gmra.mrb[0].mxu0 %v2285
    %v2358 = vpop.f32.mrb[0].mxu0
    %v2359 = vadd.f32 %v2279, %v2358
    %v2360 = vpop.f32.mrb[0].mxu0
    %2361 = vdwg.mxu0
    %v2363 = vlaneseq
    %v2364 = vshrl.u32 %v2363, 7
    %v2365 = vsub.s32 0, %v2364
    %v2366 = vrot.slane %v2248, %v2365
    %v2368 = vadd.f32 %v2233, %v2366
    %v2369 = vadd.f32 %v2234, %v2366
    %v2370 = vmul.f32 %v2354, 0.35355338
    %v2371 = vmul.f32 %v2359, 0.35355338
    %2373 = vrot.lane.b32.xlu0 %v2354, 96
    %v2374 = vpop.permute.xlu0 %2373
    %v2376 = vsel %vm321, %v2370, 0
    %v2378 = vsel %vm321, %v2374, 0
    %2380 = vmatprep.subr.mxu0 0.0
    %2381 = vmatpush1.xpose.msra.mxu0 %v2378
    %2382 = vmatprep.subr.mxu0 0.0
    %2383 = vmatpush1.xpose.msra.mxu0 0.0
    %2384 = vmatprep.subr.mxu0 0.0
    %2385 = vmatpush1.xpose.msra.mxu0 0.0
    %2386 = vmatprep.subr.mxu0 0.0
    %2387 = vmatpush1.xpose.msra.mxu0 0.0
    %2388 = vmatprep.subr.mxu0 0.0
    %2389 = vmatpush1.xpose.msra.mxu0 0.0
    %2390 = vmatprep.subr.mxu0 0.0
    %2391 = vmatpush1.xpose.msra.mxu0 0.0
    %2392 = vmatprep.subr.mxu0 0.0
    %2393 = vmatpush1.xpose.msra.mxu0 0.0
    %2394 = vmatprep.subr.mxu0 0.0
    %2395 = vmatpush1.xpose.msra.mxu0 0.0
    %2396 = vmatprep.subr.mxu0 0.0
    %2397 = vmatpush1.xpose.msra.mxu0 0.0
    %2398 = vmatprep.subr.mxu0 0.0
    %2399 = vmatpush1.xpose.msra.mxu0 0.0
    %2400 = vmatprep.subr.mxu0 0.0
    %2401 = vmatpush1.xpose.msra.mxu0 0.0
    %2402 = vmatprep.subr.mxu0 0.0
    %2403 = vmatpush1.xpose.msra.mxu0 0.0
    %2404 = vmatprep.subr.mxu0 0.0
    %2405 = vmatpush1.xpose.msra.mxu0 0.0
    %2406 = vmatprep.subr.mxu0 0.0
    %2407 = vmatpush1.xpose.msra.mxu0 0.0
    %2408 = vmatprep.subr.mxu0 0.0
    %2409 = vmatpush1.xpose.msra.mxu0 0.0
    %2410 = vmatprep.subr.mxu0 0.0
    %2411 = vmatpush1.xpose.msra.mxu0 0.0
    %2412 = vmatprep.subr.mxu0 0.0
    %2413 = vmatpush1.xpose.msra.mxu0 0.0
    %2414 = vmatprep.subr.mxu0 0.0
    %2415 = vmatpush1.xpose.msra.mxu0 0.0
    %2416 = vmatprep.subr.mxu0 0.0
    %2417 = vmatpush1.xpose.msra.mxu0 0.0
    %2418 = vmatprep.subr.mxu0 0.0
    %2419 = vmatpush1.xpose.msra.mxu0 0.0
    %2420 = vmatprep.subr.mxu0 0.0
    %2421 = vmatpush1.xpose.msra.mxu0 0.0
    %2422 = vmatprep.subr.mxu0 0.0
    %2423 = vmatpush1.xpose.msra.mxu0 0.0
    %2424 = vmatprep.subr.mxu0 0.0
    %2425 = vmatpush1.xpose.msra.mxu0 0.0
    %2426 = vmatprep.subr.mxu0 0.0
    %2427 = vmatpush1.xpose.msra.mxu0 0.0
    %2428 = vmatprep.subr.mxu0 0.0
    %2429 = vmatpush1.xpose.msra.mxu0 0.0
    %2430 = vmatprep.subr.mxu0 0.0
    %2431 = vmatpush1.xpose.msra.mxu0 0.0
    %2432 = vmatprep.subr.mxu0 0.0
    %2433 = vmatpush1.xpose.msra.mxu0 0.0
    %2434 = vmatprep.subr.mxu0 0.0
    %2435 = vmatpush1.xpose.msra.mxu0 0.0
    %2436 = vmatprep.subr.mxu0 0.0
    %2437 = vmatpush1.xpose.msra.mxu0 0.0
    %2438 = vmatprep.subr.mxu0 0.0
    %2439 = vmatpush1.xpose.msra.mxu0 0.0
    %2440 = vmatprep.subr.mxu0 0.0
    %2441 = vmatpush1.xpose.msra.mxu0 0.0
    %2442 = vmatprep.subr.mxu0 0.0
    %2443 = vmatpush1.xpose.msra.mxu0 0.0
    %2444 = vmatprep.mubr.f32.mxu0 0.0
    %2445 = vmatmul.mubr.f32.gmra.mrb[0].mxu0 %v2376
    %v2446 = vpop.f32.mrb[0].mxu0
    %v2447 = vadd.f32 0.0, %v2446
    %v2448 = vpop.f32.mrb[0].mxu0
    %2449 = vdwg.mxu0
    %2451 = vrot.lane.b32.xlu0 %v2359, 96
    %v2452 = vpop.permute.xlu0 %2451
    %v2454 = vsel %vm321, %v2371, 0
    %v2456 = vsel %vm321, %v2452, 0
    %2458 = vmatprep.subr.mxu0 0.0
    %2459 = vmatpush1.xpose.msra.mxu0 %v2456
    %2460 = vmatprep.subr.mxu0 0.0
    %2461 = vmatpush1.xpose.msra.mxu0 0.0
    %2462 = vmatprep.subr.mxu0 0.0
    %2463 = vmatpush1.xpose.msra.mxu0 0.0
    %2464 = vmatprep.subr.mxu0 0.0
    %2465 = vmatpush1.xpose.msra.mxu0 0.0
    %2466 = vmatprep.subr.mxu0 0.0
    %2467 = vmatpush1.xpose.msra.mxu0 0.0
    %2468 = vmatprep.subr.mxu0 0.0
    %2469 = vmatpush1.xpose.msra.mxu0 0.0
    %2470 = vmatprep.subr.mxu0 0.0
    %2471 = vmatpush1.xpose.msra.mxu0 0.0
    %2472 = vmatprep.subr.mxu0 0.0
    %2473 = vmatpush1.xpose.msra.mxu0 0.0
    %2474 = vmatprep.subr.mxu0 0.0
    %2475 = vmatpush1.xpose.msra.mxu0 0.0
    %2476 = vmatprep.subr.mxu0 0.0
    %2477 = vmatpush1.xpose.msra.mxu0 0.0
    %2478 = vmatprep.subr.mxu0 0.0
    %2479 = vmatpush1.xpose.msra.mxu0 0.0
    %2480 = vmatprep.subr.mxu0 0.0
    %2481 = vmatpush1.xpose.msra.mxu0 0.0
    %2482 = vmatprep.subr.mxu0 0.0
    %2483 = vmatpush1.xpose.msra.mxu0 0.0
    %2484 = vmatprep.subr.mxu0 0.0
    %2485 = vmatpush1.xpose.msra.mxu0 0.0
    %2486 = vmatprep.subr.mxu0 0.0
    %2487 = vmatpush1.xpose.msra.mxu0 0.0
    %2488 = vmatprep.subr.mxu0 0.0
    %2489 = vmatpush1.xpose.msra.mxu0 0.0
    %2490 = vmatprep.subr.mxu0 0.0
    %2491 = vmatpush1.xpose.msra.mxu0 0.0
    %2492 = vmatprep.subr.mxu0 0.0
    %2493 = vmatpush1.xpose.msra.mxu0 0.0
    %2494 = vmatprep.subr.mxu0 0.0
    %2495 = vmatpush1.xpose.msra.mxu0 0.0
    %2496 = vmatprep.subr.mxu0 0.0
    %2497 = vmatpush1.xpose.msra.mxu0 0.0
    %2498 = vmatprep.subr.mxu0 0.0
    %2499 = vmatpush1.xpose.msra.mxu0 0.0
    %2500 = vmatprep.subr.mxu0 0.0
    %2501 = vmatpush1.xpose.msra.mxu0 0.0
    %2502 = vmatprep.subr.mxu0 0.0
    %2503 = vmatpush1.xpose.msra.mxu0 0.0
    %2504 = vmatprep.subr.mxu0 0.0
    %2505 = vmatpush1.xpose.msra.mxu0 0.0
    %2506 = vmatprep.subr.mxu0 0.0
    %2507 = vmatpush1.xpose.msra.mxu0 0.0
    %2508 = vmatprep.subr.mxu0 0.0
    %2509 = vmatpush1.xpose.msra.mxu0 0.0
    %2510 = vmatprep.subr.mxu0 0.0
    %2511 = vmatpush1.xpose.msra.mxu0 0.0
    %2512 = vmatprep.subr.mxu0 0.0
    %2513 = vmatpush1.xpose.msra.mxu0 0.0
    %2514 = vmatprep.subr.mxu0 0.0
    %2515 = vmatpush1.xpose.msra.mxu0 0.0
    %2516 = vmatprep.subr.mxu0 0.0
    %2517 = vmatpush1.xpose.msra.mxu0 0.0
    %2518 = vmatprep.subr.mxu0 0.0
    %2519 = vmatpush1.xpose.msra.mxu0 0.0
    %2520 = vmatprep.subr.mxu0 0.0
    %2521 = vmatpush1.xpose.msra.mxu0 0.0
    %2522 = vmatprep.mubr.f32.mxu0 0.0
    %2523 = vmatmul.mubr.f32.gmra.mrb[0].mxu0 %v2454
    %v2524 = vpop.f32.mrb[0].mxu0
    %v2525 = vadd.f32 0.0, %v2524
    %v2526 = vpop.f32.mrb[0].mxu0
    %2527 = vdwg.mxu0
    %v2528 = vsel %vm321, %v2447, -inf
    %2529 = vmax.xlane.f32.xlu0 %v2528
    %v2530 = vpop.xlane.xlu0 %2529
    %v2531 = vsel %vm321, %v2525, -inf
    %2532 = vmax.xlane.f32.xlu0 %v2531
    %v2533 = vpop.xlane.xlu0 %2532
    %v2534 = vsub.f32 %v2447, %v2530
    %v2535 = vsub.f32 %v2525, %v2533
    %v2536 = vmul.f32 %v2534, 1.442695
    %v2537 = vpow.pop %v2536
    %v2538 = vmul.f32 %v2535, 1.442695
    %v2539 = vpow.pop %v2538
    %v2540 = vsel %vm321, %v2537, 0.0
    %2541 = vadd.xlane.f32.xlu0 %v2540
    %v2542 = vpop.xlane.xlu0 %2541
    %v2543 = vsel %vm321, %v2539, 0.0
    %2544 = vadd.xlane.f32.xlu0 %v2543
    %v2545 = vpop.xlane.xlu0 %2544
    %v2546 = vrcp.pop %v2542
    %v2547 = vrcp.pop %v2545
    %v2548 = vmul.f32 %v2537, %v2546
    %v2549 = vmul.f32 %v2539, %v2547
    %2550 = vrot.lane.b32.xlu0 %v2354, 64
    %v2551 = vpop.permute.xlu0 %2550
    %v2554 = vsel %vm321, %v2548, 0
    %2556 = vmatprep.subr.mxu0 0.0
    %2557 = vmatpush1.msra.mxu0 %v2551
    %2558 = vmatprep.subr.mxu0 0.0
    %2559 = vmatpush1.msra.mxu0 0.0
    %2560 = vmatprep.subr.mxu0 0.0
    %2561 = vmatpush1.msra.mxu0 0.0
    %2562 = vmatprep.subr.mxu0 0.0
    %2563 = vmatpush1.msra.mxu0 0.0
    %2564 = vmatprep.subr.mxu0 0.0
    %2565 = vmatpush1.msra.mxu0 0.0
    %2566 = vmatprep.subr.mxu0 0.0
    %2567 = vmatpush1.msra.mxu0 0.0
    %2568 = vmatprep.subr.mxu0 0.0
    %2569 = vmatpush1.msra.mxu0 0.0
    %2570 = vmatprep.subr.mxu0 0.0
    %2571 = vmatpush1.msra.mxu0 0.0
    %2572 = vmatprep.subr.mxu0 0.0
    %2573 = vmatpush1.msra.mxu0 0.0
    %2574 = vmatprep.subr.mxu0 0.0
    %2575 = vmatpush1.msra.mxu0 0.0
    %2576 = vmatprep.subr.mxu0 0.0
    %2577 = vmatpush1.msra.mxu0 0.0
    %2578 = vmatprep.subr.mxu0 0.0
    %2579 = vmatpush1.msra.mxu0 0.0
    %2580 = vmatprep.subr.mxu0 0.0
    %2581 = vmatpush1.msra.mxu0 0.0
    %2582 = vmatprep.subr.mxu0 0.0
    %2583 = vmatpush1.msra.mxu0 0.0
    %2584 = vmatprep.subr.mxu0 0.0
    %2585 = vmatpush1.msra.mxu0 0.0
    %2586 = vmatprep.subr.mxu0 0.0
    %2587 = vmatpush1.msra.mxu0 0.0
    %2588 = vmatprep.subr.mxu0 0.0
    %2589 = vmatpush1.msra.mxu0 0.0
    %2590 = vmatprep.subr.mxu0 0.0
    %2591 = vmatpush1.msra.mxu0 0.0
    %2592 = vmatprep.subr.mxu0 0.0
    %2593 = vmatpush1.msra.mxu0 0.0
    %2594 = vmatprep.subr.mxu0 0.0
    %2595 = vmatpush1.msra.mxu0 0.0
    %2596 = vmatprep.subr.mxu0 0.0
    %2597 = vmatpush1.msra.mxu0 0.0
    %2598 = vmatprep.subr.mxu0 0.0
    %2599 = vmatpush1.msra.mxu0 0.0
    %2600 = vmatprep.subr.mxu0 0.0
    %2601 = vmatpush1.msra.mxu0 0.0
    %2602 = vmatprep.subr.mxu0 0.0
    %2603 = vmatpush1.msra.mxu0 0.0
    %2604 = vmatprep.subr.mxu0 0.0
    %2605 = vmatpush1.msra.mxu0 0.0
    %2606 = vmatprep.subr.mxu0 0.0
    %2607 = vmatpush1.msra.mxu0 0.0
    %2608 = vmatprep.subr.mxu0 0.0
    %2609 = vmatpush1.msra.mxu0 0.0
    %2610 = vmatprep.subr.mxu0 0.0
    %2611 = vmatpush1.msra.mxu0 0.0
    %2612 = vmatprep.subr.mxu0 0.0
    %2613 = vmatpush1.msra.mxu0 0.0
    %2614 = vmatprep.subr.mxu0 0.0
    %2615 = vmatpush1.msra.mxu0 0.0
    %2616 = vmatprep.subr.mxu0 0.0
    %2617 = vmatpush1.msra.mxu0 0.0
    %2618 = vmatprep.subr.mxu0 0.0
    %2619 = vmatpush1.msra.mxu0 0.0
    %2620 = vmatprep.mubr.f32.mxu0 0.0
    %2621 = vmatmul.mubr.f32.gmra.mrb[0].mxu0 %v2554
    %v2622 = vpop.f32.mrb[0].mxu0
    %v2623 = vadd.f32 0.0, %v2622
    %v2624 = vpop.f32.mrb[0].mxu0
    %2625 = vdwg.mxu0
    %2626 = vrot.lane.b32.xlu0 %v2359, 64
    %v2627 = vpop.permute.xlu0 %2626
    %v2630 = vsel %vm321, %v2549, 0
    %2632 = vmatprep.subr.mxu0 0.0
    %2633 = vmatpush1.msra.mxu0 %v2627
    %2634 = vmatprep.subr.mxu0 0.0
    %2635 = vmatpush1.msra.mxu0 0.0
    %2636 = vmatprep.subr.mxu0 0.0
    %2637 = vmatpush1.msra.mxu0 0.0
    %2638 = vmatprep.subr.mxu0 0.0
    %2639 = vmatpush1.msra.mxu0 0.0
    %2640 = vmatprep.subr.mxu0 0.0
    %2641 = vmatpush1.msra.mxu0 0.0
    %2642 = vmatprep.subr.mxu0 0.0
    %2643 = vmatpush1.msra.mxu0 0.0
    %2644 = vmatprep.subr.mxu0 0.0
    %2645 = vmatpush1.msra.mxu0 0.0
    %2646 = vmatprep.subr.mxu0 0.0
    %2647 = vmatpush1.msra.mxu0 0.0
    %2648 = vmatprep.subr.mxu0 0.0
    %2649 = vmatpush1.msra.mxu0 0.0
    %2650 = vmatprep.subr.mxu0 0.0
    %2651 = vmatpush1.msra.mxu0 0.0
    %2652 = vmatprep.subr.mxu0 0.0
    %2653 = vmatpush1.msra.mxu0 0.0
    %2654 = vmatprep.subr.mxu0 0.0
    %2655 = vmatpush1.msra.mxu0 0.0
    %2656 = vmatprep.subr.mxu0 0.0
    %2657 = vmatpush1.msra.mxu0 0.0
    %2658 = vmatprep.subr.mxu0 0.0
    %2659 = vmatpush1.msra.mxu0 0.0
    %2660 = vmatprep.subr.mxu0 0.0
    %2661 = vmatpush1.msra.mxu0 0.0
    %2662 = vmatprep.subr.mxu0 0.0
    %2663 = vmatpush1.msra.mxu0 0.0
    %2664 = vmatprep.subr.mxu0 0.0
    %2665 = vmatpush1.msra.mxu0 0.0
    %2666 = vmatprep.subr.mxu0 0.0
    %2667 = vmatpush1.msra.mxu0 0.0
    %2668 = vmatprep.subr.mxu0 0.0
    %2669 = vmatpush1.msra.mxu0 0.0
    %2670 = vmatprep.subr.mxu0 0.0
    %2671 = vmatpush1.msra.mxu0 0.0
    %2672 = vmatprep.subr.mxu0 0.0
    %2673 = vmatpush1.msra.mxu0 0.0
    %2674 = vmatprep.subr.mxu0 0.0
    %2675 = vmatpush1.msra.mxu0 0.0
    %2676 = vmatprep.subr.mxu0 0.0
    %2677 = vmatpush1.msra.mxu0 0.0
    %2678 = vmatprep.subr.mxu0 0.0
    %2679 = vmatpush1.msra.mxu0 0.0
    %2680 = vmatprep.subr.mxu0 0.0
    %2681 = vmatpush1.msra.mxu0 0.0
    %2682 = vmatprep.subr.mxu0 0.0
    %2683 = vmatpush1.msra.mxu0 0.0
    %2684 = vmatprep.subr.mxu0 0.0
    %2685 = vmatpush1.msra.mxu0 0.0
    %2686 = vmatprep.subr.mxu0 0.0
    %2687 = vmatpush1.msra.mxu0 0.0
    %2688 = vmatprep.subr.mxu0 0.0
    %2689 = vmatpush1.msra.mxu0 0.0
    %2690 = vmatprep.subr.mxu0 0.0
    %2691 = vmatpush1.msra.mxu0 0.0
    %2692 = vmatprep.subr.mxu0 0.0
    %2693 = vmatpush1.msra.mxu0 0.0
    %2694 = vmatprep.subr.mxu0 0.0
    %2695 = vmatpush1.msra.mxu0 0.0
    %2696 = vmatprep.mubr.f32.mxu0 0.0
    %2697 = vmatmul.mubr.f32.gmra.mrb[0].mxu0 %v2630
    %v2698 = vpop.f32.mrb[0].mxu0
    %v2699 = vadd.f32 0.0, %v2698
    %v2700 = vpop.f32.mrb[0].mxu0
    %2701 = vdwg.mxu0
    %v2703 = vsel %vm321, %v2623, 0
    %v2706 = vsel %vm321, %v2699, 0
    %2708 = vmatprep.subr.mxu0 0.0
    %2709 = vmatpush1.msra.mxu0 %v2243
    %2710 = vmatprep.subr.mxu0 0.0
    %2711 = vmatpush1.msra.mxu0 0.0
    %2712 = vmatprep.subr.mxu0 0.0
    %2713 = vmatpush1.msra.mxu0 0.0
    %2714 = vmatprep.subr.mxu0 0.0
    %2715 = vmatpush1.msra.mxu0 0.0
    %2716 = vmatprep.subr.mxu0 0.0
    %2717 = vmatpush1.msra.mxu0 0.0
    %2718 = vmatprep.subr.mxu0 0.0
    %2719 = vmatpush1.msra.mxu0 0.0
    %2720 = vmatprep.subr.mxu0 0.0
    %2721 = vmatpush1.msra.mxu0 0.0
    %2722 = vmatprep.subr.mxu0 0.0
    %2723 = vmatpush1.msra.mxu0 0.0
    %2724 = vmatprep.subr.mxu0 0.0
    %2725 = vmatpush1.msra.mxu0 0.0
    %2726 = vmatprep.subr.mxu0 0.0
    %2727 = vmatpush1.msra.mxu0 0.0
    %2728 = vmatprep.subr.mxu0 0.0
    %2729 = vmatpush1.msra.mxu0 0.0
    %2730 = vmatprep.subr.mxu0 0.0
    %2731 = vmatpush1.msra.mxu0 0.0
    %2732 = vmatprep.subr.mxu0 0.0
    %2733 = vmatpush1.msra.mxu0 0.0
    %2734 = vmatprep.subr.mxu0 0.0
    %2735 = vmatpush1.msra.mxu0 0.0
    %2736 = vmatprep.subr.mxu0 0.0
    %2737 = vmatpush1.msra.mxu0 0.0
    %2738 = vmatprep.subr.mxu0 0.0
    %2739 = vmatpush1.msra.mxu0 0.0
    %2740 = vmatprep.subr.mxu0 0.0
    %2741 = vmatpush1.msra.mxu0 0.0
    %2742 = vmatprep.subr.mxu0 0.0
    %2743 = vmatpush1.msra.mxu0 0.0
    %2744 = vmatprep.subr.mxu0 0.0
    %2745 = vmatpush1.msra.mxu0 0.0
    %2746 = vmatprep.subr.mxu0 0.0
    %2747 = vmatpush1.msra.mxu0 0.0
    %2748 = vmatprep.subr.mxu0 0.0
    %2749 = vmatpush1.msra.mxu0 0.0
    %2750 = vmatprep.subr.mxu0 0.0
    %2751 = vmatpush1.msra.mxu0 0.0
    %2752 = vmatprep.subr.mxu0 0.0
    %2753 = vmatpush1.msra.mxu0 0.0
    %2754 = vmatprep.subr.mxu0 0.0
    %2755 = vmatpush1.msra.mxu0 0.0
    %2756 = vmatprep.subr.mxu0 0.0
    %2757 = vmatpush1.msra.mxu0 0.0
    %2758 = vmatprep.subr.mxu0 0.0
    %2759 = vmatpush1.msra.mxu0 0.0
    %2760 = vmatprep.subr.mxu0 0.0
    %2761 = vmatpush1.msra.mxu0 0.0
    %2762 = vmatprep.subr.mxu0 0.0
    %2763 = vmatpush1.msra.mxu0 0.0
    %2764 = vmatprep.subr.mxu0 0.0
    %2765 = vmatpush1.msra.mxu0 0.0
    %2766 = vmatprep.subr.mxu0 0.0
    %2767 = vmatpush1.msra.mxu0 0.0
    %2768 = vmatprep.subr.mxu0 0.0
    %2769 = vmatpush1.msra.mxu0 0.0
    %2770 = vmatprep.subr.mxu0 0.0
    %2771 = vmatpush1.msra.mxu0 0.0
    %2772 = vmatprep.mubr.f32.mxu0 0.0
    %2773 = vmatmul.mubr.f32.gmra.mrb[0].mxu0 %v2703
    %v2774 = vpop.f32.mrb[0].mxu0
    %v2775 = vadd.f32 0.0, %v2774
    %v2776 = vpop.f32.mrb[0].mxu0
    %2777 = vmatprep.mubr.f32.mxu0 0.0
    %2778 = vmatmul.mubr.f32.gmra.mrb[0].mxu0 %v2706
    %v2779 = vpop.f32.mrb[0].mxu0
    %v2780 = vadd.f32 0.0, %v2779
    %v2781 = vpop.f32.mrb[0].mxu0
    %2782 = vdwg.mxu0
    %v2783 = vadd.f32 %v2368, %v2775
    %v2784 = vadd.f32 %v2369, %v2780
    %2785 = vrot.lane.b32.xlu0 %v2370, 120
    %v2786 = vpop.permute.xlu0 %2785
    %2787 = vrot.lane.b32.xlu0 %v2354, 88
    %v2788 = vpop.permute.xlu0 %2787
    %v2789 = vsel %vm321, %v2786, 0
    %v2791 = vsel %vm321, %v2788, 0
    %2793 = vmatprep.subr.mxu0 0.0
    %2794 = vmatpush1.xpose.msra.mxu0 %v2791
    %2795 = vmatprep.subr.mxu0 0.0
    %2796 = vmatpush1.xpose.msra.mxu0 0.0
    %2797 = vmatprep.subr.mxu0 0.0
    %2798 = vmatpush1.xpose.msra.mxu0 0.0
    %2799 = vmatprep.subr.mxu0 0.0
    %2800 = vmatpush1.xpose.msra.mxu0 0.0
    %2801 = vmatprep.subr.mxu0 0.0
    %2802 = vmatpush1.xpose.msra.mxu0 0.0
    %2803 = vmatprep.subr.mxu0 0.0
    %2804 = vmatpush1.xpose.msra.mxu0 0.0
    %2805 = vmatprep.subr.mxu0 0.0
    %2806 = vmatpush1.xpose.msra.mxu0 0.0
    %2807 = vmatprep.subr.mxu0 0.0
    %2808 = vmatpush1.xpose.msra.mxu0 0.0
    %2809 = vmatprep.subr.mxu0 0.0
    %2810 = vmatpush1.xpose.msra.mxu0 0.0
    %2811 = vmatprep.subr.mxu0 0.0
    %2812 = vmatpush1.xpose.msra.mxu0 0.0
    %2813 = vmatprep.subr.mxu0 0.0
    %2814 = vmatpush1.xpose.msra.mxu0 0.0
    %2815 = vmatprep.subr.mxu0 0.0
    %2816 = vmatpush1.xpose.msra.mxu0 0.0
    %2817 = vmatprep.subr.mxu0 0.0
    %2818 = vmatpush1.xpose.msra.mxu0 0.0
    %2819 = vmatprep.subr.mxu0 0.0
    %2820 = vmatpush1.xpose.msra.mxu0 0.0
    %2821 = vmatprep.subr.mxu0 0.0
    %2822 = vmatpush1.xpose.msra.mxu0 0.0
    %2823 = vmatprep.subr.mxu0 0.0
    %2824 = vmatpush1.xpose.msra.mxu0 0.0
    %2825 = vmatprep.subr.mxu0 0.0
    %2826 = vmatpush1.xpose.msra.mxu0 0.0
    %2827 = vmatprep.subr.mxu0 0.0
    %2828 = vmatpush1.xpose.msra.mxu0 0.0
    %2829 = vmatprep.subr.mxu0 0.0
    %2830 = vmatpush1.xpose.msra.mxu0 0.0
    %2831 = vmatprep.subr.mxu0 0.0
    %2832 = vmatpush1.xpose.msra.mxu0 0.0
    %2833 = vmatprep.subr.mxu0 0.0
    %2834 = vmatpush1.xpose.msra.mxu0 0.0
    %2835 = vmatprep.subr.mxu0 0.0
    %2836 = vmatpush1.xpose.msra.mxu0 0.0
    %2837 = vmatprep.subr.mxu0 0.0
    %2838 = vmatpush1.xpose.msra.mxu0 0.0
    %2839 = vmatprep.subr.mxu0 0.0
    %2840 = vmatpush1.xpose.msra.mxu0 0.0
    %2841 = vmatprep.subr.mxu0 0.0
    %2842 = vmatpush1.xpose.msra.mxu0 0.0
    %2843 = vmatprep.subr.mxu0 0.0
    %2844 = vmatpush1.xpose.msra.mxu0 0.0
    %2845 = vmatprep.subr.mxu0 0.0
    %2846 = vmatpush1.xpose.msra.mxu0 0.0
    %2847 = vmatprep.subr.mxu0 0.0
    %2848 = vmatpush1.xpose.msra.mxu0 0.0
    %2849 = vmatprep.subr.mxu0 0.0
    %2850 = vmatpush1.xpose.msra.mxu0 0.0
    %2851 = vmatprep.subr.mxu0 0.0
    %2852 = vmatpush1.xpose.msra.mxu0 0.0
    %2853 = vmatprep.subr.mxu0 0.0
    %2854 = vmatpush1.xpose.msra.mxu0 0.0
    %2855 = vmatprep.subr.mxu0 0.0
    %2856 = vmatpush1.xpose.msra.mxu0 0.0
    %2857 = vmatprep.mubr.f32.mxu0 0.0
    %2858 = vmatmul.mubr.f32.gmra.mrb[0].mxu0 %v2789
    %v2859 = vpop.f32.mrb[0].mxu0
    %v2860 = vadd.f32 0.0, %v2859
    %v2861 = vpop.f32.mrb[0].mxu0
    %2862 = vdwg.mxu0
    %2863 = vrot.lane.b32.xlu0 %v2371, 120
    %v2864 = vpop.permute.xlu0 %2863
    %2865 = vrot.lane.b32.xlu0 %v2359, 88
    %v2866 = vpop.permute.xlu0 %2865
    %v2867 = vsel %vm321, %v2864, 0
    %v2869 = vsel %vm321, %v2866, 0
    %2871 = vmatprep.subr.mxu0 0.0
    %2872 = vmatpush1.xpose.msra.mxu0 %v2869
    %2873 = vmatprep.subr.mxu0 0.0
    %2874 = vmatpush1.xpose.msra.mxu0 0.0
    %2875 = vmatprep.subr.mxu0 0.0
    %2876 = vmatpush1.xpose.msra.mxu0 0.0
    %2877 = vmatprep.subr.mxu0 0.0
    %2878 = vmatpush1.xpose.msra.mxu0 0.0
    %2879 = vmatprep.subr.mxu0 0.0
    %2880 = vmatpush1.xpose.msra.mxu0 0.0
    %2881 = vmatprep.subr.mxu0 0.0
    %2882 = vmatpush1.xpose.msra.mxu0 0.0
    %2883 = vmatprep.subr.mxu0 0.0
    %2884 = vmatpush1.xpose.msra.mxu0 0.0
    %2885 = vmatprep.subr.mxu0 0.0
    %2886 = vmatpush1.xpose.msra.mxu0 0.0
    %2887 = vmatprep.subr.mxu0 0.0
    %2888 = vmatpush1.xpose.msra.mxu0 0.0
    %2889 = vmatprep.subr.mxu0 0.0
    %2890 = vmatpush1.xpose.msra.mxu0 0.0
    %2891 = vmatprep.subr.mxu0 0.0
    %2892 = vmatpush1.xpose.msra.mxu0 0.0
    %2893 = vmatprep.subr.mxu0 0.0
    %2894 = vmatpush1.xpose.msra.mxu0 0.0
    %2895 = vmatprep.subr.mxu0 0.0
    %2896 = vmatpush1.xpose.msra.mxu0 0.0
    %2897 = vmatprep.subr.mxu0 0.0
    %2898 = vmatpush1.xpose.msra.mxu0 0.0
    %2899 = vmatprep.subr.mxu0 0.0
    %2900 = vmatpush1.xpose.msra.mxu0 0.0
    %2901 = vmatprep.subr.mxu0 0.0
    %2902 = vmatpush1.xpose.msra.mxu0 0.0
    %2903 = vmatprep.subr.mxu0 0.0
    %2904 = vmatpush1.xpose.msra.mxu0 0.0
    %2905 = vmatprep.subr.mxu0 0.0
    %2906 = vmatpush1.xpose.msra.mxu0 0.0
    %2907 = vmatprep.subr.mxu0 0.0
    %2908 = vmatpush1.xpose.msra.mxu0 0.0
    %2909 = vmatprep.subr.mxu0 0.0
    %2910 = vmatpush1.xpose.msra.mxu0 0.0
    %2911 = vmatprep.subr.mxu0 0.0
    %2912 = vmatpush1.xpose.msra.mxu0 0.0
    %2913 = vmatprep.subr.mxu0 0.0
    %2914 = vmatpush1.xpose.msra.mxu0 0.0
    %2915 = vmatprep.subr.mxu0 0.0
    %2916 = vmatpush1.xpose.msra.mxu0 0.0
    %2917 = vmatprep.subr.mxu0 0.0
    %2918 = vmatpush1.xpose.msra.mxu0 0.0
    %2919 = vmatprep.subr.mxu0 0.0
    %2920 = vmatpush1.xpose.msra.mxu0 0.0
    %2921 = vmatprep.subr.mxu0 0.0
    %2922 = vmatpush1.xpose.msra.mxu0 0.0
    %2923 = vmatprep.subr.mxu0 0.0
    %2924 = vmatpush1.xpose.msra.mxu0 0.0
    %2925 = vmatprep.subr.mxu0 0.0
    %2926 = vmatpush1.xpose.msra.mxu0 0.0
    %2927 = vmatprep.subr.mxu0 0.0
    %2928 = vmatpush1.xpose.msra.mxu0 0.0
    %2929 = vmatprep.subr.mxu0 0.0
    %2930 = vmatpush1.xpose.msra.mxu0 0.0
    %2931 = vmatprep.subr.mxu0 0.0
    %2932 = vmatpush1.xpose.msra.mxu0 0.0
    %2933 = vmatprep.subr.mxu0 0.0
    %2934 = vmatpush1.xpose.msra.mxu0 0.0
    %2935 = vmatprep.mubr.f32.mxu0 0.0
    %2936 = vmatmul.mubr.f32.gmra.mrb[0].mxu0 %v2867
    %v2937 = vpop.f32.mrb[0].mxu0
    %v2938 = vadd.f32 0.0, %v2937
    %v2939 = vpop.f32.mrb[0].mxu0
    %2940 = vdwg.mxu0
    %v2941 = vsel %vm321, %v2860, -inf
    %2942 = vmax.xlane.f32.xlu0 %v2941
    %v2943 = vpop.xlane.xlu0 %2942
    %v2944 = vsel %vm321, %v2938, -inf
    %2945 = vmax.xlane.f32.xlu0 %v2944
    %v2946 = vpop.xlane.xlu0 %2945
    %v2947 = vsub.f32 %v2860, %v2943
    %v2948 = vsub.f32 %v2938, %v2946
    %v2949 = vmul.f32 %v2947, 1.442695
    %v2950 = vpow.pop %v2949
    %v2951 = vmul.f32 %v2948, 1.442695
    %v2952 = vpow.pop %v2951
    %v2953 = vsel %vm321, %v2950, 0.0
    %2954 = vadd.xlane.f32.xlu0 %v2953
    %v2955 = vpop.xlane.xlu0 %2954
    %v2956 = vsel %vm321, %v2952, 0.0
    %2957 = vadd.xlane.f32.xlu0 %v2956
    %v2958 = vpop.xlane.xlu0 %2957
    %v2959 = vrcp.pop %v2955
    %v2960 = vrcp.pop %v2958
    %v2961 = vmul.f32 %v2950, %v2959
    %v2962 = vmul.f32 %v2952, %v2960
    %2963 = vrot.lane.b32.xlu0 %v2354, 56
    %v2964 = vpop.permute.xlu0 %2963
    %v2967 = vsel %vm321, %v2961, 0
    %2969 = vmatprep.subr.mxu0 0.0
    %2970 = vmatpush1.msra.mxu0 %v2964
    %2971 = vmatprep.subr.mxu0 0.0
    %2972 = vmatpush1.msra.mxu0 0.0
    %2973 = vmatprep.subr.mxu0 0.0
    %2974 = vmatpush1.msra.mxu0 0.0
    %2975 = vmatprep.subr.mxu0 0.0
    %2976 = vmatpush1.msra.mxu0 0.0
    %2977 = vmatprep.subr.mxu0 0.0
    %2978 = vmatpush1.msra.mxu0 0.0
    %2979 = vmatprep.subr.mxu0 0.0
    %2980 = vmatpush1.msra.mxu0 0.0
    %2981 = vmatprep.subr.mxu0 0.0
    %2982 = vmatpush1.msra.mxu0 0.0
    %2983 = vmatprep.subr.mxu0 0.0
    %2984 = vmatpush1.msra.mxu0 0.0
    %2985 = vmatprep.subr.mxu0 0.0
    %2986 = vmatpush1.msra.mxu0 0.0
    %2987 = vmatprep.subr.mxu0 0.0
    %2988 = vmatpush1.msra.mxu0 0.0
    %2989 = vmatprep.subr.mxu0 0.0
    %2990 = vmatpush1.msra.mxu0 0.0
    %2991 = vmatprep.subr.mxu0 0.0
    %2992 = vmatpush1.msra.mxu0 0.0
    %2993 = vmatprep.subr.mxu0 0.0
    %2994 = vmatpush1.msra.mxu0 0.0
    %2995 = vmatprep.subr.mxu0 0.0
    %2996 = vmatpush1.msra.mxu0 0.0
    %2997 = vmatprep.subr.mxu0 0.0
    %2998 = vmatpush1.msra.mxu0 0.0
    %2999 = vmatprep.subr.mxu0 0.0
    %3000 = vmatpush1.msra.mxu0 0.0
    %3001 = vmatprep.subr.mxu0 0.0
    %3002 = vmatpush1.msra.mxu0 0.0
    %3003 = vmatprep.subr.mxu0 0.0
    %3004 = vmatpush1.msra.mxu0 0.0
    %3005 = vmatprep.subr.mxu0 0.0
    %3006 = vmatpush1.msra.mxu0 0.0
    %3007 = vmatprep.subr.mxu0 0.0
    %3008 = vmatpush1.msra.mxu0 0.0
    %3009 = vmatprep.subr.mxu0 0.0
    %3010 = vmatpush1.msra.mxu0 0.0
    %3011 = vmatprep.subr.mxu0 0.0
    %3012 = vmatpush1.msra.mxu0 0.0
    %3013 = vmatprep.subr.mxu0 0.0
    %3014 = vmatpush1.msra.mxu0 0.0
    %3015 = vmatprep.subr.mxu0 0.0
    %3016 = vmatpush1.msra.mxu0 0.0
    %3017 = vmatprep.subr.mxu0 0.0
    %3018 = vmatpush1.msra.mxu0 0.0
    %3019 = vmatprep.subr.mxu0 0.0
    %3020 = vmatpush1.msra.mxu0 0.0
    %3021 = vmatprep.subr.mxu0 0.0
    %3022 = vmatpush1.msra.mxu0 0.0
    %3023 = vmatprep.subr.mxu0 0.0
    %3024 = vmatpush1.msra.mxu0 0.0
    %3025 = vmatprep.subr.mxu0 0.0
    %3026 = vmatpush1.msra.mxu0 0.0
    %3027 = vmatprep.subr.mxu0 0.0
    %3028 = vmatpush1.msra.mxu0 0.0
    %3029 = vmatprep.subr.mxu0 0.0
    %3030 = vmatpush1.msra.mxu0 0.0
    %3031 = vmatprep.subr.mxu0 0.0
    %3032 = vmatpush1.msra.mxu0 0.0
    %3033 = vmatprep.mubr.f32.mxu0 0.0
    %3034 = vmatmul.mubr.f32.gmra.mrb[0].mxu0 %v2967
    %v3035 = vpop.f32.mrb[0].mxu0
    %v3036 = vadd.f32 0.0, %v3035
    %v3037 = vpop.f32.mrb[0].mxu0
    %3038 = vdwg.mxu0
    %3039 = vrot.lane.b32.xlu0 %v2359, 56
    %v3040 = vpop.permute.xlu0 %3039
    %v3043 = vsel %vm321, %v2962, 0
    %3045 = vmatprep.subr.mxu0 0.0
    %3046 = vmatpush1.msra.mxu0 %v3040
    %3047 = vmatprep.subr.mxu0 0.0
    %3048 = vmatpush1.msra.mxu0 0.0
    %3049 = vmatprep.subr.mxu0 0.0
    %3050 = vmatpush1.msra.mxu0 0.0
    %3051 = vmatprep.subr.mxu0 0.0
    %3052 = vmatpush1.msra.mxu0 0.0
    %3053 = vmatprep.subr.mxu0 0.0
    %3054 = vmatpush1.msra.mxu0 0.0
    %3055 = vmatprep.subr.mxu0 0.0
    %3056 = vmatpush1.msra.mxu0 0.0
    %3057 = vmatprep.subr.mxu0 0.0
    %3058 = vmatpush1.msra.mxu0 0.0
    %3059 = vmatprep.subr.mxu0 0.0
    %3060 = vmatpush1.msra.mxu0 0.0
    %3061 = vmatprep.subr.mxu0 0.0
    %3062 = vmatpush1.msra.mxu0 0.0
    %3063 = vmatprep.subr.mxu0 0.0
    %3064 = vmatpush1.msra.mxu0 0.0
    %3065 = vmatprep.subr.mxu0 0.0
    %3066 = vmatpush1.msra.mxu0 0.0
    %3067 = vmatprep.subr.mxu0 0.0
    %3068 = vmatpush1.msra.mxu0 0.0
    %3069 = vmatprep.subr.mxu0 0.0
    %3070 = vmatpush1.msra.mxu0 0.0
    %3071 = vmatprep.subr.mxu0 0.0
    %3072 = vmatpush1.msra.mxu0 0.0
    %3073 = vmatprep.subr.mxu0 0.0
    %3074 = vmatpush1.msra.mxu0 0.0
    %3075 = vmatprep.subr.mxu0 0.0
    %3076 = vmatpush1.msra.mxu0 0.0
    %3077 = vmatprep.subr.mxu0 0.0
    %3078 = vmatpush1.msra.mxu0 0.0
    %3079 = vmatprep.subr.mxu0 0.0
    %3080 = vmatpush1.msra.mxu0 0.0
    %3081 = vmatprep.subr.mxu0 0.0
    %3082 = vmatpush1.msra.mxu0 0.0
    %3083 = vmatprep.subr.mxu0 0.0
    %3084 = vmatpush1.msra.mxu0 0.0
    %3085 = vmatprep.subr.mxu0 0.0
    %3086 = vmatpush1.msra.mxu0 0.0
    %3087 = vmatprep.subr.mxu0 0.0
    %3088 = vmatpush1.msra.mxu0 0.0
    %3089 = vmatprep.subr.mxu0 0.0
    %3090 = vmatpush1.msra.mxu0 0.0
    %3091 = vmatprep.subr.mxu0 0.0
    %3092 = vmatpush1.msra.mxu0 0.0
    %3093 = vmatprep.subr.mxu0 0.0
    %3094 = vmatpush1.msra.mxu0 0.0
    %3095 = vmatprep.subr.mxu0 0.0
    %3096 = vmatpush1.msra.mxu0 0.0
    %3097 = vmatprep.subr.mxu0 0.0
    %3098 = vmatpush1.msra.mxu0 0.0
    %3099 = vmatprep.subr.mxu0 0.0
    %3100 = vmatpush1.msra.mxu0 0.0
    %3101 = vmatprep.subr.mxu0 0.0
    %3102 = vmatpush1.msra.mxu0 0.0
    %3103 = vmatprep.subr.mxu0 0.0
    %3104 = vmatpush1.msra.mxu0 0.0
    %3105 = vmatprep.subr.mxu0 0.0
    %3106 = vmatpush1.msra.mxu0 0.0
    %3107 = vmatprep.subr.mxu0 0.0
    %3108 = vmatpush1.msra.mxu0 0.0
    %3109 = vmatprep.mubr.f32.mxu0 0.0
    %3110 = vmatmul.mubr.f32.gmra.mrb[0].mxu0 %v3043
    %v3111 = vpop.f32.mrb[0].mxu0
    %v3112 = vadd.f32 0.0, %v3111
    %v3113 = vpop.f32.mrb[0].mxu0
    %3114 = vdwg.mxu0
    %v3116 = vsel %vm321, %v3036, 0
    %v3119 = vsel %vm321, %v3112, 0
    %3121 = vmatprep.subr.mxu0 0.0
    %3122 = vmatpush1.msra.mxu0 %v2244
    %3123 = vmatprep.subr.mxu0 0.0
    %3124 = vmatpush1.msra.mxu0 0.0
    %3125 = vmatprep.subr.mxu0 0.0
    %3126 = vmatpush1.msra.mxu0 0.0
    %3127 = vmatprep.subr.mxu0 0.0
    %3128 = vmatpush1.msra.mxu0 0.0
    %3129 = vmatprep.subr.mxu0 0.0
    %3130 = vmatpush1.msra.mxu0 0.0
    %3131 = vmatprep.subr.mxu0 0.0
    %3132 = vmatpush1.msra.mxu0 0.0
    %3133 = vmatprep.subr.mxu0 0.0
    %3134 = vmatpush1.msra.mxu0 0.0
    %3135 = vmatprep.subr.mxu0 0.0
    %3136 = vmatpush1.msra.mxu0 0.0
    %3137 = vmatprep.subr.mxu0 0.0
    %3138 = vmatpush1.msra.mxu0 0.0
    %3139 = vmatprep.subr.mxu0 0.0
    %3140 = vmatpush1.msra.mxu0 0.0
    %3141 = vmatprep.subr.mxu0 0.0
    %3142 = vmatpush1.msra.mxu0 0.0
    %3143 = vmatprep.subr.mxu0 0.0
    %3144 = vmatpush1.msra.mxu0 0.0
    %3145 = vmatprep.subr.mxu0 0.0
    %3146 = vmatpush1.msra.mxu0 0.0
    %3147 = vmatprep.subr.mxu0 0.0
    %3148 = vmatpush1.msra.mxu0 0.0
    %3149 = vmatprep.subr.mxu0 0.0
    %3150 = vmatpush1.msra.mxu0 0.0
    %3151 = vmatprep.subr.mxu0 0.0
    %3152 = vmatpush1.msra.mxu0 0.0
    %3153 = vmatprep.subr.mxu0 0.0
    %3154 = vmatpush1.msra.mxu0 0.0
    %3155 = vmatprep.subr.mxu0 0.0
    %3156 = vmatpush1.msra.mxu0 0.0
    %3157 = vmatprep.subr.mxu0 0.0
    %3158 = vmatpush1.msra.mxu0 0.0
    %3159 = vmatprep.subr.mxu0 0.0
    %3160 = vmatpush1.msra.mxu0 0.0
    %3161 = vmatprep.subr.mxu0 0.0
    %3162 = vmatpush1.msra.mxu0 0.0
    %3163 = vmatprep.subr.mxu0 0.0
    %3164 = vmatpush1.msra.mxu0 0.0
    %3165 = vmatprep.subr.mxu0 0.0
    %3166 = vmatpush1.msra.mxu0 0.0
    %3167 = vmatprep.subr.mxu0 0.0
    %3168 = vmatpush1.msra.mxu0 0.0
    %3169 = vmatprep.subr.mxu0 0.0
    %3170 = vmatpush1.msra.mxu0 0.0
    %3171 = vmatprep.subr.mxu0 0.0
    %3172 = vmatpush1.msra.mxu0 0.0
    %3173 = vmatprep.subr.mxu0 0.0
    %3174 = vmatpush1.msra.mxu0 0.0
    %3175 = vmatprep.subr.mxu0 0.0
    %3176 = vmatpush1.msra.mxu0 0.0
    %3177 = vmatprep.subr.mxu0 0.0
    %3178 = vmatpush1.msra.mxu0 0.0
    %3179 = vmatprep.subr.mxu0 0.0
    %3180 = vmatpush1.msra.mxu0 0.0
    %3181 = vmatprep.subr.mxu0 0.0
    %3182 = vmatpush1.msra.mxu0 0.0
    %3183 = vmatprep.subr.mxu0 0.0
    %3184 = vmatpush1.msra.mxu0 0.0
    %3185 = vmatprep.mubr.f32.mxu0 0.0
    %3186 = vmatmul.mubr.f32.gmra.mrb[0].mxu0 %v3116
    %v3187 = vpop.f32.mrb[0].mxu0
    %v3188 = vadd.f32 0.0, %v3187
    %v3189 = vpop.f32.mrb[0].mxu0
    %3190 = vmatprep.mubr.f32.mxu0 0.0
    %3191 = vmatmul.mubr.f32.gmra.mrb[0].mxu0 %v3119
    %v3192 = vpop.f32.mrb[0].mxu0
    %v3193 = vadd.f32 0.0, %v3192
    %v3194 = vpop.f32.mrb[0].mxu0
    %3195 = vdwg.mxu0
    %v3196 = vadd.f32 %v2783, %v3188
    %v3197 = vadd.f32 %v2784, %v3193
    %3198 = vrot.lane.b32.xlu0 %v2370, 112
    %v3199 = vpop.permute.xlu0 %3198
    %3200 = vrot.lane.b32.xlu0 %v2354, 80
    %v3201 = vpop.permute.xlu0 %3200
    %v3202 = vsel %vm321, %v3199, 0
    %v3204 = vsel %vm321, %v3201, 0
    %3206 = vmatprep.subr.mxu0 0.0
    %3207 = vmatpush1.xpose.msra.mxu0 %v3204
    %3208 = vmatprep.subr.mxu0 0.0
    %3209 = vmatpush1.xpose.msra.mxu0 0.0
    %3210 = vmatprep.subr.mxu0 0.0
    %3211 = vmatpush1.xpose.msra.mxu0 0.0
    %3212 = vmatprep.subr.mxu0 0.0
    %3213 = vmatpush1.xpose.msra.mxu0 0.0
    %3214 = vmatprep.subr.mxu0 0.0
    %3215 = vmatpush1.xpose.msra.mxu0 0.0
    %3216 = vmatprep.subr.mxu0 0.0
    %3217 = vmatpush1.xpose.msra.mxu0 0.0
    %3218 = vmatprep.subr.mxu0 0.0
    %3219 = vmatpush1.xpose.msra.mxu0 0.0
    %3220 = vmatprep.subr.mxu0 0.0
    %3221 = vmatpush1.xpose.msra.mxu0 0.0
    %3222 = vmatprep.subr.mxu0 0.0
    %3223 = vmatpush1.xpose.msra.mxu0 0.0
    %3224 = vmatprep.subr.mxu0 0.0
    %3225 = vmatpush1.xpose.msra.mxu0 0.0
    %3226 = vmatprep.subr.mxu0 0.0
    %3227 = vmatpush1.xpose.msra.mxu0 0.0
    %3228 = vmatprep.subr.mxu0 0.0
    %3229 = vmatpush1.xpose.msra.mxu0 0.0
    %3230 = vmatprep.subr.mxu0 0.0
    %3231 = vmatpush1.xpose.msra.mxu0 0.0
    %3232 = vmatprep.subr.mxu0 0.0
    %3233 = vmatpush1.xpose.msra.mxu0 0.0
    %3234 = vmatprep.subr.mxu0 0.0
    %3235 = vmatpush1.xpose.msra.mxu0 0.0
    %3236 = vmatprep.subr.mxu0 0.0
    %3237 = vmatpush1.xpose.msra.mxu0 0.0
    %3238 = vmatprep.subr.mxu0 0.0
    %3239 = vmatpush1.xpose.msra.mxu0 0.0
    %3240 = vmatprep.subr.mxu0 0.0
    %3241 = vmatpush1.xpose.msra.mxu0 0.0
    %3242 = vmatprep.subr.mxu0 0.0
    %3243 = vmatpush1.xpose.msra.mxu0 0.0
    %3244 = vmatprep.subr.mxu0 0.0
    %3245 = vmatpush1.xpose.msra.mxu0 0.0
    %3246 = vmatprep.subr.mxu0 0.0
    %3247 = vmatpush1.xpose.msra.mxu0 0.0
    %3248 = vmatprep.subr.mxu0 0.0
    %3249 = vmatpush1.xpose.msra.mxu0 0.0
    %3250 = vmatprep.subr.mxu0 0.0
    %3251 = vmatpush1.xpose.msra.mxu0 0.0
    %3252 = vmatprep.subr.mxu0 0.0
    %3253 = vmatpush1.xpose.msra.mxu0 0.0
    %3254 = vmatprep.subr.mxu0 0.0
    %3255 = vmatpush1.xpose.msra.mxu0 0.0
    %3256 = vmatprep.subr.mxu0 0.0
    %3257 = vmatpush1.xpose.msra.mxu0 0.0
    %3258 = vmatprep.subr.mxu0 0.0
    %3259 = vmatpush1.xpose.msra.mxu0 0.0
    %3260 = vmatprep.subr.mxu0 0.0
    %3261 = vmatpush1.xpose.msra.mxu0 0.0
    %3262 = vmatprep.subr.mxu0 0.0
    %3263 = vmatpush1.xpose.msra.mxu0 0.0
    %3264 = vmatprep.subr.mxu0 0.0
    %3265 = vmatpush1.xpose.msra.mxu0 0.0
    %3266 = vmatprep.subr.mxu0 0.0
    %3267 = vmatpush1.xpose.msra.mxu0 0.0
    %3268 = vmatprep.subr.mxu0 0.0
    %3269 = vmatpush1.xpose.msra.mxu0 0.0
    %3270 = vmatprep.mubr.f32.mxu0 0.0
    %3271 = vmatmul.mubr.f32.gmra.mrb[0].mxu0 %v3202
    %v3272 = vpop.f32.mrb[0].mxu0
    %v3273 = vadd.f32 0.0, %v3272
    %v3274 = vpop.f32.mrb[0].mxu0
    %3275 = vdwg.mxu0
    %3276 = vrot.lane.b32.xlu0 %v2371, 112
    %v3277 = vpop.permute.xlu0 %3276
    %3278 = vrot.lane.b32.xlu0 %v2359, 80
    %v3279 = vpop.permute.xlu0 %3278
    %v3280 = vsel %vm321, %v3277, 0
    %v3282 = vsel %vm321, %v3279, 0
    %3284 = vmatprep.subr.mxu0 0.0
    %3285 = vmatpush1.xpose.msra.mxu0 %v3282
    %3286 = vmatprep.subr.mxu0 0.0
    %3287 = vmatpush1.xpose.msra.mxu0 0.0
    %3288 = vmatprep.subr.mxu0 0.0
    %3289 = vmatpush1.xpose.msra.mxu0 0.0
    %3290 = vmatprep.subr.mxu0 0.0
    %3291 = vmatpush1.xpose.msra.mxu0 0.0
    %3292 = vmatprep.subr.mxu0 0.0
    %3293 = vmatpush1.xpose.msra.mxu0 0.0
    %3294 = vmatprep.subr.mxu0 0.0
    %3295 = vmatpush1.xpose.msra.mxu0 0.0
    %3296 = vmatprep.subr.mxu0 0.0
    %3297 = vmatpush1.xpose.msra.mxu0 0.0
    %3298 = vmatprep.subr.mxu0 0.0
    %3299 = vmatpush1.xpose.msra.mxu0 0.0
    %3300 = vmatprep.subr.mxu0 0.0
    %3301 = vmatpush1.xpose.msra.mxu0 0.0
    %3302 = vmatprep.subr.mxu0 0.0
    %3303 = vmatpush1.xpose.msra.mxu0 0.0
    %3304 = vmatprep.subr.mxu0 0.0
    %3305 = vmatpush1.xpose.msra.mxu0 0.0
    %3306 = vmatprep.subr.mxu0 0.0
    %3307 = vmatpush1.xpose.msra.mxu0 0.0
    %3308 = vmatprep.subr.mxu0 0.0
    %3309 = vmatpush1.xpose.msra.mxu0 0.0
    %3310 = vmatprep.subr.mxu0 0.0
    %3311 = vmatpush1.xpose.msra.mxu0 0.0
    %3312 = vmatprep.subr.mxu0 0.0
    %3313 = vmatpush1.xpose.msra.mxu0 0.0
    %3314 = vmatprep.subr.mxu0 0.0
    %3315 = vmatpush1.xpose.msra.mxu0 0.0
    %3316 = vmatprep.subr.mxu0 0.0
    %3317 = vmatpush1.xpose.msra.mxu0 0.0
    %3318 = vmatprep.subr.mxu0 0.0
    %3319 = vmatpush1.xpose.msra.mxu0 0.0
    %3320 = vmatprep.subr.mxu0 0.0
    %3321 = vmatpush1.xpose.msra.mxu0 0.0
    %3322 = vmatprep.subr.mxu0 0.0
    %3323 = vmatpush1.xpose.msra.mxu0 0.0
    %3324 = vmatprep.subr.mxu0 0.0
    %3325 = vmatpush1.xpose.msra.mxu0 0.0
    %3326 = vmatprep.subr.mxu0 0.0
    %3327 = vmatpush1.xpose.msra.mxu0 0.0
    %3328 = vmatprep.subr.mxu0 0.0
    %3329 = vmatpush1.xpose.msra.mxu0 0.0
    %3330 = vmatprep.subr.mxu0 0.0
    %3331 = vmatpush1.xpose.msra.mxu0 0.0
    %3332 = vmatprep.subr.mxu0 0.0
    %3333 = vmatpush1.xpose.msra.mxu0 0.0
    %3334 = vmatprep.subr.mxu0 0.0
    %3335 = vmatpush1.xpose.msra.mxu0 0.0
    %3336 = vmatprep.subr.mxu0 0.0
    %3337 = vmatpush1.xpose.msra.mxu0 0.0
    %3338 = vmatprep.subr.mxu0 0.0
    %3339 = vmatpush1.xpose.msra.mxu0 0.0
    %3340 = vmatprep.subr.mxu0 0.0
    %3341 = vmatpush1.xpose.msra.mxu0 0.0
    %3342 = vmatprep.subr.mxu0 0.0
    %3343 = vmatpush1.xpose.msra.mxu0 0.0
    %3344 = vmatprep.subr.mxu0 0.0
    %3345 = vmatpush1.xpose.msra.mxu0 0.0
    %3346 = vmatprep.subr.mxu0 0.0
    %3347 = vmatpush1.xpose.msra.mxu0 0.0
    %3348 = vmatprep.mubr.f32.mxu0 0.0
    %3349 = vmatmul.mubr.f32.gmra.mrb[0].mxu0 %v3280
    %v3350 = vpop.f32.mrb[0].mxu0
    %v3351 = vadd.f32 0.0, %v3350
    %v3352 = vpop.f32.mrb[0].mxu0
    %3353 = vdwg.mxu0
    %v3354 = vsel %vm321, %v3273, -inf
    %3355 = vmax.xlane.f32.xlu0 %v3354
    %v3356 = vpop.xlane.xlu0 %3355
    %v3357 = vsel %vm321, %v3351, -inf
    %3358 = vmax.xlane.f32.xlu0 %v3357
    %v3359 = vpop.xlane.xlu0 %3358
    %v3360 = vsub.f32 %v3273, %v3356
    %v3361 = vsub.f32 %v3351, %v3359
    %v3362 = vmul.f32 %v3360, 1.442695
    %v3363 = vpow.pop %v3362
    %v3364 = vmul.f32 %v3361, 1.442695
    %v3365 = vpow.pop %v3364
    %v3366 = vsel %vm321, %v3363, 0.0
    %3367 = vadd.xlane.f32.xlu0 %v3366
    %v3368 = vpop.xlane.xlu0 %3367
    %v3369 = vsel %vm321, %v3365, 0.0
    %3370 = vadd.xlane.f32.xlu0 %v3369
    %v3371 = vpop.xlane.xlu0 %3370
    %v3372 = vrcp.pop %v3368
    %v3373 = vrcp.pop %v3371
    %v3374 = vmul.f32 %v3363, %v3372
    %v3375 = vmul.f32 %v3365, %v3373
    %3376 = vrot.lane.b32.xlu0 %v2354, 48
    %v3377 = vpop.permute.xlu0 %3376
    %v3380 = vsel %vm321, %v3374, 0
    %3382 = vmatprep.subr.mxu0 0.0
    %3383 = vmatpush1.msra.mxu0 %v3377
    %3384 = vmatprep.subr.mxu0 0.0
    %3385 = vmatpush1.msra.mxu0 0.0
    %3386 = vmatprep.subr.mxu0 0.0
    %3387 = vmatpush1.msra.mxu0 0.0
    %3388 = vmatprep.subr.mxu0 0.0
    %3389 = vmatpush1.msra.mxu0 0.0
    %3390 = vmatprep.subr.mxu0 0.0
    %3391 = vmatpush1.msra.mxu0 0.0
    %3392 = vmatprep.subr.mxu0 0.0
    %3393 = vmatpush1.msra.mxu0 0.0
    %3394 = vmatprep.subr.mxu0 0.0
    %3395 = vmatpush1.msra.mxu0 0.0
    %3396 = vmatprep.subr.mxu0 0.0
    %3397 = vmatpush1.msra.mxu0 0.0
    %3398 = vmatprep.subr.mxu0 0.0
    %3399 = vmatpush1.msra.mxu0 0.0
    %3400 = vmatprep.subr.mxu0 0.0
    %3401 = vmatpush1.msra.mxu0 0.0
    %3402 = vmatprep.subr.mxu0 0.0
    %3403 = vmatpush1.msra.mxu0 0.0
    %3404 = vmatprep.subr.mxu0 0.0
    %3405 = vmatpush1.msra.mxu0 0.0
    %3406 = vmatprep.subr.mxu0 0.0
    %3407 = vmatpush1.msra.mxu0 0.0
    %3408 = vmatprep.subr.mxu0 0.0
    %3409 = vmatpush1.msra.mxu0 0.0
    %3410 = vmatprep.subr.mxu0 0.0
    %3411 = vmatpush1.msra.mxu0 0.0
    %3412 = vmatprep.subr.mxu0 0.0
    %3413 = vmatpush1.msra.mxu0 0.0
    %3414 = vmatprep.subr.mxu0 0.0
    %3415 = vmatpush1.msra.mxu0 0.0
    %3416 = vmatprep.subr.mxu0 0.0
    %3417 = vmatpush1.msra.mxu0 0.0
    %3418 = vmatprep.subr.mxu0 0.0
    %3419 = vmatpush1.msra.mxu0 0.0
    %3420 = vmatprep.subr.mxu0 0.0
    %3421 = vmatpush1.msra.mxu0 0.0
    %3422 = vmatprep.subr.mxu0 0.0
    %3423 = vmatpush1.msra.mxu0 0.0
    %3424 = vmatprep.subr.mxu0 0.0
    %3425 = vmatpush1.msra.mxu0 0.0
    %3426 = vmatprep.subr.mxu0 0.0
    %3427 = vmatpush1.msra.mxu0 0.0
    %3428 = vmatprep.subr.mxu0 0.0
    %3429 = vmatpush1.msra.mxu0 0.0
    %3430 = vmatprep.subr.mxu0 0.0
    %3431 = vmatpush1.msra.mxu0 0.0
    %3432 = vmatprep.subr.mxu0 0.0
    %3433 = vmatpush1.msra.mxu0 0.0
    %3434 = vmatprep.subr.mxu0 0.0
    %3435 = vmatpush1.msra.mxu0 0.0
    %3436 = vmatprep.subr.mxu0 0.0
    %3437 = vmatpush1.msra.mxu0 0.0
    %3438 = vmatprep.subr.mxu0 0.0
    %3439 = vmatpush1.msra.mxu0 0.0
    %3440 = vmatprep.subr.mxu0 0.0
    %3441 = vmatpush1.msra.mxu0 0.0
    %3442 = vmatprep.subr.mxu0 0.0
    %3443 = vmatpush1.msra.mxu0 0.0
    %3444 = vmatprep.subr.mxu0 0.0
    %3445 = vmatpush1.msra.mxu0 0.0
    %3446 = vmatprep.mubr.f32.mxu0 0.0
    %3447 = vmatmul.mubr.f32.gmra.mrb[0].mxu0 %v3380
    %v3448 = vpop.f32.mrb[0].mxu0
    %v3449 = vadd.f32 0.0, %v3448
    %v3450 = vpop.f32.mrb[0].mxu0
    %3451 = vdwg.mxu0
    %3452 = vrot.lane.b32.xlu0 %v2359, 48
    %v3453 = vpop.permute.xlu0 %3452
    %v3456 = vsel %vm321, %v3375, 0
    %3458 = vmatprep.subr.mxu0 0.0
    %3459 = vmatpush1.msra.mxu0 %v3453
    %3460 = vmatprep.subr.mxu0 0.0
    %3461 = vmatpush1.msra.mxu0 0.0
    %3462 = vmatprep.subr.mxu0 0.0
    %3463 = vmatpush1.msra.mxu0 0.0
    %3464 = vmatprep.subr.mxu0 0.0
    %3465 = vmatpush1.msra.mxu0 0.0
    %3466 = vmatprep.subr.mxu0 0.0
    %3467 = vmatpush1.msra.mxu0 0.0
    %3468 = vmatprep.subr.mxu0 0.0
    %3469 = vmatpush1.msra.mxu0 0.0
    %3470 = vmatprep.subr.mxu0 0.0
    %3471 = vmatpush1.msra.mxu0 0.0
    %3472 = vmatprep.subr.mxu0 0.0
    %3473 = vmatpush1.msra.mxu0 0.0
    %3474 = vmatprep.subr.mxu0 0.0
    %3475 = vmatpush1.msra.mxu0 0.0
    %3476 = vmatprep.subr.mxu0 0.0
    %3477 = vmatpush1.msra.mxu0 0.0
    %3478 = vmatprep.subr.mxu0 0.0
    %3479 = vmatpush1.msra.mxu0 0.0
    %3480 = vmatprep.subr.mxu0 0.0
    %3481 = vmatpush1.msra.mxu0 0.0
    %3482 = vmatprep.subr.mxu0 0.0
    %3483 = vmatpush1.msra.mxu0 0.0
    %3484 = vmatprep.subr.mxu0 0.0
    %3485 = vmatpush1.msra.mxu0 0.0
    %3486 = vmatprep.subr.mxu0 0.0
    %3487 = vmatpush1.msra.mxu0 0.0
    %3488 = vmatprep.subr.mxu0 0.0
    %3489 = vmatpush1.msra.mxu0 0.0
    %3490 = vmatprep.subr.mxu0 0.0
    %3491 = vmatpush1.msra.mxu0 0.0
    %3492 = vmatprep.subr.mxu0 0.0
    %3493 = vmatpush1.msra.mxu0 0.0
    %3494 = vmatprep.subr.mxu0 0.0
    %3495 = vmatpush1.msra.mxu0 0.0
    %3496 = vmatprep.subr.mxu0 0.0
    %3497 = vmatpush1.msra.mxu0 0.0
    %3498 = vmatprep.subr.mxu0 0.0
    %3499 = vmatpush1.msra.mxu0 0.0
    %3500 = vmatprep.subr.mxu0 0.0
    %3501 = vmatpush1.msra.mxu0 0.0
    %3502 = vmatprep.subr.mxu0 0.0
    %3503 = vmatpush1.msra.mxu0 0.0
    %3504 = vmatprep.subr.mxu0 0.0
    %3505 = vmatpush1.msra.mxu0 0.0
    %3506 = vmatprep.subr.mxu0 0.0
    %3507 = vmatpush1.msra.mxu0 0.0
    %3508 = vmatprep.subr.mxu0 0.0
    %3509 = vmatpush1.msra.mxu0 0.0
    %3510 = vmatprep.subr.mxu0 0.0
    %3511 = vmatpush1.msra.mxu0 0.0
    %3512 = vmatprep.subr.mxu0 0.0
    %3513 = vmatpush1.msra.mxu0 0.0
    %3514 = vmatprep.subr.mxu0 0.0
    %3515 = vmatpush1.msra.mxu0 0.0
    %3516 = vmatprep.subr.mxu0 0.0
    %3517 = vmatpush1.msra.mxu0 0.0
    %3518 = vmatprep.subr.mxu0 0.0
    %3519 = vmatpush1.msra.mxu0 0.0
    %3520 = vmatprep.subr.mxu0 0.0
    %3521 = vmatpush1.msra.mxu0 0.0
    %3522 = vmatprep.mubr.f32.mxu0 0.0
    %3523 = vmatmul.mubr.f32.gmra.mrb[0].mxu0 %v3456
    %v3524 = vpop.f32.mrb[0].mxu0
    %v3525 = vadd.f32 0.0, %v3524
    %v3526 = vpop.f32.mrb[0].mxu0
    %3527 = vdwg.mxu0
    %v3529 = vsel %vm321, %v3449, 0
    %v3532 = vsel %vm321, %v3525, 0
    %3534 = vmatprep.subr.mxu0 0.0
    %3535 = vmatpush1.msra.mxu0 %v2245
    %3536 = vmatprep.subr.mxu0 0.0
    %3537 = vmatpush1.msra.mxu0 0.0
    %3538 = vmatprep.subr.mxu0 0.0
    %3539 = vmatpush1.msra.mxu0 0.0
    %3540 = vmatprep.subr.mxu0 0.0
    %3541 = vmatpush1.msra.mxu0 0.0
    %3542 = vmatprep.subr.mxu0 0.0
    %3543 = vmatpush1.msra.mxu0 0.0
    %3544 = vmatprep.subr.mxu0 0.0
    %3545 = vmatpush1.msra.mxu0 0.0
    %3546 = vmatprep.subr.mxu0 0.0
    %3547 = vmatpush1.msra.mxu0 0.0
    %3548 = vmatprep.subr.mxu0 0.0
    %3549 = vmatpush1.msra.mxu0 0.0
    %3550 = vmatprep.subr.mxu0 0.0
    %3551 = vmatpush1.msra.mxu0 0.0
    %3552 = vmatprep.subr.mxu0 0.0
    %3553 = vmatpush1.msra.mxu0 0.0
    %3554 = vmatprep.subr.mxu0 0.0
    %3555 = vmatpush1.msra.mxu0 0.0
    %3556 = vmatprep.subr.mxu0 0.0
    %3557 = vmatpush1.msra.mxu0 0.0
    %3558 = vmatprep.subr.mxu0 0.0
    %3559 = vmatpush1.msra.mxu0 0.0
    %3560 = vmatprep.subr.mxu0 0.0
    %3561 = vmatpush1.msra.mxu0 0.0
    %3562 = vmatprep.subr.mxu0 0.0
    %3563 = vmatpush1.msra.mxu0 0.0
    %3564 = vmatprep.subr.mxu0 0.0
    %3565 = vmatpush1.msra.mxu0 0.0
    %3566 = vmatprep.subr.mxu0 0.0
    %3567 = vmatpush1.msra.mxu0 0.0
    %3568 = vmatprep.subr.mxu0 0.0
    %3569 = vmatpush1.msra.mxu0 0.0
    %3570 = vmatprep.subr.mxu0 0.0
    %3571 = vmatpush1.msra.mxu0 0.0
    %3572 = vmatprep.subr.mxu0 0.0
    %3573 = vmatpush1.msra.mxu0 0.0
    %3574 = vmatprep.subr.mxu0 0.0
    %3575 = vmatpush1.msra.mxu0 0.0
    %3576 = vmatprep.subr.mxu0 0.0
    %3577 = vmatpush1.msra.mxu0 0.0
    %3578 = vmatprep.subr.mxu0 0.0
    %3579 = vmatpush1.msra.mxu0 0.0
    %3580 = vmatprep.subr.mxu0 0.0
    %3581 = vmatpush1.msra.mxu0 0.0
    %3582 = vmatprep.subr.mxu0 0.0
    %3583 = vmatpush1.msra.mxu0 0.0
    %3584 = vmatprep.subr.mxu0 0.0
    %3585 = vmatpush1.msra.mxu0 0.0
    %3586 = vmatprep.subr.mxu0 0.0
    %3587 = vmatpush1.msra.mxu0 0.0
    %3588 = vmatprep.subr.mxu0 0.0
    %3589 = vmatpush1.msra.mxu0 0.0
    %3590 = vmatprep.subr.mxu0 0.0
    %3591 = vmatpush1.msra.mxu0 0.0
    %3592 = vmatprep.subr.mxu0 0.0
    %3593 = vmatpush1.msra.mxu0 0.0
    %3594 = vmatprep.subr.mxu0 0.0
    %3595 = vmatpush1.msra.mxu0 0.0
    %3596 = vmatprep.subr.mxu0 0.0
    %3597 = vmatpush1.msra.mxu0 0.0
    %3598 = vmatprep.mubr.f32.mxu0 0.0
    %3599 = vmatmul.mubr.f32.gmra.mrb[0].mxu0 %v3529
    %v3600 = vpop.f32.mrb[0].mxu0
    %v3601 = vadd.f32 0.0, %v3600
    %v3602 = vpop.f32.mrb[0].mxu0
    %3603 = vmatprep.mubr.f32.mxu0 0.0
    %3604 = vmatmul.mubr.f32.gmra.mrb[0].mxu0 %v3532
    %v3605 = vpop.f32.mrb[0].mxu0
    %v3606 = vadd.f32 0.0, %v3605
    %v3607 = vpop.f32.mrb[0].mxu0
    %3608 = vdwg.mxu0
    %v3609 = vadd.f32 %v3196, %v3601
    %v3610 = vadd.f32 %v3197, %v3606
    %3611 = vrot.lane.b32.xlu0 %v2370, 104
    %v3612 = vpop.permute.xlu0 %3611
    %3613 = vrot.lane.b32.xlu0 %v2354, 72
    %v3614 = vpop.permute.xlu0 %3613
    %v3615 = vsel %vm321, %v3612, 0
    %v3617 = vsel %vm321, %v3614, 0
    %3619 = vmatprep.subr.mxu0 0.0
    %3620 = vmatpush1.xpose.msra.mxu0 %v3617
    %3621 = vmatprep.subr.mxu0 0.0
    %3622 = vmatpush1.xpose.msra.mxu0 0.0
    %3623 = vmatprep.subr.mxu0 0.0
    %3624 = vmatpush1.xpose.msra.mxu0 0.0
    %3625 = vmatprep.subr.mxu0 0.0
    %3626 = vmatpush1.xpose.msra.mxu0 0.0
    %3627 = vmatprep.subr.mxu0 0.0
    %3628 = vmatpush1.xpose.msra.mxu0 0.0
    %3629 = vmatprep.subr.mxu0 0.0
    %3630 = vmatpush1.xpose.msra.mxu0 0.0
    %3631 = vmatprep.subr.mxu0 0.0
    %3632 = vmatpush1.xpose.msra.mxu0 0.0
    %3633 = vmatprep.subr.mxu0 0.0
    %3634 = vmatpush1.xpose.msra.mxu0 0.0
    %3635 = vmatprep.subr.mxu0 0.0
    %3636 = vmatpush1.xpose.msra.mxu0 0.0
    %3637 = vmatprep.subr.mxu0 0.0
    %3638 = vmatpush1.xpose.msra.mxu0 0.0
    %3639 = vmatprep.subr.mxu0 0.0
    %3640 = vmatpush1.xpose.msra.mxu0 0.0
    %3641 = vmatprep.subr.mxu0 0.0
    %3642 = vmatpush1.xpose.msra.mxu0 0.0
    %3643 = vmatprep.subr.mxu0 0.0
    %3644 = vmatpush1.xpose.msra.mxu0 0.0
    %3645 = vmatprep.subr.mxu0 0.0
    %3646 = vmatpush1.xpose.msra.mxu0 0.0
    %3647 = vmatprep.subr.mxu0 0.0
    %3648 = vmatpush1.xpose.msra.mxu0 0.0
    %3649 = vmatprep.subr.mxu0 0.0
    %3650 = vmatpush1.xpose.msra.mxu0 0.0
    %3651 = vmatprep.subr.mxu0 0.0
    %3652 = vmatpush1.xpose.msra.mxu0 0.0
    %3653 = vmatprep.subr.mxu0 0.0
    %3654 = vmatpush1.xpose.msra.mxu0 0.0
    %3655 = vmatprep.subr.mxu0 0.0
    %3656 = vmatpush1.xpose.msra.mxu0 0.0
    %3657 = vmatprep.subr.mxu0 0.0
    %3658 = vmatpush1.xpose.msra.mxu0 0.0
    %3659 = vmatprep.subr.mxu0 0.0
    %3660 = vmatpush1.xpose.msra.mxu0 0.0
    %3661 = vmatprep.subr.mxu0 0.0
    %3662 = vmatpush1.xpose.msra.mxu0 0.0
    %3663 = vmatprep.subr.mxu0 0.0
    %3664 = vmatpush1.xpose.msra.mxu0 0.0
    %3665 = vmatprep.subr.mxu0 0.0
    %3666 = vmatpush1.xpose.msra.mxu0 0.0
    %3667 = vmatprep.subr.mxu0 0.0
    %3668 = vmatpush1.xpose.msra.mxu0 0.0
    %3669 = vmatprep.subr.mxu0 0.0
    %3670 = vmatpush1.xpose.msra.mxu0 0.0
    %3671 = vmatprep.subr.mxu0 0.0
    %3672 = vmatpush1.xpose.msra.mxu0 0.0
    %3673 = vmatprep.subr.mxu0 0.0
    %3674 = vmatpush1.xpose.msra.mxu0 0.0
    %3675 = vmatprep.subr.mxu0 0.0
    %3676 = vmatpush1.xpose.msra.mxu0 0.0
    %3677 = vmatprep.subr.mxu0 0.0
    %3678 = vmatpush1.xpose.msra.mxu0 0.0
    %3679 = vmatprep.subr.mxu0 0.0
    %3680 = vmatpush1.xpose.msra.mxu0 0.0
    %3681 = vmatprep.subr.mxu0 0.0
    %3682 = vmatpush1.xpose.msra.mxu0 0.0
    %3683 = vmatprep.mubr.f32.mxu0 0.0
    %3684 = vmatmul.mubr.f32.gmra.mrb[0].mxu0 %v3615
    %v3685 = vpop.f32.mrb[0].mxu0
    %v3686 = vadd.f32 0.0, %v3685
    %v3687 = vpop.f32.mrb[0].mxu0
    %3688 = vdwg.mxu0
    %3689 = vrot.lane.b32.xlu0 %v2371, 104
    %v3690 = vpop.permute.xlu0 %3689
    %3691 = vrot.lane.b32.xlu0 %v2359, 72
    %v3692 = vpop.permute.xlu0 %3691
    %v3693 = vsel %vm321, %v3690, 0
    %v3695 = vsel %vm321, %v3692, 0
    %3697 = vmatprep.subr.mxu0 0.0
    %3698 = vmatpush1.xpose.msra.mxu0 %v3695
    %3699 = vmatprep.subr.mxu0 0.0
    %3700 = vmatpush1.xpose.msra.mxu0 0.0
    %3701 = vmatprep.subr.mxu0 0.0
    %3702 = vmatpush1.xpose.msra.mxu0 0.0
    %3703 = vmatprep.subr.mxu0 0.0
    %3704 = vmatpush1.xpose.msra.mxu0 0.0
    %3705 = vmatprep.subr.mxu0 0.0
    %3706 = vmatpush1.xpose.msra.mxu0 0.0
    %3707 = vmatprep.subr.mxu0 0.0
    %3708 = vmatpush1.xpose.msra.mxu0 0.0
    %3709 = vmatprep.subr.mxu0 0.0
    %3710 = vmatpush1.xpose.msra.mxu0 0.0
    %3711 = vmatprep.subr.mxu0 0.0
    %3712 = vmatpush1.xpose.msra.mxu0 0.0
    %3713 = vmatprep.subr.mxu0 0.0
    %3714 = vmatpush1.xpose.msra.mxu0 0.0
    %3715 = vmatprep.subr.mxu0 0.0
    %3716 = vmatpush1.xpose.msra.mxu0 0.0
    %3717 = vmatprep.subr.mxu0 0.0
    %3718 = vmatpush1.xpose.msra.mxu0 0.0
    %3719 = vmatprep.subr.mxu0 0.0
    %3720 = vmatpush1.xpose.msra.mxu0 0.0
    %3721 = vmatprep.subr.mxu0 0.0
    %3722 = vmatpush1.xpose.msra.mxu0 0.0
    %3723 = vmatprep.subr.mxu0 0.0
    %3724 = vmatpush1.xpose.msra.mxu0 0.0
    %3725 = vmatprep.subr.mxu0 0.0
    %3726 = vmatpush1.xpose.msra.mxu0 0.0
    %3727 = vmatprep.subr.mxu0 0.0
    %3728 = vmatpush1.xpose.msra.mxu0 0.0
    %3729 = vmatprep.subr.mxu0 0.0
    %3730 = vmatpush1.xpose.msra.mxu0 0.0
    %3731 = vmatprep.subr.mxu0 0.0
    %3732 = vmatpush1.xpose.msra.mxu0 0.0
    %3733 = vmatprep.subr.mxu0 0.0
    %3734 = vmatpush1.xpose.msra.mxu0 0.0
    %3735 = vmatprep.subr.mxu0 0.0
    %3736 = vmatpush1.xpose.msra.mxu0 0.0
    %3737 = vmatprep.subr.mxu0 0.0
    %3738 = vmatpush1.xpose.msra.mxu0 0.0
    %3739 = vmatprep.subr.mxu0 0.0
    %3740 = vmatpush1.xpose.msra.mxu0 0.0
    %3741 = vmatprep.subr.mxu0 0.0
    %3742 = vmatpush1.xpose.msra.mxu0 0.0
    %3743 = vmatprep.subr.mxu0 0.0
    %3744 = vmatpush1.xpose.msra.mxu0 0.0
    %3745 = vmatprep.subr.mxu0 0.0
    %3746 = vmatpush1.xpose.msra.mxu0 0.0
    %3747 = vmatprep.subr.mxu0 0.0
    %3748 = vmatpush1.xpose.msra.mxu0 0.0
    %3749 = vmatprep.subr.mxu0 0.0
    %3750 = vmatpush1.xpose.msra.mxu0 0.0
    %3751 = vmatprep.subr.mxu0 0.0
    %3752 = vmatpush1.xpose.msra.mxu0 0.0
    %3753 = vmatprep.subr.mxu0 0.0
    %3754 = vmatpush1.xpose.msra.mxu0 0.0
    %3755 = vmatprep.subr.mxu0 0.0
    %3756 = vmatpush1.xpose.msra.mxu0 0.0
    %3757 = vmatprep.subr.mxu0 0.0
    %3758 = vmatpush1.xpose.msra.mxu0 0.0
    %3759 = vmatprep.subr.mxu0 0.0
    %3760 = vmatpush1.xpose.msra.mxu0 0.0
    %3761 = vmatprep.mubr.f32.mxu0 0.0
    %3762 = vmatmul.mubr.f32.gmra.mrb[0].mxu0 %v3693
    %v3763 = vpop.f32.mrb[0].mxu0
    %v3764 = vadd.f32 0.0, %v3763
    %v3765 = vpop.f32.mrb[0].mxu0
    %3766 = vdwg.mxu0
    %v3767 = vsel %vm321, %v3686, -inf
    %3768 = vmax.xlane.f32.xlu0 %v3767
    %v3769 = vpop.xlane.xlu0 %3768
    %v3770 = vsel %vm321, %v3764, -inf
    %3771 = vmax.xlane.f32.xlu0 %v3770
    %v3772 = vpop.xlane.xlu0 %3771
    %v3773 = vsub.f32 %v3686, %v3769
    %v3774 = vsub.f32 %v3764, %v3772
    %v3775 = vmul.f32 %v3773, 1.442695
    %v3776 = vpow.pop %v3775
    %v3777 = vmul.f32 %v3774, 1.442695
    %v3778 = vpow.pop %v3777
    %v3779 = vsel %vm321, %v3776, 0.0
    %3780 = vadd.xlane.f32.xlu0 %v3779
    %v3781 = vpop.xlane.xlu0 %3780
    %v3782 = vsel %vm321, %v3778, 0.0
    %3783 = vadd.xlane.f32.xlu0 %v3782
    %v3784 = vpop.xlane.xlu0 %3783
    %v3785 = vrcp.pop %v3781
    %v3786 = vrcp.pop %v3784
    %v3787 = vmul.f32 %v3776, %v3785
    %v3788 = vmul.f32 %v3778, %v3786
    %3789 = vrot.lane.b32.xlu0 %v2354, 40
    %v3790 = vpop.permute.xlu0 %3789
    %v3793 = vsel %vm321, %v3787, 0
    %3795 = vmatprep.subr.mxu0 0.0
    %3796 = vmatpush1.msra.mxu0 %v3790
    %3797 = vmatprep.subr.mxu0 0.0
    %3798 = vmatpush1.msra.mxu0 0.0
    %3799 = vmatprep.subr.mxu0 0.0
    %3800 = vmatpush1.msra.mxu0 0.0
    %3801 = vmatprep.subr.mxu0 0.0
    %3802 = vmatpush1.msra.mxu0 0.0
    %3803 = vmatprep.subr.mxu0 0.0
    %3804 = vmatpush1.msra.mxu0 0.0
    %3805 = vmatprep.subr.mxu0 0.0
    %3806 = vmatpush1.msra.mxu0 0.0
    %3807 = vmatprep.subr.mxu0 0.0
    %3808 = vmatpush1.msra.mxu0 0.0
    %3809 = vmatprep.subr.mxu0 0.0
    %3810 = vmatpush1.msra.mxu0 0.0
    %3811 = vmatprep.subr.mxu0 0.0
    %3812 = vmatpush1.msra.mxu0 0.0
    %3813 = vmatprep.subr.mxu0 0.0
    %3814 = vmatpush1.msra.mxu0 0.0
    %3815 = vmatprep.subr.mxu0 0.0
    %3816 = vmatpush1.msra.mxu0 0.0
    %3817 = vmatprep.subr.mxu0 0.0
    %3818 = vmatpush1.msra.mxu0 0.0
    %3819 = vmatprep.subr.mxu0 0.0
    %3820 = vmatpush1.msra.mxu0 0.0
    %3821 = vmatprep.subr.mxu0 0.0
    %3822 = vmatpush1.msra.mxu0 0.0
    %3823 = vmatprep.subr.mxu0 0.0
    %3824 = vmatpush1.msra.mxu0 0.0
    %3825 = vmatprep.subr.mxu0 0.0
    %3826 = vmatpush1.msra.mxu0 0.0
    %3827 = vmatprep.subr.mxu0 0.0
    %3828 = vmatpush1.msra.mxu0 0.0
    %3829 = vmatprep.subr.mxu0 0.0
    %3830 = vmatpush1.msra.mxu0 0.0
    %3831 = vmatprep.subr.mxu0 0.0
    %3832 = vmatpush1.msra.mxu0 0.0
    %3833 = vmatprep.subr.mxu0 0.0
    %3834 = vmatpush1.msra.mxu0 0.0
    %3835 = vmatprep.subr.mxu0 0.0
    %3836 = vmatpush1.msra.mxu0 0.0
    %3837 = vmatprep.subr.mxu0 0.0
    %3838 = vmatpush1.msra.mxu0 0.0
    %3839 = vmatprep.subr.mxu0 0.0
    %3840 = vmatpush1.msra.mxu0 0.0
    %3841 = vmatprep.subr.mxu0 0.0
    %3842 = vmatpush1.msra.mxu0 0.0
    %3843 = vmatprep.subr.mxu0 0.0
    %3844 = vmatpush1.msra.mxu0 0.0
    %3845 = vmatprep.subr.mxu0 0.0
    %3846 = vmatpush1.msra.mxu0 0.0
    %3847 = vmatprep.subr.mxu0 0.0
    %3848 = vmatpush1.msra.mxu0 0.0
    %3849 = vmatprep.subr.mxu0 0.0
    %3850 = vmatpush1.msra.mxu0 0.0
    %3851 = vmatprep.subr.mxu0 0.0
    %3852 = vmatpush1.msra.mxu0 0.0
    %3853 = vmatprep.subr.mxu0 0.0
    %3854 = vmatpush1.msra.mxu0 0.0
    %3855 = vmatprep.subr.mxu0 0.0
    %3856 = vmatpush1.msra.mxu0 0.0
    %3857 = vmatprep.subr.mxu0 0.0
    %3858 = vmatpush1.msra.mxu0 0.0
    %3859 = vmatprep.mubr.f32.mxu0 0.0
    %3860 = vmatmul.mubr.f32.gmra.mrb[0].mxu0 %v3793
    %v3861 = vpop.f32.mrb[0].mxu0
    %v3862 = vadd.f32 0.0, %v3861
    %v3863 = vpop.f32.mrb[0].mxu0
    %3864 = vdwg.mxu0
    %3865 = vrot.lane.b32.xlu0 %v2359, 40
    %v3866 = vpop.permute.xlu0 %3865
    %v3869 = vsel %vm321, %v3788, 0
    %3871 = vmatprep.subr.mxu0 0.0
    %3872 = vmatpush1.msra.mxu0 %v3866
    %3873 = vmatprep.subr.mxu0 0.0
    %3874 = vmatpush1.msra.mxu0 0.0
    %3875 = vmatprep.subr.mxu0 0.0
    %3876 = vmatpush1.msra.mxu0 0.0
    %3877 = vmatprep.subr.mxu0 0.0
    %3878 = vmatpush1.msra.mxu0 0.0
    %3879 = vmatprep.subr.mxu0 0.0
    %3880 = vmatpush1.msra.mxu0 0.0
    %3881 = vmatprep.subr.mxu0 0.0
    %3882 = vmatpush1.msra.mxu0 0.0
    %3883 = vmatprep.subr.mxu0 0.0
    %3884 = vmatpush1.msra.mxu0 0.0
    %3885 = vmatprep.subr.mxu0 0.0
    %3886 = vmatpush1.msra.mxu0 0.0
    %3887 = vmatprep.subr.mxu0 0.0
    %3888 = vmatpush1.msra.mxu0 0.0
    %3889 = vmatprep.subr.mxu0 0.0
    %3890 = vmatpush1.msra.mxu0 0.0
    %3891 = vmatprep.subr.mxu0 0.0
    %3892 = vmatpush1.msra.mxu0 0.0
    %3893 = vmatprep.subr.mxu0 0.0
    %3894 = vmatpush1.msra.mxu0 0.0
    %3895 = vmatprep.subr.mxu0 0.0
    %3896 = vmatpush1.msra.mxu0 0.0
    %3897 = vmatprep.subr.mxu0 0.0
    %3898 = vmatpush1.msra.mxu0 0.0
    %3899 = vmatprep.subr.mxu0 0.0
    %3900 = vmatpush1.msra.mxu0 0.0
    %3901 = vmatprep.subr.mxu0 0.0
    %3902 = vmatpush1.msra.mxu0 0.0
    %3903 = vmatprep.subr.mxu0 0.0
    %3904 = vmatpush1.msra.mxu0 0.0
    %3905 = vmatprep.subr.mxu0 0.0
    %3906 = vmatpush1.msra.mxu0 0.0
    %3907 = vmatprep.subr.mxu0 0.0
    %3908 = vmatpush1.msra.mxu0 0.0
    %3909 = vmatprep.subr.mxu0 0.0
    %3910 = vmatpush1.msra.mxu0 0.0
    %3911 = vmatprep.subr.mxu0 0.0
    %3912 = vmatpush1.msra.mxu0 0.0
    %3913 = vmatprep.subr.mxu0 0.0
    %3914 = vmatpush1.msra.mxu0 0.0
    %3915 = vmatprep.subr.mxu0 0.0
    %3916 = vmatpush1.msra.mxu0 0.0
    %3917 = vmatprep.subr.mxu0 0.0
    %3918 = vmatpush1.msra.mxu0 0.0
    %3919 = vmatprep.subr.mxu0 0.0
    %3920 = vmatpush1.msra.mxu0 0.0
    %3921 = vmatprep.subr.mxu0 0.0
    %3922 = vmatpush1.msra.mxu0 0.0
    %3923 = vmatprep.subr.mxu0 0.0
    %3924 = vmatpush1.msra.mxu0 0.0
    %3925 = vmatprep.subr.mxu0 0.0
    %3926 = vmatpush1.msra.mxu0 0.0
    %3927 = vmatprep.subr.mxu0 0.0
    %3928 = vmatpush1.msra.mxu0 0.0
    %3929 = vmatprep.subr.mxu0 0.0
    %3930 = vmatpush1.msra.mxu0 0.0
    %3931 = vmatprep.subr.mxu0 0.0
    %3932 = vmatpush1.msra.mxu0 0.0
    %3933 = vmatprep.subr.mxu0 0.0
    %3934 = vmatpush1.msra.mxu0 0.0
    %3935 = vmatprep.mubr.f32.mxu0 0.0
    %3936 = vmatmul.mubr.f32.gmra.mrb[0].mxu0 %v3869
    %v3937 = vpop.f32.mrb[0].mxu0
    %v3938 = vadd.f32 0.0, %v3937
    %v3939 = vpop.f32.mrb[0].mxu0
    %3940 = vdwg.mxu0
    %v3942 = vsel %vm321, %v3862, 0
    %v3945 = vsel %vm321, %v3938, 0
    %3947 = vmatprep.subr.mxu0 0.0
    %3948 = vmatpush1.msra.mxu0 %v2246
    %3949 = vmatprep.subr.mxu0 0.0
    %3950 = vmatpush1.msra.mxu0 0.0
    %3951 = vmatprep.subr.mxu0 0.0
    %3952 = vmatpush1.msra.mxu0 0.0
    %3953 = vmatprep.subr.mxu0 0.0
    %3954 = vmatpush1.msra.mxu0 0.0
    %3955 = vmatprep.subr.mxu0 0.0
    %3956 = vmatpush1.msra.mxu0 0.0
    %3957 = vmatprep.subr.mxu0 0.0
    %3958 = vmatpush1.msra.mxu0 0.0
    %3959 = vmatprep.subr.mxu0 0.0
    %3960 = vmatpush1.msra.mxu0 0.0
    %3961 = vmatprep.subr.mxu0 0.0
    %3962 = vmatpush1.msra.mxu0 0.0
    %3963 = vmatprep.subr.mxu0 0.0
    %3964 = vmatpush1.msra.mxu0 0.0
    %3965 = vmatprep.subr.mxu0 0.0
    %3966 = vmatpush1.msra.mxu0 0.0
    %3967 = vmatprep.subr.mxu0 0.0
    %3968 = vmatpush1.msra.mxu0 0.0
    %3969 = vmatprep.subr.mxu0 0.0
    %3970 = vmatpush1.msra.mxu0 0.0
    %3971 = vmatprep.subr.mxu0 0.0
    %3972 = vmatpush1.msra.mxu0 0.0
    %3973 = vmatprep.subr.mxu0 0.0
    %3974 = vmatpush1.msra.mxu0 0.0
    %3975 = vmatprep.subr.mxu0 0.0
    %3976 = vmatpush1.msra.mxu0 0.0
    %3977 = vmatprep.subr.mxu0 0.0
    %3978 = vmatpush1.msra.mxu0 0.0
    %3979 = vmatprep.subr.mxu0 0.0
    %3980 = vmatpush1.msra.mxu0 0.0
    %3981 = vmatprep.subr.mxu0 0.0
    %3982 = vmatpush1.msra.mxu0 0.0
    %3983 = vmatprep.subr.mxu0 0.0
    %3984 = vmatpush1.msra.mxu0 0.0
    %3985 = vmatprep.subr.mxu0 0.0
    %3986 = vmatpush1.msra.mxu0 0.0
    %3987 = vmatprep.subr.mxu0 0.0
    %3988 = vmatpush1.msra.mxu0 0.0
    %3989 = vmatprep.subr.mxu0 0.0
    %3990 = vmatpush1.msra.mxu0 0.0
    %3991 = vmatprep.subr.mxu0 0.0
    %3992 = vmatpush1.msra.mxu0 0.0
    %3993 = vmatprep.subr.mxu0 0.0
    %3994 = vmatpush1.msra.mxu0 0.0
    %3995 = vmatprep.subr.mxu0 0.0
    %3996 = vmatpush1.msra.mxu0 0.0
    %3997 = vmatprep.subr.mxu0 0.0
    %3998 = vmatpush1.msra.mxu0 0.0
    %3999 = vmatprep.subr.mxu0 0.0
    %4000 = vmatpush1.msra.mxu0 0.0
    %4001 = vmatprep.subr.mxu0 0.0
    %4002 = vmatpush1.msra.mxu0 0.0
    %4003 = vmatprep.subr.mxu0 0.0
    %4004 = vmatpush1.msra.mxu0 0.0
    %4005 = vmatprep.subr.mxu0 0.0
    %4006 = vmatpush1.msra.mxu0 0.0
    %4007 = vmatprep.subr.mxu0 0.0
    %4008 = vmatpush1.msra.mxu0 0.0
    %4009 = vmatprep.subr.mxu0 0.0
    %4010 = vmatpush1.msra.mxu0 0.0
    %4011 = vmatprep.mubr.f32.mxu0 0.0
    %4012 = vmatmul.mubr.f32.gmra.mrb[0].mxu0 %v3942
    %v4013 = vpop.f32.mrb[0].mxu0
    %v4014 = vadd.f32 0.0, %v4013
    %v4015 = vpop.f32.mrb[0].mxu0
    %4016 = vmatprep.mubr.f32.mxu0 0.0
    %4017 = vmatmul.mubr.f32.gmra.mrb[0].mxu0 %v3945
    %v4018 = vpop.f32.mrb[0].mxu0
    %v4019 = vadd.f32 0.0, %v4018
    %v4020 = vpop.f32.mrb[0].mxu0
    %4021 = vdwg.mxu0
    %v4022 = vadd.f32 %v3609, %v4014
    %v4023 = vadd.f32 %v3610, %v4019
    %v4024 = vsel %vm226, %v4022, 0.0
    %4025 = vadd.xlane.f32.xlu0 %v4024
    %v4026 = vpop.xlane.xlu0 %4025
    %v4027 = vsel %vm226, %v4023, 0.0
    %4028 = vadd.xlane.f32.xlu0 %v4027
    %v4029 = vpop.xlane.xlu0 %4028
    %v4030 = vmul.f32 %v4026, %v1977
    %v4031 = vmul.f32 %v4029, %v1977
    %v4032 = vsub.f32 %v4022, %v4030
    %v4033 = vsub.f32 %v4023, %v4031
    %v4034 = vmul.f32 %v4032, %v4032
    %v4035 = vmul.f32 %v4033, %v4033
    %v4036 = vsel %vm226, %v4034, 0.0
    %4037 = vadd.xlane.f32.xlu0 %v4036
    %v4038 = vpop.xlane.xlu0 %4037
    %v4039 = vsel %vm226, %v4035, 0.0
    %4040 = vadd.xlane.f32.xlu0 %v4039
    %v4041 = vpop.xlane.xlu0 %4040
    %v4042 = vmul.f32 %v4038, %v1977
    %v4043 = vmul.f32 %v4041, %v1977
    %v4044 = vadd.f32 %v4042, 1e-05
    %v4045 = vadd.f32 %v4043, 1e-05
    %v4046 = vrsqrt.pop %v4044
    %v4047 = vrsqrt.pop %v4045
    %v4048 = vmul.f32 %v4032, %v4046
    %v4049 = vmul.f32 %v4033, %v4047
    %v4051 = vlaneseq
    %v4052 = vshrl.u32 %v4051, 7
    %v4053 = vsub.s32 0, %v4052
    %v4054 = vrot.slane %v2250, %v4053
    %v4056 = vmul.f32 %v4048, %v4054
    %v4057 = vmul.f32 %v4049, %v4054
    %v4059 = vlaneseq
    %v4060 = vshrl.u32 %v4059, 7
    %v4061 = vsub.s32 0, %v4060
    %v4062 = vrot.slane %v2252, %v4061
    %v4064 = vadd.f32 %v4056, %v4062
    %v4065 = vadd.f32 %v4057, %v4062
    %v4067 = vlaneseq
    %v4068 = vshrl.u32 %v4067, 7
    %v4069 = vsub.s32 0, %v4068
    %v4070 = vrot.slane %v2259, %v4069
    %v4073 = vsel %vm226, %v4064, 0
    %v4076 = vsel %vm226, %v4065, 0
    %4078 = vmatprep.subr.mxu0 0.0
    %4079 = vmatpush1.msra.mxu0 %v2254
    %4080 = vmatprep.subr.mxu0 0.0
    %4081 = vmatpush1.msra.mxu0 %v2255
    %4082 = vmatprep.subr.mxu0 0.0
    %4083 = vmatpush1.msra.mxu0 %v2256
    %4084 = vmatprep.subr.mxu0 0.0
    %4085 = vmatpush1.msra.mxu0 %v2257
    %4086 = vmatprep.subr.mxu0 0.0
    %4087 = vmatpush1.msra.mxu0 0.0
    %4088 = vmatprep.subr.mxu0 0.0
    %4089 = vmatpush1.msra.mxu0 0.0
    %4090 = vmatprep.subr.mxu0 0.0
    %4091 = vmatpush1.msra.mxu0 0.0
    %4092 = vmatprep.subr.mxu0 0.0
    %4093 = vmatpush1.msra.mxu0 0.0
    %4094 = vmatprep.subr.mxu0 0.0
    %4095 = vmatpush1.msra.mxu0 0.0
    %4096 = vmatprep.subr.mxu0 0.0
    %4097 = vmatpush1.msra.mxu0 0.0
    %4098 = vmatprep.subr.mxu0 0.0
    %4099 = vmatpush1.msra.mxu0 0.0
    %4100 = vmatprep.subr.mxu0 0.0
    %4101 = vmatpush1.msra.mxu0 0.0
    %4102 = vmatprep.subr.mxu0 0.0
    %4103 = vmatpush1.msra.mxu0 0.0
    %4104 = vmatprep.subr.mxu0 0.0
    %4105 = vmatpush1.msra.mxu0 0.0
    %4106 = vmatprep.subr.mxu0 0.0
    %4107 = vmatpush1.msra.mxu0 0.0
    %4108 = vmatprep.subr.mxu0 0.0
    %4109 = vmatpush1.msra.mxu0 0.0
    %4110 = vmatprep.subr.mxu0 0.0
    %4111 = vmatpush1.msra.mxu0 0.0
    %4112 = vmatprep.subr.mxu0 0.0
    %4113 = vmatpush1.msra.mxu0 0.0
    %4114 = vmatprep.subr.mxu0 0.0
    %4115 = vmatpush1.msra.mxu0 0.0
    %4116 = vmatprep.subr.mxu0 0.0
    %4117 = vmatpush1.msra.mxu0 0.0
    %4118 = vmatprep.subr.mxu0 0.0
    %4119 = vmatpush1.msra.mxu0 0.0
    %4120 = vmatprep.subr.mxu0 0.0
    %4121 = vmatpush1.msra.mxu0 0.0
    %4122 = vmatprep.subr.mxu0 0.0
    %4123 = vmatpush1.msra.mxu0 0.0
    %4124 = vmatprep.subr.mxu0 0.0
    %4125 = vmatpush1.msra.mxu0 0.0
    %4126 = vmatprep.subr.mxu0 0.0
    %4127 = vmatpush1.msra.mxu0 0.0
    %4128 = vmatprep.subr.mxu0 0.0
    %4129 = vmatpush1.msra.mxu0 0.0
    %4130 = vmatprep.subr.mxu0 0.0
    %4131 = vmatpush1.msra.mxu0 0.0
    %4132 = vmatprep.subr.mxu0 0.0
    %4133 = vmatpush1.msra.mxu0 0.0
    %4134 = vmatprep.subr.mxu0 0.0
    %4135 = vmatpush1.msra.mxu0 0.0
    %4136 = vmatprep.subr.mxu0 0.0
    %4137 = vmatpush1.msra.mxu0 0.0
    %4138 = vmatprep.subr.mxu0 0.0
    %4139 = vmatpush1.msra.mxu0 0.0
    %4140 = vmatprep.subr.mxu0 0.0
    %4141 = vmatpush1.msra.mxu0 0.0
    %4142 = vmatprep.mubr.f32.mxu0 0.0
    %4143 = vmatmul.mubr.f32.gmra.mrb[0].mxu0 %v4073
    %v4144 = vpop.f32.mrb[0].mxu0
    %v4145 = vadd.f32 %v4070, %v4144
    %v4146 = vpop.f32.mrb[0].mxu0
    %4147 = vmatprep.mubr.f32.mxu0 0.0
    %4148 = vmatmul.mubr.f32.gmra.mrb[0].mxu0 %v4076
    %v4149 = vpop.f32.mrb[0].mxu0
    %v4150 = vadd.f32 %v4070, %v4149
    %v4151 = vpop.f32.mrb[0].mxu0
    %4152 = vdwg.mxu0
    %v4153 = vmax.f32 %v4145, 0.0
    %v4154 = vmax.f32 %v4150, 0.0
    %v4156 = vlaneseq
    %v4157 = vshrl.u32 %v4156, 7
    %v4158 = vsub.s32 0, %v4157
    %v4159 = vrot.slane %v2270, %v4158
    %v4162 = vsel %vm2109, %v4153, 0
    %v4165 = vsel %vm2109, %v4154, 0
    %4167 = vmatprep.subr.mxu0 0.0
    %4168 = vmatpush1.msra.mxu0 %v2261
    %4169 = vmatprep.subr.mxu0 0.0
    %4170 = vmatpush1.msra.mxu0 %v2262
    %4171 = vmatprep.subr.mxu0 0.0
    %4172 = vmatpush1.msra.mxu0 %v2263
    %4173 = vmatprep.subr.mxu0 0.0
    %4174 = vmatpush1.msra.mxu0 %v2264
    %4175 = vmatprep.subr.mxu0 0.0
    %4176 = vmatpush1.msra.mxu0 %v2265
    %4177 = vmatprep.subr.mxu0 0.0
    %4178 = vmatpush1.msra.mxu0 %v2266
    %4179 = vmatprep.subr.mxu0 0.0
    %4180 = vmatpush1.msra.mxu0 %v2267
    %4181 = vmatprep.subr.mxu0 0.0
    %4182 = vmatpush1.msra.mxu0 %v2268
    %4183 = vmatprep.subr.mxu0 0.0
    %4184 = vmatpush1.msra.mxu0 0.0
    %4185 = vmatprep.subr.mxu0 0.0
    %4186 = vmatpush1.msra.mxu0 0.0
    %4187 = vmatprep.subr.mxu0 0.0
    %4188 = vmatpush1.msra.mxu0 0.0
    %4189 = vmatprep.subr.mxu0 0.0
    %4190 = vmatpush1.msra.mxu0 0.0
    %4191 = vmatprep.subr.mxu0 0.0
    %4192 = vmatpush1.msra.mxu0 0.0
    %4193 = vmatprep.subr.mxu0 0.0
    %4194 = vmatpush1.msra.mxu0 0.0
    %4195 = vmatprep.subr.mxu0 0.0
    %4196 = vmatpush1.msra.mxu0 0.0
    %4197 = vmatprep.subr.mxu0 0.0
    %4198 = vmatpush1.msra.mxu0 0.0
    %4199 = vmatprep.subr.mxu0 0.0
    %4200 = vmatpush1.msra.mxu0 0.0
    %4201 = vmatprep.subr.mxu0 0.0
    %4202 = vmatpush1.msra.mxu0 0.0
    %4203 = vmatprep.subr.mxu0 0.0
    %4204 = vmatpush1.msra.mxu0 0.0
    %4205 = vmatprep.subr.mxu0 0.0
    %4206 = vmatpush1.msra.mxu0 0.0
    %4207 = vmatprep.subr.mxu0 0.0
    %4208 = vmatpush1.msra.mxu0 0.0
    %4209 = vmatprep.subr.mxu0 0.0
    %4210 = vmatpush1.msra.mxu0 0.0
    %4211 = vmatprep.subr.mxu0 0.0
    %4212 = vmatpush1.msra.mxu0 0.0
    %4213 = vmatprep.subr.mxu0 0.0
    %4214 = vmatpush1.msra.mxu0 0.0
    %4215 = vmatprep.subr.mxu0 0.0
    %4216 = vmatpush1.msra.mxu0 0.0
    %4217 = vmatprep.subr.mxu0 0.0
    %4218 = vmatpush1.msra.mxu0 0.0
    %4219 = vmatprep.subr.mxu0 0.0
    %4220 = vmatpush1.msra.mxu0 0.0
    %4221 = vmatprep.subr.mxu0 0.0
    %4222 = vmatpush1.msra.mxu0 0.0
    %4223 = vmatprep.subr.mxu0 0.0
    %4224 = vmatpush1.msra.mxu0 0.0
    %4225 = vmatprep.subr.mxu0 0.0
    %4226 = vmatpush1.msra.mxu0 0.0
    %4227 = vmatprep.subr.mxu0 0.0
    %4228 = vmatpush1.msra.mxu0 0.0
    %4229 = vmatprep.subr.mxu0 0.0
    %4230 = vmatpush1.msra.mxu0 0.0
    %4231 = vmatprep.mubr.f32.mxu0 0.0
    %4232 = vmatmul.mubr.f32.gmra.mrb[0].mxu0 %v4162
    %v4233 = vpop.f32.mrb[0].mxu0
    %v4234 = vadd.f32 %v4159, %v4233
    %v4235 = vpop.f32.mrb[0].mxu0
    %4236 = vmatprep.mubr.f32.mxu0 0.0
    %4237 = vmatmul.mubr.f32.gmra.mrb[0].mxu0 %v4165
    %v4238 = vpop.f32.mrb[0].mxu0
    %v4239 = vadd.f32 %v4159, %v4238
    %v4240 = vpop.f32.mrb[0].mxu0
    %4241 = vdwg.mxu0
    %v4242 = vadd.f32 %v4234, %v4064
    %v4243 = vadd.f32 %v4239, %v4065
    %v4244 = vsel %vm226, %v4242, 0.0
    %4245 = vadd.xlane.f32.xlu0 %v4244
    %v4246 = vpop.xlane.xlu0 %4245
    %v4247 = vsel %vm226, %v4243, 0.0
    %4248 = vadd.xlane.f32.xlu0 %v4247
    %v4249 = vpop.xlane.xlu0 %4248
    %v4250 = vmul.f32 %v4246, %v1977
    %v4251 = vmul.f32 %v4249, %v1977
    %v4252 = vsub.f32 %v4242, %v4250
    %v4253 = vsub.f32 %v4243, %v4251
    %v4254 = vmul.f32 %v4252, %v4252
    %v4255 = vmul.f32 %v4253, %v4253
    %v4256 = vsel %vm226, %v4254, 0.0
    %4257 = vadd.xlane.f32.xlu0 %v4256
    %v4258 = vpop.xlane.xlu0 %4257
    %v4259 = vsel %vm226, %v4255, 0.0
    %4260 = vadd.xlane.f32.xlu0 %v4259
    %v4261 = vpop.xlane.xlu0 %4260
    %v4262 = vmul.f32 %v4258, %v1977
    %v4263 = vmul.f32 %v4261, %v1977
    %v4264 = vadd.f32 %v4262, 1e-05
    %v4265 = vadd.f32 %v4263, 1e-05
    %v4266 = vrsqrt.pop %v4264
    %v4267 = vrsqrt.pop %v4265
    %v4268 = vmul.f32 %v4252, %v4266
    %v4269 = vmul.f32 %v4253, %v4267
    %v4271 = vlaneseq
    %v4272 = vshrl.u32 %v4271, 7
    %v4273 = vsub.s32 0, %v4272
    %v4274 = vrot.slane %v2272, %v4273
    %v4276 = vmul.f32 %v4268, %v4274
    %v4277 = vmul.f32 %v4269, %v4274
    %v4279 = vlaneseq
    %v4280 = vshrl.u32 %v4279, 7
    %v4281 = vsub.s32 0, %v4280
    %v4282 = vrot.slane %v2274, %v4281
    %v4284 = vadd.f32 %v4276, %v4282
    %v4285 = vadd.f32 %v4277, %v4282
    %4286 = vst.msk [vmem:[#allocation8] sm:$0xff] %vm226, %v4284
    %4287 = vst.msk [vmem:[#allocation8 + $0x8] sm:$0xff] %vm226, %v4285
    // Predicated region
    $region78: #{tpu_custom_call.1} parent=1 // pred_check
      _
    $region79: #{tpu_custom_call.1} parent=1 // pred_check_branch
      %4289 = sbr.rel (0) target = $region81
    $region80: #{tpu_custom_call.1} parent=1 // pred_region
      %s4291 = ssub.s32 256, 256
      %4292 = vsyncadd [#allocation4], %s4291
      %s4293 = sshll.u32 [#allocation8], 4
      %s4294 = int_to_ptr.vmem [resolvable:$true] %s4293
      %4299 = dma.vmem_to_hbm [thread:$0]  %s4294, 256, %s16, [#allocation4], 128, 128, 8
    $region81: #{tpu_custom_call.1} parent=1 // pred_fallthru
      _
    // Predicated region
    $region82: #{tpu_custom_call.1} parent=1 // pred_check
      _
    $region83: #{tpu_custom_call.1} parent=1 // pred_check_branch
      %4301 = sbr.rel (0) target = $region85
    $region84: #{tpu_custom_call.1} parent=1 // pred_region
      %4302 = dma.done [#allocation4], 256
    $region85: #{tpu_custom_call.1} parent=1 // pred_fallthru
      _
    %4303 = vsyncpa [#allocation3], 1
    %4304 = vsyncpa [#allocation6], 1
    %4305 = vsyncpa [#allocation4], 1

</llo_original>
